<compile_context>
chip_gen: v7x
topology: tpu7x:2x2x1
jax: 0.10.0
libtpu: 0.0.40
codegen_flags: <defaults>
</compile_context>

<pallas_src>
import jax
import jax.numpy as jnp
import numpy as np
from jax import lax
from jax.experimental import pallas as pl
from jax.experimental.pallas import tpu as pltpu

# Hyper-parameters fixed by the PyTorch module
H_FEAT = 128
NUM_ITER = 20
N_FEATS = 16
E_FEATS = 20
NUM_CLASSES = 4
NEG_SLOPE = 0.01  # nn.LeakyReLU default


def _leaky_relu(x):
    return jnp.where(x >= 0, x, NEG_SLOPE * x)


def _edge_feat0(edge_raw_pad, fc1_w, fc1_b_full):
    """fc1 applied once to the (128-padded) raw edge features; output padded to 128."""
    return jnp.dot(edge_raw_pad, fc1_w,
                   preferred_element_type=jnp.float32) + fc1_b_full


def _lstm_from_state(zx_h, c, w_big, b_full):
    """Fused nn.LSTMCell (gate order i, f, g, o).

    zx_h: [M, 2H] f32 = [x zero-padded to H lanes | h]; one bf16 MXU matmul
    against the pre-stacked [2H, 4H] weight; f32 accumulation and gates.
    """
    gates = jnp.dot(zx_h.astype(jnp.bfloat16), w_big,
                    preferred_element_type=jnp.float32) + b_full
    i_g = jax.nn.sigmoid(gates[:, 0 * H_FEAT:1 * H_FEAT])
    f_g = jax.nn.sigmoid(gates[:, 1 * H_FEAT:2 * H_FEAT])
    g_g = jnp.tanh(gates[:, 2 * H_FEAT:3 * H_FEAT])
    o_g = jax.nn.sigmoid(gates[:, 3 * H_FEAT:4 * H_FEAT])
    c_new = f_g * c + i_g * g_g
    h_new = o_g * jnp.tanh(c_new)
    return h_new, c_new


def _message_step(node_h, edge_h, src_oh, dst_oh, mean_sc,
                  w_src, w_edge, w_dst, e_b_full,
                  w_agg, w_node, n_b_full):
    """edge_mpn / node_mpn message passing.

    Concats eliminated by weight splitting; project with the (padded) weight
    first (bf16 MXU), then apply the f32 one-hot gather / mean-scatter matrix.
    Outputs are zero-padded to 128 lanes (LeakyReLU(0) == 0 keeps padding exact).
    """
    nh_bf = node_h.astype(jnp.bfloat16)
    eh_bf = edge_h.astype(jnp.bfloat16)

    # edge msg = LeakyReLU(src_h@W_src + edge_h@W_edge + dst_h@W_dst + b)
    p_src = jnp.dot(nh_bf, w_src, preferred_element_type=jnp.float32)   # [N,128]
    p_dst = jnp.dot(nh_bf, w_dst, preferred_element_type=jnp.float32)   # [N,128]
    e_pre = (jnp.dot(src_oh, p_src, preferred_element_type=jnp.float32)
             + jnp.dot(dst_oh, p_dst, preferred_element_type=jnp.float32)
             + jnp.dot(eh_bf, w_edge, preferred_element_type=jnp.float32)
             + e_b_full)
    edge_msg = _leaky_relu(e_pre)

    # node msg = LeakyReLU(mean_incoming(edge_h)@W_agg + node_h@W_node + b)
    q = jnp.dot(eh_bf, w_agg, preferred_element_type=jnp.float32)       # [E,128]
    n_pre = (jnp.dot(mean_sc, q, preferred_element_type=jnp.float32)
             + jnp.dot(nh_bf, w_node, preferred_element_type=jnp.float32)
             + n_b_full)
    node_msg = _leaky_relu(n_pre)
    return node_msg, edge_msg


def pdglstm_kernel(node_feat_pad_ref, edge_raw_ref,
                   src_oh_ref, dst_oh_ref, mean_sc_ref,
                   fc1_w_ref, fc1_b_ref,
                   nlstm_w_ref, nlstm_b_ref,
                   elstm_w_ref, elstm_b_ref,
                   w_src_ref, w_edge_ref, w_dst_ref, e_mpn_b_ref,
                   w_agg_ref, w_node_ref, n_mpn_b_ref,
                   pred_w_ref, pred_b_ref,
                   out_ref,
                   n_state_ref, e_state_ref, nc_ref, ec_ref, acc_ref):
    H = H_FEAT
    num_nodes = n_state_ref.shape[0]
    num_edges = e_state_ref.shape[0]

    # ---- iteration-0 state ------------------------------------------------
    nc_ref[...] = jnp.zeros_like(nc_ref)
    ec_ref[...] = jnp.zeros_like(ec_ref)
    acc_ref[...] = jnp.zeros_like(acc_ref)
    # state layout: cols [0,H) = LSTM input (msg), cols [H,2H) = hidden h.
    n_state_ref[:, :H] = node_feat_pad_ref[...]
    n_state_ref[:, H:] = jnp.zeros((num_nodes, H), jnp.float32)
    e_state_ref[:, :H] = _edge_feat0(edge_raw_ref[...], fc1_w_ref[...],
                                     fc1_b_ref[...])
    e_state_ref[:, H:] = jnp.zeros((num_edges, H), jnp.float32)

    def one_iter(it):
        node_h, node_c = _lstm_from_state(n_state_ref[...], nc_ref[...],
                                          nlstm_w_ref[...], nlstm_b_ref[...])
        edge_h, edge_c = _lstm_from_state(e_state_ref[...], ec_ref[...],
                                          elstm_w_ref[...], elstm_b_ref[...])
        nc_ref[...] = node_c
        ec_ref[...] = edge_c
        n_state_ref[:, H:] = node_h
        e_state_ref[:, H:] = edge_h

        # prediction head for this iteration, accumulated in padded lanes.
        # TODO(synk): nn.Dropout(0.5) treated as eval-mode identity.
        acc_ref[...] += jnp.dot(node_h.astype(jnp.bfloat16), pred_w_ref[it],
                                preferred_element_type=jnp.float32)

        node_msg, edge_msg = _message_step(
            node_h, edge_h,
            src_oh_ref[...], dst_oh_ref[...], mean_sc_ref[...],
            w_src_ref[...], w_edge_ref[...], w_dst_ref[...], e_mpn_b_ref[...],
            w_agg_ref[...], w_node_ref[...], n_mpn_b_ref[...])
        n_state_ref[:, :H] = node_msg
        e_state_ref[:, :H] = edge_msg

    # main recurrence: compact fori_loop body with a manual 2x unroll.
    def body(i2, carry):
        one_iter(2 * i2)
        one_iter(2 * i2 + 1)
        return carry

    lax.fori_loop(0, NUM_ITER // 2, body, 0)
    if NUM_ITER % 2:          # static; NUM_ITER is even so this emits nothing
        one_iter(NUM_ITER - 1)

    out_ref[...] = acc_ref[:, :NUM_CLASSES] + pred_b_ref[...]


def pdglstm_forward(prep):
    num_nodes = prep[0].shape[0]
    num_edges = prep[1].shape[0]
    vmem = pl.BlockSpec(memory_space=pltpu.MemorySpace.VMEM)
    return pl.pallas_call(
        pdglstm_kernel,
        out_shape=jax.ShapeDtypeStruct((num_nodes, NUM_CLASSES), jnp.float32),
        in_specs=[vmem] * len(prep),
        out_specs=vmem,
        scratch_shapes=[
            pltpu.VMEM((num_nodes, 2 * H_FEAT), jnp.float32),   # [msg|h] nodes
            pltpu.VMEM((num_edges, 2 * H_FEAT), jnp.float32),   # [msg|h] edges
            pltpu.VMEM((num_nodes, H_FEAT), jnp.float32),       # node c
            pltpu.VMEM((num_edges, H_FEAT), jnp.float32),       # edge c
            pltpu.VMEM((num_nodes, H_FEAT), jnp.float32),       # head accumulator
        ],
    )(*prep)


# ---------------------------------------------------------------------------
# Host-side preparation
# ---------------------------------------------------------------------------
def _graph_matrices(src_idx, dst_idx, num_nodes):
    src_oh = jax.nn.one_hot(src_idx, num_nodes, dtype=jnp.float32)   # [E, N]
    dst_oh = jax.nn.one_hot(dst_idx, num_nodes, dtype=jnp.float32)   # [E, N]
    # TODO(synk): zero-in-degree nodes get a zero mean (in-degree clamped to 1);
    # verify against DGL's UDF-reducer behaviour for isolated nodes if needed.
    indeg = jnp.maximum(jnp.sum(dst_oh, axis=0), 1.0)                # [N]
    mean_scatter = dst_oh.T / indeg[:, None]                         # [N, E]
    return src_oh, dst_oh, mean_scatter


def prepare_inputs(node_feat, edge_feat_raw, src_idx, dst_idx, params):
    """Pad / split / stack weights once on the host; bf16 MXU operands."""
    (fc1_w, fc1_b, nlstm_wih, nlstm_whh, nlstm_b,
     elstm_wih, elstm_whh, elstm_b,
     edge_mpn_w, edge_mpn_b, node_mpn_w, node_mpn_b,
     pred_w, pred_b) = params
    num_nodes = node_feat.shape[0]
    num_edges = edge_feat_raw.shape[0]
    H = H_FEAT
    bf = jnp.bfloat16
    f32 = jnp.float32

    def pad_cols(w):
        return jnp.pad(w, ((0, 0), (0, H - w.shape[-1])))

    def pad_rows(w):
        return jnp.pad(w, ((0, H - w.shape[0]), (0, 0)))

    src_oh, dst_oh, mean_scatter = _graph_matrices(src_idx, dst_idx, num_nodes)

    prep = (
        pad_cols(node_feat).astype(f32),                               # [N,128] msg0
        pad_cols(edge_feat_raw).astype(f32),                           # [E,128]
        src_oh.astype(f32),                                            # [E,N]
        dst_oh.astype(f32),                                            # [E,N]
        mean_scatter.astype(f32),                                      # [N,E]
        pad_rows(pad_cols(fc1_w)).astype(f32),                         # [128,128]
        jnp.broadcast_to(pad_cols(fc1_b), (num_edges, H)).astype(f32),
        jnp.concatenate([pad_rows(nlstm_wih), nlstm_whh], 0).astype(bf),  # [256,512]
        jnp.broadcast_to(nlstm_b, (num_nodes, 4 * H)).astype(f32),
        jnp.concatenate([pad_rows(elstm_wih), elstm_whh], 0).astype(bf),  # [256,512]
        jnp.broadcast_to(elstm_b, (num_edges, 4 * H)).astype(f32),
        pad_cols(edge_mpn_w[0:H]).astype(bf),                          # W_src  [128,128]
        pad_cols(edge_mpn_w[H:2 * H]).astype(bf),                      # W_edge [128,128]
        pad_cols(edge_mpn_w[2 * H:3 * H]).astype(bf),                  # W_dst  [128,128]
        jnp.broadcast_to(pad_cols(edge_mpn_b), (num_edges, H)).astype(f32),
        pad_cols(node_mpn_w[0:H]).astype(bf),                          # W_agg  [128,128]
        pad_cols(node_mpn_w[H:2 * H]).astype(bf),                      # W_node [128,128]
        jnp.broadcast_to(pad_cols(node_mpn_b), (num_nodes, H)).astype(f32),
        jnp.pad(pred_w, ((0, 0), (0, 0), (0, H - NUM_CLASSES))).astype(bf),  # [20,128,128]
        jnp.broadcast_to(jnp.sum(pred_b, axis=0),
                         (num_nodes, NUM_CLASSES)).astype(f32),        # [N,4]
    )
    return prep


# ---------------------------------------------------------------------------
# Pure-JAX references (for the in-script sanity checks)
# ---------------------------------------------------------------------------
def _forward_prepared(prep):
    """Same restructured / bf16 math as the kernel, run by XLA outside Pallas."""
    (node_feat_pad, edge_raw_pad, src_oh, dst_oh, mean_sc,
     fc1_w, fc1_b, nlstm_w, nlstm_b, elstm_w, elstm_b,
     w_src, w_edge, w_dst, e_mpn_b, w_agg, w_node, n_mpn_b,
     pred_w, pred_b) = prep
    n = node_feat_pad.shape[0]
    e = edge_raw_pad.shape[0]

    node_h = jnp.zeros((n, H_FEAT), jnp.float32)
    node_c = jnp.zeros((n, H_FEAT), jnp.float32)
    edge_h = jnp.zeros((e, H_FEAT), jnp.float32)
    edge_c = jnp.zeros((e, H_FEAT), jnp.float32)
    node_msg = node_feat_pad
    edge_msg = _edge_feat0(edge_raw_pad, fc1_w, fc1_b)
    acc = jnp.zeros((n, H_FEAT), jnp.float32)

    for t in range(NUM_ITER):
        node_h, node_c = _lstm_from_state(
            jnp.concatenate([node_msg, node_h], axis=1), node_c, nlstm_w, nlstm_b)
        edge_h, edge_c = _lstm_from_state(
            jnp.concatenate([edge_msg, edge_h], axis=1), edge_c, elstm_w, elstm_b)
        acc = acc + jnp.dot(node_h.astype(jnp.bfloat16), pred_w[t],
                            preferred_element_type=jnp.float32)
        node_msg, edge_msg = _message_step(node_h, edge_h, src_oh, dst_oh, mean_sc,
                                           w_src, w_edge, w_dst, e_mpn_b,
                                           w_agg, w_node, n_mpn_b)
    return acc[:, :NUM_CLASSES] + pred_b


def _reference_forward_f32(node_feat, edge_feat_raw, src_oh, dst_oh, mean_scatter,
                           params):
    """Original (PyTorch-layout) math in full f32: concats, per-iter heads."""
    (fc1_w, fc1_b, nlstm_wih, nlstm_whh, nlstm_b,
     elstm_wih, elstm_whh, elstm_b,
     edge_mpn_w, edge_mpn_b, node_mpn_w, node_mpn_b,
     pred_w, pred_b) = params
    n = node_feat.shape[0]
    e = edge_feat_raw.shape[0]

    def lstm(x, h, c, wih, whh, b):
        gates = x @ wih + h @ whh + b
        i_g = jax.nn.sigmoid(gates[:, 0 * H_FEAT:1 * H_FEAT])
        f_g = jax.nn.sigmoid(gates[:, 1 * H_FEAT:2 * H_FEAT])
        g_g = jnp.tanh(gates[:, 2 * H_FEAT:3 * H_FEAT])
        o_g = jax.nn.sigmoid(gates[:, 3 * H_FEAT:4 * H_FEAT])
        c_new = f_g * c + i_g * g_g
        return o_g * jnp.tanh(c_new), c_new

    edge_feat = edge_feat_raw @ fc1_w + fc1_b
    node_h = jnp.zeros((n, H_FEAT), jnp.float32)
    node_c = jnp.zeros((n, H_FEAT), jnp.float32)
    edge_h = jnp.zeros((e, H_FEAT), jnp.float32)
    edge_c = jnp.zeros((e, H_FEAT), jnp.float32)
    node_msg, edge_msg = node_feat, edge_feat
    out = jnp.zeros((n, NUM_CLASSES), jnp.float32)

    for t in range(NUM_ITER):
        node_h, node_c = lstm(node_msg, node_h, node_c, nlstm_wih, nlstm_whh, nlstm_b)
        edge_h, edge_c = lstm(edge_msg, edge_h, edge_c, elstm_wih, elstm_whh, elstm_b)
        out = out + node_h @ pred_w[t] + pred_b[t]
        src_h = src_oh @ node_h
        dst_h = dst_oh @ node_h
        cat_e = jnp.concatenate([src_h, edge_h, dst_h], axis=1)
        edge_msg = _leaky_relu(cat_e @ edge_mpn_w + edge_mpn_b)
        agg = mean_scatter @ edge_h
        cat_n = jnp.concatenate([agg, node_h], axis=1)
        node_msg = _leaky_relu(cat_n @ node_mpn_w + node_mpn_b)
    return out


# ---------------------------------------------------------------------------
# Synthetic parameters (PyTorch default-init-style uniform, transposed [in,out])
# ---------------------------------------------------------------------------
def init_params(key):
    ks = jax.random.split(key, 16)

    def u(k, shape, fan_in):
        bound = 1.0 / np.sqrt(fan_in)
        return jax.random.uniform(k, shape, jnp.float32, -bound, bound)

    fc1_w = u(ks[0], (2, E_FEATS), 2)
    fc1_b = u(ks[1], (1, E_FEATS), 2)
    nlstm_wih = u(ks[2], (N_FEATS, 4 * H_FEAT), H_FEAT)
    nlstm_whh = u(ks[3], (H_FEAT, 4 * H_FEAT), H_FEAT)
    nlstm_b = u(ks[4], (1, 4 * H_FEAT), H_FEAT) + u(ks[5], (1, 4 * H_FEAT), H_FEAT)
    elstm_wih = u(ks[6], (E_FEATS, 4 * H_FEAT), H_FEAT)
    elstm_whh = u(ks[7], (H_FEAT, 4 * H_FEAT), H_FEAT)
    elstm_b = u(ks[8], (1, 4 * H_FEAT), H_FEAT) + u(ks[9], (1, 4 * H_FEAT), H_FEAT)
    edge_mpn_w = u(ks[10], (3 * H_FEAT, E_FEATS), 3 * H_FEAT)
    edge_mpn_b = u(ks[11], (1, E_FEATS), 3 * H_FEAT)
    node_mpn_w = u(ks[12], (2 * H_FEAT, N_FEATS), 2 * H_FEAT)
    node_mpn_b = u(ks[13], (1, N_FEATS), 2 * H_FEAT)
    pred_w = u(ks[14], (NUM_ITER, H_FEAT, NUM_CLASSES), H_FEAT)
    pred_b = u(ks[15], (NUM_ITER, 1, NUM_CLASSES), H_FEAT)

    return (fc1_w, fc1_b,
            nlstm_wih, nlstm_whh, nlstm_b,
            elstm_wih, elstm_whh, elstm_b,
            edge_mpn_w, edge_mpn_b,
            node_mpn_w, node_mpn_b,
            pred_w, pred_b)


if __name__ == "__main__":
    key = jax.random.PRNGKey(0)
    k_nf, k_ef, k_p = jax.random.split(key, 3)

    # Small synthetic graph: 8 nodes, 16 directed edges (every node in-degree 2).
    num_nodes, num_edges = 8, 16
    node_feat = jax.random.normal(k_nf, (num_nodes, N_FEATS), jnp.float32)
    edge_feat_raw = jax.random.normal(k_ef, (num_edges, 2), jnp.float32)
    src_idx = jnp.array([0, 1, 2, 3, 4, 5, 6, 7, 1, 3, 5, 7, 0, 2, 4, 6], jnp.int32)
    dst_idx = jnp.array([1, 2, 3, 4, 5, 6, 7, 0, 0, 1, 2, 3, 4, 5, 6, 7], jnp.int32)

    params = init_params(k_p)
    prep = prepare_inputs(node_feat, edge_feat_raw, src_idx, dst_idx, params)

    out = pdglstm_forward(prep)
    out = jax.block_until_ready(out)

    # Check 1: Pallas kernel vs identical-math pure-JAX (same bf16 operands).
    ref_same = _forward_prepared(prep)
    np.testing.assert_allclose(np.asarray(out), np.asarray(ref_same),
                               rtol=3e-2, atol=3e-2)

    # Check 2: restructured/bf16 math vs original-layout full-f32 math
    # (loose tolerance to absorb bf16 MXU-operand drift over 20 iterations).
    src_oh, dst_oh, mean_sc = _graph_matrices(src_idx, dst_idx, num_nodes)
    ref_f32 = _reference_forward_f32(node_feat, edge_feat_raw,
                                     src_oh, dst_oh, mean_sc, params)
    np.testing.assert_allclose(np.asarray(out), np.asarray(ref_f32),
                               rtol=1e-1, atol=1e-1)

    print("KERNEL_OK")
</pallas_src>

<mosaic_0001>
module attributes {stable_mosaic.version = 11 : i64} {
  func.func @pdglstm_kernel(%arg0: memref<8x128xf32, #tpu.memory_space<vmem>>, %arg1: memref<16x128xf32, #tpu.memory_space<vmem>>, %arg2: memref<16x8xf32, #tpu.memory_space<vmem>>, %arg3: memref<16x8xf32, #tpu.memory_space<vmem>>, %arg4: memref<8x16xf32, #tpu.memory_space<vmem>>, %arg5: memref<128x128xf32, #tpu.memory_space<vmem>>, %arg6: memref<16x128xf32, #tpu.memory_space<vmem>>, %arg7: memref<256x512xbf16, #tpu.memory_space<vmem>>, %arg8: memref<8x512xf32, #tpu.memory_space<vmem>>, %arg9: memref<256x512xbf16, #tpu.memory_space<vmem>>, %arg10: memref<16x512xf32, #tpu.memory_space<vmem>>, %arg11: memref<128x128xbf16, #tpu.memory_space<vmem>>, %arg12: memref<128x128xbf16, #tpu.memory_space<vmem>>, %arg13: memref<128x128xbf16, #tpu.memory_space<vmem>>, %arg14: memref<16x128xf32, #tpu.memory_space<vmem>>, %arg15: memref<128x128xbf16, #tpu.memory_space<vmem>>, %arg16: memref<128x128xbf16, #tpu.memory_space<vmem>>, %arg17: memref<8x128xf32, #tpu.memory_space<vmem>>, %arg18: memref<20x128x128xbf16, #tpu.memory_space<vmem>>, %arg19: memref<8x4xf32, #tpu.memory_space<vmem>>, %arg20: memref<8x4xf32, #tpu.memory_space<vmem>>, %arg21: memref<8x256xf32, #tpu.memory_space<vmem>>, %arg22: memref<16x256xf32, #tpu.memory_space<vmem>>, %arg23: memref<8x128xf32, #tpu.memory_space<vmem>>, %arg24: memref<16x128xf32, #tpu.memory_space<vmem>>, %arg25: memref<8x128xf32, #tpu.memory_space<vmem>>) attributes {dimension_semantics = [], scalar_prefetch = 0 : i64, scratch_operands = 5 : i64, tpu.core_type = #tpu.core_type<tc>} {
    %cst = arith.constant 0.000000e+00 : f32
    %0 = vector.broadcast %cst : f32 to vector<8x128xf32>
    %c0 = arith.constant 0 : index
    %c0_0 = arith.constant 0 : index
    %1 = vector.load %arg23[%c0, %c0_0] : memref<8x128xf32, #tpu.memory_space<vmem>>, vector<8x128xf32>
    tpu.vector_store %arg23[%c0, %c0_0], %0 {strides = array<i32>} : memref<8x128xf32, #tpu.memory_space<vmem>>, vector<8x128xf32>,
    %cst_1 = arith.constant 0.000000e+00 : f32
    %2 = vector.broadcast %cst_1 : f32 to vector<16x128xf32>
    %c0_2 = arith.constant 0 : index
    %c0_3 = arith.constant 0 : index
    %3 = vector.load %arg24[%c0_2, %c0_3] : memref<16x128xf32, #tpu.memory_space<vmem>>, vector<16x128xf32>
    tpu.vector_store %arg24[%c0_2, %c0_3], %2 {strides = array<i32>} : memref<16x128xf32, #tpu.memory_space<vmem>>, vector<16x128xf32>,
    %cst_4 = arith.constant 0.000000e+00 : f32
    %4 = vector.broadcast %cst_4 : f32 to vector<8x128xf32>
    %c0_5 = arith.constant 0 : index
    %c0_6 = arith.constant 0 : index
    %5 = vector.load %arg25[%c0_5, %c0_6] : memref<8x128xf32, #tpu.memory_space<vmem>>, vector<8x128xf32>
    tpu.vector_store %arg25[%c0_5, %c0_6], %4 {strides = array<i32>} : memref<8x128xf32, #tpu.memory_space<vmem>>, vector<8x128xf32>,
    %c0_7 = arith.constant 0 : index
    %c0_8 = arith.constant 0 : index
    %6 = vector.load %arg0[%c0_7, %c0_8] : memref<8x128xf32, #tpu.memory_space<vmem>>, vector<8x128xf32>
    %c0_9 = arith.constant 0 : index
    %c0_10 = arith.constant 0 : index
    %7 = vector.load %arg21[%c0_9, %c0_10] : memref<8x256xf32, #tpu.memory_space<vmem>>, vector<8x128xf32>
    tpu.vector_store %arg21[%c0_9, %c0_10], %6 {strides = array<i32>} : memref<8x256xf32, #tpu.memory_space<vmem>>, vector<8x128xf32>,
    %cst_11 = arith.constant 0.000000e+00 : f32
    %8 = vector.broadcast %cst_11 : f32 to vector<8x128xf32>
    %c0_12 = arith.constant 0 : index
    %c128 = arith.constant 128 : index
    %9 = vector.load %arg21[%c0_12, %c128] : memref<8x256xf32, #tpu.memory_space<vmem>>, vector<8x128xf32>
    tpu.vector_store %arg21[%c0_12, %c128], %8 {strides = array<i32>} : memref<8x256xf32, #tpu.memory_space<vmem>>, vector<8x128xf32>,
    %c0_13 = arith.constant 0 : index
    %c0_14 = arith.constant 0 : index
    %10 = vector.load %arg1[%c0_13, %c0_14] : memref<16x128xf32, #tpu.memory_space<vmem>>, vector<16x128xf32>
    %c0_15 = arith.constant 0 : index
    %c0_16 = arith.constant 0 : index
    %11 = vector.load %arg5[%c0_15, %c0_16] : memref<128x128xf32, #tpu.memory_space<vmem>>, vector<128x128xf32>
    %c0_17 = arith.constant 0 : index
    %c0_18 = arith.constant 0 : index
    %12 = vector.load %arg6[%c0_17, %c0_18] : memref<16x128xf32, #tpu.memory_space<vmem>>, vector<16x128xf32>
    %cst_19 = arith.constant dense<0.000000e+00> : vector<16x128xf32>
    %13 = tpu.matmul %10, %11, %cst_19 {dimension_numbers = #tpu.dot_dimension_numbers<[1], [0], [0], [1], [0, 0, 1, 1], [], []>} : vector<16x128xf32>, vector<128x128xf32>, vector<16x128xf32> -> vector<16x128xf32>
    %14 = arith.addf %13, %12 : vector<16x128xf32>
    %c0_20 = arith.constant 0 : index
    %c0_21 = arith.constant 0 : index
    %15 = vector.load %arg22[%c0_20, %c0_21] : memref<16x256xf32, #tpu.memory_space<vmem>>, vector<16x128xf32>
    tpu.vector_store %arg22[%c0_20, %c0_21], %14 {strides = array<i32>} : memref<16x256xf32, #tpu.memory_space<vmem>>, vector<16x128xf32>,
    %cst_22 = arith.constant 0.000000e+00 : f32
    %16 = vector.broadcast %cst_22 : f32 to vector<16x128xf32>
    %c0_23 = arith.constant 0 : index
    %c128_24 = arith.constant 128 : index
    %17 = vector.load %arg22[%c0_23, %c128_24] : memref<16x256xf32, #tpu.memory_space<vmem>>, vector<16x128xf32>
    tpu.vector_store %arg22[%c0_23, %c128_24], %16 {strides = array<i32>} : memref<16x256xf32, #tpu.memory_space<vmem>>, vector<16x128xf32>,
    %c0_i32 = arith.constant 0 : i32
    %c10_i32 = arith.constant 10 : i32
    %18 = arith.addi %c0_i32, %c10_i32 : i32
    %c1_i32 = arith.constant 1 : i32
    scf.for %arg26 = %c0_i32 to %18 step %c1_i32  : i32 {
      %c2_i32 = arith.constant 2 : i32
      %23 = arith.muli %c2_i32, %arg26 : i32
      %c0_32 = arith.constant 0 : index
      %c0_33 = arith.constant 0 : index
      %24 = vector.load %arg21[%c0_32, %c0_33] : memref<8x256xf32, #tpu.memory_space<vmem>>, vector<8x256xf32>
      %c0_34 = arith.constant 0 : index
      %c0_35 = arith.constant 0 : index
      %25 = vector.load %arg23[%c0_34, %c0_35] : memref<8x128xf32, #tpu.memory_space<vmem>>, vector<8x128xf32>
      %c0_36 = arith.constant 0 : index
      %c0_37 = arith.constant 0 : index
      %26 = vector.load %arg7[%c0_36, %c0_37] : memref<256x512xbf16, #tpu.memory_space<vmem>>, vector<256x512xbf16>
      %c0_38 = arith.constant 0 : index
      %c0_39 = arith.constant 0 : index
      %27 = vector.load %arg8[%c0_38, %c0_39] : memref<8x512xf32, #tpu.memory_space<vmem>>, vector<8x512xf32>
      %28 = arith.truncf %24 : vector<8x256xf32> to vector<8x256xbf16>
      %cst_40 = arith.constant dense<0.000000e+00> : vector<8x512xf32>
      %29 = tpu.matmul %28, %26, %cst_40 {dimension_numbers = #tpu.dot_dimension_numbers<[1], [0], [0], [1], [0, 0, 1, 1], [], []>} : vector<8x256xbf16>, vector<256x512xbf16>, vector<8x512xf32> -> vector<8x512xf32>
      %30 = arith.addf %29, %27 : vector<8x512xf32>
      %31 = vector.extract_strided_slice %30 {offsets = [0, 0], sizes = [8, 128], strides = [1, 1]} : vector<8x512xf32> to vector<8x128xf32>
      %32 = arith.negf %31 : vector<8x128xf32>
      %33 = math.exp %32 : vector<8x128xf32>
      %cst_41 = arith.constant 1.000000e+00 : f32
      %34 = vector.broadcast %cst_41 : f32 to vector<8x128xf32>
      %35 = arith.addf %34, %33 : vector<8x128xf32>
      %36 = arith.divf %34, %35 : vector<8x128xf32>
      %37 = vector.extract_strided_slice %30 {offsets = [0, 128], sizes = [8, 128], strides = [1, 1]} : vector<8x512xf32> to vector<8x128xf32>
      %38 = arith.negf %37 : vector<8x128xf32>
      %39 = math.exp %38 : vector<8x128xf32>
      %cst_42 = arith.constant 1.000000e+00 : f32
      %40 = vector.broadcast %cst_42 : f32 to vector<8x128xf32>
      %41 = arith.addf %40, %39 : vector<8x128xf32>
      %42 = arith.divf %40, %41 : vector<8x128xf32>
      %43 = vector.extract_strided_slice %30 {offsets = [0, 256], sizes = [8, 128], strides = [1, 1]} : vector<8x512xf32> to vector<8x128xf32>
      %44 = math.tanh %43 : vector<8x128xf32>
      %45 = vector.extract_strided_slice %30 {offsets = [0, 384], sizes = [8, 128], strides = [1, 1]} : vector<8x512xf32> to vector<8x128xf32>
      %46 = arith.negf %45 : vector<8x128xf32>
      %47 = math.exp %46 : vector<8x128xf32>
      %cst_43 = arith.constant 1.000000e+00 : f32
      %48 = vector.broadcast %cst_43 : f32 to vector<8x128xf32>
      %49 = arith.addf %48, %47 : vector<8x128xf32>
      %50 = arith.divf %48, %49 : vector<8x128xf32>
      %51 = arith.mulf %42, %25 : vector<8x128xf32>
      %52 = arith.mulf %36, %44 : vector<8x128xf32>
      %53 = arith.addf %51, %52 : vector<8x128xf32>
      %54 = math.tanh %53 : vector<8x128xf32>
      %55 = arith.mulf %50, %54 : vector<8x128xf32>
      %c0_44 = arith.constant 0 : index
      %c0_45 = arith.constant 0 : index
      %56 = vector.load %arg22[%c0_44, %c0_45] : memref<16x256xf32, #tpu.memory_space<vmem>>, vector<16x256xf32>
      %c0_46 = arith.constant 0 : index
      %c0_47 = arith.constant 0 : index
      %57 = vector.load %arg24[%c0_46, %c0_47] : memref<16x128xf32, #tpu.memory_space<vmem>>, vector<16x128xf32>
      %c0_48 = arith.constant 0 : index
      %c0_49 = arith.constant 0 : index
      %58 = vector.load %arg9[%c0_48, %c0_49] : memref<256x512xbf16, #tpu.memory_space<vmem>>, vector<256x512xbf16>
      %c0_50 = arith.constant 0 : index
      %c0_51 = arith.constant 0 : index
      %59 = vector.load %arg10[%c0_50, %c0_51] : memref<16x512xf32, #tpu.memory_space<vmem>>, vector<16x512xf32>
      %60 = arith.truncf %56 : vector<16x256xf32> to vector<16x256xbf16>
      %cst_52 = arith.constant dense<0.000000e+00> : vector<16x512xf32>
      %61 = tpu.matmul %60, %58, %cst_52 {dimension_numbers = #tpu.dot_dimension_numbers<[1], [0], [0], [1], [0, 0, 1, 1], [], []>} : vector<16x256xbf16>, vector<256x512xbf16>, vector<16x512xf32> -> vector<16x512xf32>
      %62 = arith.addf %61, %59 : vector<16x512xf32>
      %63 = vector.extract_strided_slice %62 {offsets = [0, 0], sizes = [16, 128], strides = [1, 1]} : vector<16x512xf32> to vector<16x128xf32>
      %64 = arith.negf %63 : vector<16x128xf32>
      %65 = math.exp %64 : vector<16x128xf32>
      %cst_53 = arith.constant 1.000000e+00 : f32
      %66 = vector.broadcast %cst_53 : f32 to vector<16x128xf32>
      %67 = arith.addf %66, %65 : vector<16x128xf32>
      %68 = arith.divf %66, %67 : vector<16x128xf32>
      %69 = vector.extract_strided_slice %62 {offsets = [0, 128], sizes = [16, 128], strides = [1, 1]} : vector<16x512xf32> to vector<16x128xf32>
      %70 = arith.negf %69 : vector<16x128xf32>
      %71 = math.exp %70 : vector<16x128xf32>
      %cst_54 = arith.constant 1.000000e+00 : f32
      %72 = vector.broadcast %cst_54 : f32 to vector<16x128xf32>
      %73 = arith.addf %72, %71 : vector<16x128xf32>
      %74 = arith.divf %72, %73 : vector<16x128xf32>
      %75 = vector.extract_strided_slice %62 {offsets = [0, 256], sizes = [16, 128], strides = [1, 1]} : vector<16x512xf32> to vector<16x128xf32>
      %76 = math.tanh %75 : vector<16x128xf32>
      %77 = vector.extract_strided_slice %62 {offsets = [0, 384], sizes = [16, 128], strides = [1, 1]} : vector<16x512xf32> to vector<16x128xf32>
      %78 = arith.negf %77 : vector<16x128xf32>
      %79 = math.exp %78 : vector<16x128xf32>
      %cst_55 = arith.constant 1.000000e+00 : f32
      %80 = vector.broadcast %cst_55 : f32 to vector<16x128xf32>
      %81 = arith.addf %80, %79 : vector<16x128xf32>
      %82 = arith.divf %80, %81 : vector<16x128xf32>
      %83 = arith.mulf %74, %57 : vector<16x128xf32>
      %84 = arith.mulf %68, %76 : vector<16x128xf32>
      %85 = arith.addf %83, %84 : vector<16x128xf32>
      %86 = math.tanh %85 : vector<16x128xf32>
      %87 = arith.mulf %82, %86 : vector<16x128xf32>
      %c0_56 = arith.constant 0 : index
      %c0_57 = arith.constant 0 : index
      %88 = vector.load %arg23[%c0_56, %c0_57] : memref<8x128xf32, #tpu.memory_space<vmem>>, vector<8x128xf32>
      tpu.vector_store %arg23[%c0_56, %c0_57], %53 {strides = array<i32>} : memref<8x128xf32, #tpu.memory_space<vmem>>, vector<8x128xf32>,
      %c0_58 = arith.constant 0 : index
      %c0_59 = arith.constant 0 : index
      %89 = vector.load %arg24[%c0_58, %c0_59] : memref<16x128xf32, #tpu.memory_space<vmem>>, vector<16x128xf32>
      tpu.vector_store %arg24[%c0_58, %c0_59], %85 {strides = array<i32>} : memref<16x128xf32, #tpu.memory_space<vmem>>, vector<16x128xf32>,
      %c0_60 = arith.constant 0 : index
      %c128_61 = arith.constant 128 : index
      %90 = vector.load %arg21[%c0_60, %c128_61] : memref<8x256xf32, #tpu.memory_space<vmem>>, vector<8x128xf32>
      tpu.vector_store %arg21[%c0_60, %c128_61], %55 {strides = array<i32>} : memref<8x256xf32, #tpu.memory_space<vmem>>, vector<8x128xf32>,
      %c0_62 = arith.constant 0 : index
      %c128_63 = arith.constant 128 : index
      %91 = vector.load %arg22[%c0_62, %c128_63] : memref<16x256xf32, #tpu.memory_space<vmem>>, vector<16x128xf32>
      tpu.vector_store %arg22[%c0_62, %c128_63], %87 {strides = array<i32>} : memref<16x256xf32, #tpu.memory_space<vmem>>, vector<16x128xf32>,
      %c0_64 = arith.constant 0 : index
      %c0_65 = arith.constant 0 : index
      %92 = vector.load %arg25[%c0_64, %c0_65] : memref<8x128xf32, #tpu.memory_space<vmem>>, vector<8x128xf32>
      %93 = arith.truncf %55 : vector<8x128xf32> to vector<8x128xbf16>
      %94 = arith.index_cast %23 : i32 to index
      %c0_66 = arith.constant 0 : index
      %c0_67 = arith.constant 0 : index
      %95 = vector.load %arg18[%94, %c0_66, %c0_67] : memref<20x128x128xbf16, #tpu.memory_space<vmem>>, vector<1x128x128xbf16>
      %96 = vector.shape_cast %95 : vector<1x128x128xbf16> to vector<128x128xbf16>
      %cst_68 = arith.constant dense<0.000000e+00> : vector<8x128xf32>
      %97 = tpu.matmul %93, %96, %cst_68 {dimension_numbers = #tpu.dot_dimension_numbers<[1], [0], [0], [1], [0, 0, 1, 1], [], []>} : vector<8x128xbf16>, vector<128x128xbf16>, vector<8x128xf32> -> vector<8x128xf32>
      %98 = arith.addf %92, %97 : vector<8x128xf32>
      %c0_69 = arith.constant 0 : index
      %c0_70 = arith.constant 0 : index
      %99 = vector.load %arg25[%c0_69, %c0_70] : memref<8x128xf32, #tpu.memory_space<vmem>>, vector<8x128xf32>
      tpu.vector_store %arg25[%c0_69, %c0_70], %98 {strides = array<i32>} : memref<8x128xf32, #tpu.memory_space<vmem>>, vector<8x128xf32>,
      %c0_71 = arith.constant 0 : index
      %c0_72 = arith.constant 0 : index
      %100 = vector.load %arg2[%c0_71, %c0_72] : memref<16x8xf32, #tpu.memory_space<vmem>>, vector<16x8xf32>
      %c0_73 = arith.constant 0 : index
      %c0_74 = arith.constant 0 : index
      %101 = vector.load %arg3[%c0_73, %c0_74] : memref<16x8xf32, #tpu.memory_space<vmem>>, vector<16x8xf32>
      %c0_75 = arith.constant 0 : index
      %c0_76 = arith.constant 0 : index
      %102 = vector.load %arg4[%c0_75, %c0_76] : memref<8x16xf32, #tpu.memory_space<vmem>>, vector<8x16xf32>
      %c0_77 = arith.constant 0 : index
      %c0_78 = arith.constant 0 : index
      %103 = vector.load %arg11[%c0_77, %c0_78] : memref<128x128xbf16, #tpu.memory_space<vmem>>, vector<128x128xbf16>
      %c0_79 = arith.constant 0 : index
      %c0_80 = arith.constant 0 : index
      %104 = vector.load %arg12[%c0_79, %c0_80] : memref<128x128xbf16, #tpu.memory_space<vmem>>, vector<128x128xbf16>
      %c0_81 = arith.constant 0 : index
      %c0_82 = arith.constant 0 : index
      %105 = vector.load %arg13[%c0_81, %c0_82] : memref<128x128xbf16, #tpu.memory_space<vmem>>, vector<128x128xbf16>
      %c0_83 = arith.constant 0 : index
      %c0_84 = arith.constant 0 : index
      %106 = vector.load %arg14[%c0_83, %c0_84] : memref<16x128xf32, #tpu.memory_space<vmem>>, vector<16x128xf32>
      %c0_85 = arith.constant 0 : index
      %c0_86 = arith.constant 0 : index
      %107 = vector.load %arg15[%c0_85, %c0_86] : memref<128x128xbf16, #tpu.memory_space<vmem>>, vector<128x128xbf16>
      %c0_87 = arith.constant 0 : index
      %c0_88 = arith.constant 0 : index
      %108 = vector.load %arg16[%c0_87, %c0_88] : memref<128x128xbf16, #tpu.memory_space<vmem>>, vector<128x128xbf16>
      %c0_89 = arith.constant 0 : index
      %c0_90 = arith.constant 0 : index
      %109 = vector.load %arg17[%c0_89, %c0_90] : memref<8x128xf32, #tpu.memory_space<vmem>>, vector<8x128xf32>
      %110 = arith.truncf %55 : vector<8x128xf32> to vector<8x128xbf16>
      %111 = arith.truncf %87 : vector<16x128xf32> to vector<16x128xbf16>
      %cst_91 = arith.constant dense<0.000000e+00> : vector<8x128xf32>
      %112 = tpu.matmul %110, %103, %cst_91 {dimension_numbers = #tpu.dot_dimension_numbers<[1], [0], [0], [1], [0, 0, 1, 1], [], []>} : vector<8x128xbf16>, vector<128x128xbf16>, vector<8x128xf32> -> vector<8x128xf32>
      %cst_92 = arith.constant dense<0.000000e+00> : vector<8x128xf32>
      %113 = tpu.matmul %110, %105, %cst_92 {dimension_numbers = #tpu.dot_dimension_numbers<[1], [0], [0], [1], [0, 0, 1, 1], [], []>} : vector<8x128xbf16>, vector<128x128xbf16>, vector<8x128xf32> -> vector<8x128xf32>
      %cst_93 = arith.constant dense<0.000000e+00> : vector<16x128xf32>
      %114 = tpu.matmul %100, %112, %cst_93 {dimension_numbers = #tpu.dot_dimension_numbers<[1], [0], [0], [1], [0, 0, 1, 1], [], []>} : vector<16x8xf32>, vector<8x128xf32>, vector<16x128xf32> -> vector<16x128xf32>
      %cst_94 = arith.constant dense<0.000000e+00> : vector<16x128xf32>
      %115 = tpu.matmul %101, %113, %cst_94 {dimension_numbers = #tpu.dot_dimension_numbers<[1], [0], [0], [1], [0, 0, 1, 1], [], []>} : vector<16x8xf32>, vector<8x128xf32>, vector<16x128xf32> -> vector<16x128xf32>
      %116 = arith.addf %114, %115 : vector<16x128xf32>
      %cst_95 = arith.constant dense<0.000000e+00> : vector<16x128xf32>
      %117 = tpu.matmul %111, %104, %cst_95 {dimension_numbers = #tpu.dot_dimension_numbers<[1], [0], [0], [1], [0, 0, 1, 1], [], []>} : vector<16x128xbf16>, vector<128x128xbf16>, vector<16x128xf32> -> vector<16x128xf32>
      %118 = arith.addf %116, %117 : vector<16x128xf32>
      %119 = arith.addf %118, %106 : vector<16x128xf32>
      %cst_96 = arith.constant 0.000000e+00 : f32
      %120 = vector.broadcast %cst_96 : f32 to vector<16x128xf32>
      %121 = arith.cmpf oge, %119, %120 : vector<16x128xf32>
      %cst_97 = arith.constant 0.00999999977 : f32
      %122 = vector.broadcast %cst_97 : f32 to vector<16x128xf32>
      %123 = arith.mulf %122, %119 : vector<16x128xf32>
      %124 = arith.select %121, %119, %123 : vector<16x128xi1>, vector<16x128xf32>
      %cst_98 = arith.constant dense<0.000000e+00> : vector<16x128xf32>
      %125 = tpu.matmul %111, %107, %cst_98 {dimension_numbers = #tpu.dot_dimension_numbers<[1], [0], [0], [1], [0, 0, 1, 1], [], []>} : vector<16x128xbf16>, vector<128x128xbf16>, vector<16x128xf32> -> vector<16x128xf32>
      %cst_99 = arith.constant dense<0.000000e+00> : vector<8x128xf32>
      %126 = tpu.matmul %102, %125, %cst_99 {dimension_numbers = #tpu.dot_dimension_numbers<[1], [0], [0], [1], [0, 0, 1, 1], [], []>} : vector<8x16xf32>, vector<16x128xf32>, vector<8x128xf32> -> vector<8x128xf32>
      %cst_100 = arith.constant dense<0.000000e+00> : vector<8x128xf32>
      %127 = tpu.matmul %110, %108, %cst_100 {dimension_numbers = #tpu.dot_dimension_numbers<[1], [0], [0], [1], [0, 0, 1, 1], [], []>} : vector<8x128xbf16>, vector<128x128xbf16>, vector<8x128xf32> -> vector<8x128xf32>
      %128 = arith.addf %126, %127 : vector<8x128xf32>
      %129 = arith.addf %128, %109 : vector<8x128xf32>
      %cst_101 = arith.constant 0.000000e+00 : f32
      %130 = vector.broadcast %cst_101 : f32 to vector<8x128xf32>
      %131 = arith.cmpf oge, %129, %130 : vector<8x128xf32>
      %cst_102 = arith.constant 0.00999999977 : f32
      %132 = vector.broadcast %cst_102 : f32 to vector<8x128xf32>
      %133 = arith.mulf %132, %129 : vector<8x128xf32>
      %134 = arith.select %131, %129, %133 : vector<8x128xi1>, vector<8x128xf32>
      %c0_103 = arith.constant 0 : index
      %c0_104 = arith.constant 0 : index
      %135 = vector.load %arg21[%c0_103, %c0_104] : memref<8x256xf32, #tpu.memory_space<vmem>>, vector<8x128xf32>
      tpu.vector_store %arg21[%c0_103, %c0_104], %134 {strides = array<i32>} : memref<8x256xf32, #tpu.memory_space<vmem>>, vector<8x128xf32>,
      %c0_105 = arith.constant 0 : index
      %c0_106 = arith.constant 0 : index
      %136 = vector.load %arg22[%c0_105, %c0_106] : memref<16x256xf32, #tpu.memory_space<vmem>>, vector<16x128xf32>
      tpu.vector_store %arg22[%c0_105, %c0_106], %124 {strides = array<i32>} : memref<16x256xf32, #tpu.memory_space<vmem>>, vector<16x128xf32>,
      %c2_i32_107 = arith.constant 2 : i32
      %137 = arith.muli %c2_i32_107, %arg26 : i32
      %c1_i32_108 = arith.constant 1 : i32
      %138 = arith.addi %137, %c1_i32_108 : i32
      %c0_109 = arith.constant 0 : index
      %c0_110 = arith.constant 0 : index
      %139 = vector.load %arg21[%c0_109, %c0_110] : memref<8x256xf32, #tpu.memory_space<vmem>>, vector<8x256xf32>
      %c0_111 = arith.constant 0 : index
      %c0_112 = arith.constant 0 : index
      %140 = vector.load %arg23[%c0_111, %c0_112] : memref<8x128xf32, #tpu.memory_space<vmem>>, vector<8x128xf32>
      %c0_113 = arith.constant 0 : index
      %c0_114 = arith.constant 0 : index
      %141 = vector.load %arg7[%c0_113, %c0_114] : memref<256x512xbf16, #tpu.memory_space<vmem>>, vector<256x512xbf16>
      %c0_115 = arith.constant 0 : index
      %c0_116 = arith.constant 0 : index
      %142 = vector.load %arg8[%c0_115, %c0_116] : memref<8x512xf32, #tpu.memory_space<vmem>>, vector<8x512xf32>
      %143 = arith.truncf %139 : vector<8x256xf32> to vector<8x256xbf16>
      %cst_117 = arith.constant dense<0.000000e+00> : vector<8x512xf32>
      %144 = tpu.matmul %143, %141, %cst_117 {dimension_numbers = #tpu.dot_dimension_numbers<[1], [0], [0], [1], [0, 0, 1, 1], [], []>} : vector<8x256xbf16>, vector<256x512xbf16>, vector<8x512xf32> -> vector<8x512xf32>
      %145 = arith.addf %144, %142 : vector<8x512xf32>
      %146 = vector.extract_strided_slice %145 {offsets = [0, 0], sizes = [8, 128], strides = [1, 1]} : vector<8x512xf32> to vector<8x128xf32>
      %147 = arith.negf %146 : vector<8x128xf32>
      %148 = math.exp %147 : vector<8x128xf32>
      %cst_118 = arith.constant 1.000000e+00 : f32
      %149 = vector.broadcast %cst_118 : f32 to vector<8x128xf32>
      %150 = arith.addf %149, %148 : vector<8x128xf32>
      %151 = arith.divf %149, %150 : vector<8x128xf32>
      %152 = vector.extract_strided_slice %145 {offsets = [0, 128], sizes = [8, 128], strides = [1, 1]} : vector<8x512xf32> to vector<8x128xf32>
      %153 = arith.negf %152 : vector<8x128xf32>
      %154 = math.exp %153 : vector<8x128xf32>
      %cst_119 = arith.constant 1.000000e+00 : f32
      %155 = vector.broadcast %cst_119 : f32 to vector<8x128xf32>
      %156 = arith.addf %155, %154 : vector<8x128xf32>
      %157 = arith.divf %155, %156 : vector<8x128xf32>
      %158 = vector.extract_strided_slice %145 {offsets = [0, 256], sizes = [8, 128], strides = [1, 1]} : vector<8x512xf32> to vector<8x128xf32>
      %159 = math.tanh %158 : vector<8x128xf32>
      %160 = vector.extract_strided_slice %145 {offsets = [0, 384], sizes = [8, 128], strides = [1, 1]} : vector<8x512xf32> to vector<8x128xf32>
      %161 = arith.negf %160 : vector<8x128xf32>
      %162 = math.exp %161 : vector<8x128xf32>
      %cst_120 = arith.constant 1.000000e+00 : f32
      %163 = vector.broadcast %cst_120 : f32 to vector<8x128xf32>
      %164 = arith.addf %163, %162 : vector<8x128xf32>
      %165 = arith.divf %163, %164 : vector<8x128xf32>
      %166 = arith.mulf %157, %140 : vector<8x128xf32>
      %167 = arith.mulf %151, %159 : vector<8x128xf32>
      %168 = arith.addf %166, %167 : vector<8x128xf32>
      %169 = math.tanh %168 : vector<8x128xf32>
      %170 = arith.mulf %165, %169 : vector<8x128xf32>
      %c0_121 = arith.constant 0 : index
      %c0_122 = arith.constant 0 : index
      %171 = vector.load %arg22[%c0_121, %c0_122] : memref<16x256xf32, #tpu.memory_space<vmem>>, vector<16x256xf32>
      %c0_123 = arith.constant 0 : index
      %c0_124 = arith.constant 0 : index
      %172 = vector.load %arg24[%c0_123, %c0_124] : memref<16x128xf32, #tpu.memory_space<vmem>>, vector<16x128xf32>
      %c0_125 = arith.constant 0 : index
      %c0_126 = arith.constant 0 : index
      %173 = vector.load %arg9[%c0_125, %c0_126] : memref<256x512xbf16, #tpu.memory_space<vmem>>, vector<256x512xbf16>
      %c0_127 = arith.constant 0 : index
      %c0_128 = arith.constant 0 : index
      %174 = vector.load %arg10[%c0_127, %c0_128] : memref<16x512xf32, #tpu.memory_space<vmem>>, vector<16x512xf32>
      %175 = arith.truncf %171 : vector<16x256xf32> to vector<16x256xbf16>
      %cst_129 = arith.constant dense<0.000000e+00> : vector<16x512xf32>
      %176 = tpu.matmul %175, %173, %cst_129 {dimension_numbers = #tpu.dot_dimension_numbers<[1], [0], [0], [1], [0, 0, 1, 1], [], []>} : vector<16x256xbf16>, vector<256x512xbf16>, vector<16x512xf32> -> vector<16x512xf32>
      %177 = arith.addf %176, %174 : vector<16x512xf32>
      %178 = vector.extract_strided_slice %177 {offsets = [0, 0], sizes = [16, 128], strides = [1, 1]} : vector<16x512xf32> to vector<16x128xf32>
      %179 = arith.negf %178 : vector<16x128xf32>
      %180 = math.exp %179 : vector<16x128xf32>
      %cst_130 = arith.constant 1.000000e+00 : f32
      %181 = vector.broadcast %cst_130 : f32 to vector<16x128xf32>
      %182 = arith.addf %181, %180 : vector<16x128xf32>
      %183 = arith.divf %181, %182 : vector<16x128xf32>
      %184 = vector.extract_strided_slice %177 {offsets = [0, 128], sizes = [16, 128], strides = [1, 1]} : vector<16x512xf32> to vector<16x128xf32>
      %185 = arith.negf %184 : vector<16x128xf32>
      %186 = math.exp %185 : vector<16x128xf32>
      %cst_131 = arith.constant 1.000000e+00 : f32
      %187 = vector.broadcast %cst_131 : f32 to vector<16x128xf32>
      %188 = arith.addf %187, %186 : vector<16x128xf32>
      %189 = arith.divf %187, %188 : vector<16x128xf32>
      %190 = vector.extract_strided_slice %177 {offsets = [0, 256], sizes = [16, 128], strides = [1, 1]} : vector<16x512xf32> to vector<16x128xf32>
      %191 = math.tanh %190 : vector<16x128xf32>
      %192 = vector.extract_strided_slice %177 {offsets = [0, 384], sizes = [16, 128], strides = [1, 1]} : vector<16x512xf32> to vector<16x128xf32>
      %193 = arith.negf %192 : vector<16x128xf32>
      %194 = math.exp %193 : vector<16x128xf32>
      %cst_132 = arith.constant 1.000000e+00 : f32
      %195 = vector.broadcast %cst_132 : f32 to vector<16x128xf32>
      %196 = arith.addf %195, %194 : vector<16x128xf32>
      %197 = arith.divf %195, %196 : vector<16x128xf32>
      %198 = arith.mulf %189, %172 : vector<16x128xf32>
      %199 = arith.mulf %183, %191 : vector<16x128xf32>
      %200 = arith.addf %198, %199 : vector<16x128xf32>
      %201 = math.tanh %200 : vector<16x128xf32>
      %202 = arith.mulf %197, %201 : vector<16x128xf32>
      %c0_133 = arith.constant 0 : index
      %c0_134 = arith.constant 0 : index
      %203 = vector.load %arg23[%c0_133, %c0_134] : memref<8x128xf32, #tpu.memory_space<vmem>>, vector<8x128xf32>
      tpu.vector_store %arg23[%c0_133, %c0_134], %168 {strides = array<i32>} : memref<8x128xf32, #tpu.memory_space<vmem>>, vector<8x128xf32>,
      %c0_135 = arith.constant 0 : index
      %c0_136 = arith.constant 0 : index
      %204 = vector.load %arg24[%c0_135, %c0_136] : memref<16x128xf32, #tpu.memory_space<vmem>>, vector<16x128xf32>
      tpu.vector_store %arg24[%c0_135, %c0_136], %200 {strides = array<i32>} : memref<16x128xf32, #tpu.memory_space<vmem>>, vector<16x128xf32>,
      %c0_137 = arith.constant 0 : index
      %c128_138 = arith.constant 128 : index
      %205 = vector.load %arg21[%c0_137, %c128_138] : memref<8x256xf32, #tpu.memory_space<vmem>>, vector<8x128xf32>
      tpu.vector_store %arg21[%c0_137, %c128_138], %170 {strides = array<i32>} : memref<8x256xf32, #tpu.memory_space<vmem>>, vector<8x128xf32>,
      %c0_139 = arith.constant 0 : index
      %c128_140 = arith.constant 128 : index
      %206 = vector.load %arg22[%c0_139, %c128_140] : memref<16x256xf32, #tpu.memory_space<vmem>>, vector<16x128xf32>
      tpu.vector_store %arg22[%c0_139, %c128_140], %202 {strides = array<i32>} : memref<16x256xf32, #tpu.memory_space<vmem>>, vector<16x128xf32>,
      %c0_141 = arith.constant 0 : index
      %c0_142 = arith.constant 0 : index
      %207 = vector.load %arg25[%c0_141, %c0_142] : memref<8x128xf32, #tpu.memory_space<vmem>>, vector<8x128xf32>
      %208 = arith.truncf %170 : vector<8x128xf32> to vector<8x128xbf16>
      %209 = arith.index_cast %138 : i32 to index
      %c0_143 = arith.constant 0 : index
      %c0_144 = arith.constant 0 : index
      %210 = vector.load %arg18[%209, %c0_143, %c0_144] : memref<20x128x128xbf16, #tpu.memory_space<vmem>>, vector<1x128x128xbf16>
      %211 = vector.shape_cast %210 : vector<1x128x128xbf16> to vector<128x128xbf16>
      %cst_145 = arith.constant dense<0.000000e+00> : vector<8x128xf32>
      %212 = tpu.matmul %208, %211, %cst_145 {dimension_numbers = #tpu.dot_dimension_numbers<[1], [0], [0], [1], [0, 0, 1, 1], [], []>} : vector<8x128xbf16>, vector<128x128xbf16>, vector<8x128xf32> -> vector<8x128xf32>
      %213 = arith.addf %207, %212 : vector<8x128xf32>
      %c0_146 = arith.constant 0 : index
      %c0_147 = arith.constant 0 : index
      %214 = vector.load %arg25[%c0_146, %c0_147] : memref<8x128xf32, #tpu.memory_space<vmem>>, vector<8x128xf32>
      tpu.vector_store %arg25[%c0_146, %c0_147], %213 {strides = array<i32>} : memref<8x128xf32, #tpu.memory_space<vmem>>, vector<8x128xf32>,
      %c0_148 = arith.constant 0 : index
      %c0_149 = arith.constant 0 : index
      %215 = vector.load %arg2[%c0_148, %c0_149] : memref<16x8xf32, #tpu.memory_space<vmem>>, vector<16x8xf32>
      %c0_150 = arith.constant 0 : index
      %c0_151 = arith.constant 0 : index
      %216 = vector.load %arg3[%c0_150, %c0_151] : memref<16x8xf32, #tpu.memory_space<vmem>>, vector<16x8xf32>
      %c0_152 = arith.constant 0 : index
      %c0_153 = arith.constant 0 : index
      %217 = vector.load %arg4[%c0_152, %c0_153] : memref<8x16xf32, #tpu.memory_space<vmem>>, vector<8x16xf32>
      %c0_154 = arith.constant 0 : index
      %c0_155 = arith.constant 0 : index
      %218 = vector.load %arg11[%c0_154, %c0_155] : memref<128x128xbf16, #tpu.memory_space<vmem>>, vector<128x128xbf16>
      %c0_156 = arith.constant 0 : index
      %c0_157 = arith.constant 0 : index
      %219 = vector.load %arg12[%c0_156, %c0_157] : memref<128x128xbf16, #tpu.memory_space<vmem>>, vector<128x128xbf16>
      %c0_158 = arith.constant 0 : index
      %c0_159 = arith.constant 0 : index
      %220 = vector.load %arg13[%c0_158, %c0_159] : memref<128x128xbf16, #tpu.memory_space<vmem>>, vector<128x128xbf16>
      %c0_160 = arith.constant 0 : index
      %c0_161 = arith.constant 0 : index
      %221 = vector.load %arg14[%c0_160, %c0_161] : memref<16x128xf32, #tpu.memory_space<vmem>>, vector<16x128xf32>
      %c0_162 = arith.constant 0 : index
      %c0_163 = arith.constant 0 : index
      %222 = vector.load %arg15[%c0_162, %c0_163] : memref<128x128xbf16, #tpu.memory_space<vmem>>, vector<128x128xbf16>
      %c0_164 = arith.constant 0 : index
      %c0_165 = arith.constant 0 : index
      %223 = vector.load %arg16[%c0_164, %c0_165] : memref<128x128xbf16, #tpu.memory_space<vmem>>, vector<128x128xbf16>
      %c0_166 = arith.constant 0 : index
      %c0_167 = arith.constant 0 : index
      %224 = vector.load %arg17[%c0_166, %c0_167] : memref<8x128xf32, #tpu.memory_space<vmem>>, vector<8x128xf32>
      %225 = arith.truncf %170 : vector<8x128xf32> to vector<8x128xbf16>
      %226 = arith.truncf %202 : vector<16x128xf32> to vector<16x128xbf16>
      %cst_168 = arith.constant dense<0.000000e+00> : vector<8x128xf32>
      %227 = tpu.matmul %225, %218, %cst_168 {dimension_numbers = #tpu.dot_dimension_numbers<[1], [0], [0], [1], [0, 0, 1, 1], [], []>} : vector<8x128xbf16>, vector<128x128xbf16>, vector<8x128xf32> -> vector<8x128xf32>
      %cst_169 = arith.constant dense<0.000000e+00> : vector<8x128xf32>
      %228 = tpu.matmul %225, %220, %cst_169 {dimension_numbers = #tpu.dot_dimension_numbers<[1], [0], [0], [1], [0, 0, 1, 1], [], []>} : vector<8x128xbf16>, vector<128x128xbf16>, vector<8x128xf32> -> vector<8x128xf32>
      %cst_170 = arith.constant dense<0.000000e+00> : vector<16x128xf32>
      %229 = tpu.matmul %215, %227, %cst_170 {dimension_numbers = #tpu.dot_dimension_numbers<[1], [0], [0], [1], [0, 0, 1, 1], [], []>} : vector<16x8xf32>, vector<8x128xf32>, vector<16x128xf32> -> vector<16x128xf32>
      %cst_171 = arith.constant dense<0.000000e+00> : vector<16x128xf32>
      %230 = tpu.matmul %216, %228, %cst_171 {dimension_numbers = #tpu.dot_dimension_numbers<[1], [0], [0], [1], [0, 0, 1, 1], [], []>} : vector<16x8xf32>, vector<8x128xf32>, vector<16x128xf32> -> vector<16x128xf32>
      %231 = arith.addf %229, %230 : vector<16x128xf32>
      %cst_172 = arith.constant dense<0.000000e+00> : vector<16x128xf32>
      %232 = tpu.matmul %226, %219, %cst_172 {dimension_numbers = #tpu.dot_dimension_numbers<[1], [0], [0], [1], [0, 0, 1, 1], [], []>} : vector<16x128xbf16>, vector<128x128xbf16>, vector<16x128xf32> -> vector<16x128xf32>
      %233 = arith.addf %231, %232 : vector<16x128xf32>
      %234 = arith.addf %233, %221 : vector<16x128xf32>
      %cst_173 = arith.constant 0.000000e+00 : f32
      %235 = vector.broadcast %cst_173 : f32 to vector<16x128xf32>
      %236 = arith.cmpf oge, %234, %235 : vector<16x128xf32>
      %cst_174 = arith.constant 0.00999999977 : f32
      %237 = vector.broadcast %cst_174 : f32 to vector<16x128xf32>
      %238 = arith.mulf %237, %234 : vector<16x128xf32>
      %239 = arith.select %236, %234, %238 : vector<16x128xi1>, vector<16x128xf32>
      %cst_175 = arith.constant dense<0.000000e+00> : vector<16x128xf32>
      %240 = tpu.matmul %226, %222, %cst_175 {dimension_numbers = #tpu.dot_dimension_numbers<[1], [0], [0], [1], [0, 0, 1, 1], [], []>} : vector<16x128xbf16>, vector<128x128xbf16>, vector<16x128xf32> -> vector<16x128xf32>
      %cst_176 = arith.constant dense<0.000000e+00> : vector<8x128xf32>
      %241 = tpu.matmul %217, %240, %cst_176 {dimension_numbers = #tpu.dot_dimension_numbers<[1], [0], [0], [1], [0, 0, 1, 1], [], []>} : vector<8x16xf32>, vector<16x128xf32>, vector<8x128xf32> -> vector<8x128xf32>
      %cst_177 = arith.constant dense<0.000000e+00> : vector<8x128xf32>
      %242 = tpu.matmul %225, %223, %cst_177 {dimension_numbers = #tpu.dot_dimension_numbers<[1], [0], [0], [1], [0, 0, 1, 1], [], []>} : vector<8x128xbf16>, vector<128x128xbf16>, vector<8x128xf32> -> vector<8x128xf32>
      %243 = arith.addf %241, %242 : vector<8x128xf32>
      %244 = arith.addf %243, %224 : vector<8x128xf32>
      %cst_178 = arith.constant 0.000000e+00 : f32
      %245 = vector.broadcast %cst_178 : f32 to vector<8x128xf32>
      %246 = arith.cmpf oge, %244, %245 : vector<8x128xf32>
      %cst_179 = arith.constant 0.00999999977 : f32
      %247 = vector.broadcast %cst_179 : f32 to vector<8x128xf32>
      %248 = arith.mulf %247, %244 : vector<8x128xf32>
      %249 = arith.select %246, %244, %248 : vector<8x128xi1>, vector<8x128xf32>
      %c0_180 = arith.constant 0 : index
      %c0_181 = arith.constant 0 : index
      %250 = vector.load %arg21[%c0_180, %c0_181] : memref<8x256xf32, #tpu.memory_space<vmem>>, vector<8x128xf32>
      tpu.vector_store %arg21[%c0_180, %c0_181], %249 {strides = array<i32>} : memref<8x256xf32, #tpu.memory_space<vmem>>, vector<8x128xf32>,
      %c0_182 = arith.constant 0 : index
      %c0_183 = arith.constant 0 : index
      %251 = vector.load %arg22[%c0_182, %c0_183] : memref<16x256xf32, #tpu.memory_space<vmem>>, vector<16x128xf32>
      tpu.vector_store %arg22[%c0_182, %c0_183], %239 {strides = array<i32>} : memref<16x256xf32, #tpu.memory_space<vmem>>, vector<16x128xf32>,
    }
    %c10_i32_25 = arith.constant 10 : i32
    %c0_26 = arith.constant 0 : index
    %c0_27 = arith.constant 0 : index
    %19 = vector.load %arg25[%c0_26, %c0_27] : memref<8x128xf32, #tpu.memory_space<vmem>>, vector<8x4xf32>
    %c0_28 = arith.constant 0 : index
    %c0_29 = arith.constant 0 : index
    %20 = vector.load %arg19[%c0_28, %c0_29] : memref<8x4xf32, #tpu.memory_space<vmem>>, vector<8x4xf32>
    %21 = arith.addf %19, %20 : vector<8x4xf32>
    %c0_30 = arith.constant 0 : index
    %c0_31 = arith.constant 0 : index
    %22 = vector.load %arg20[%c0_30, %c0_31] : memref<8x4xf32, #tpu.memory_space<vmem>>, vector<8x4xf32>
    tpu.vector_store %arg20[%c0_30, %c0_31], %21 {strides = array<i32>} : memref<8x4xf32, #tpu.memory_space<vmem>>, vector<8x4xf32>,
    return
  }
}

</mosaic_0001>

<llo_original>
// kernel: tpu_custom_call.1
$region0: #{tpu_custom_call.1}
  #allocation0 [shape = 'u32[]', space=smem, size = 0x4, offset = 0x4, fixed_abs, tag = 'smem constant byte address 0x4 - core index']
  #allocation1 [shape = 'u32[144,128]{1,0:T(1,128)}', space=vmem, size = 0x12000, scoped, tag = 'internal scratch']
  #allocation2 [shape = 'f32[8,256]{1,0:T(8,128)}', space=vmem, size = 0x2000, scoped, tag = 'scratch operand']
  #allocation3 [shape = 'f32[16,256]{1,0:T(8,128)}', space=vmem, size = 0x4000, scoped, tag = 'scratch operand']
  #allocation4 [shape = 'f32[8,128]{1,0:T(8,128)}', space=vmem, size = 0x1000, scoped, tag = 'scratch operand']
  #allocation5 [shape = 'f32[16,128]{1,0:T(8,128)}', space=vmem, size = 0x2000, scoped, tag = 'scratch operand']
  #allocation6 [shape = 'f32[8,128]{1,0:T(8,128)}', space=vmem, size = 0x1000, scoped, tag = 'scratch operand']
  %s0 = inlined_call_operand.hbm [shape: f32[8,128], index: 0, kind: input, shape index: {}]
  %s1 = inlined_call_operand.hbm [shape: f32[16,128], index: 1, kind: input, shape index: {}]
  %s2 = inlined_call_operand.vmem [shape: f32[16,8], index: 2, kind: input, shape index: {}]
  %s3 = inlined_call_operand.vmem [shape: f32[16,8], index: 3, kind: input, shape index: {}]
  %s4 = inlined_call_operand.hbm [shape: f32[8,16], index: 4, kind: input, shape index: {}]
  %s5 = inlined_call_operand.hbm [shape: f32[128,128], index: 5, kind: input, shape index: {}]
  %s6 = inlined_call_operand.hbm [shape: f32[16,128], index: 6, kind: input, shape index: {}]
  %s7 = inlined_call_operand.hbm [shape: bf16[256,512], index: 7, kind: input, shape index: {}]
  %s8 = inlined_call_operand.vmem [shape: f32[8,512], index: 8, kind: input, shape index: {}]
  %s9 = inlined_call_operand.hbm [shape: bf16[256,512], index: 9, kind: input, shape index: {}]
  %s10 = inlined_call_operand.vmem [shape: f32[16,512], index: 10, kind: input, shape index: {}]
  %s11 = inlined_call_operand.hbm [shape: bf16[128,128], index: 11, kind: input, shape index: {}]
  %s12 = inlined_call_operand.hbm [shape: bf16[128,128], index: 12, kind: input, shape index: {}]
  %s13 = inlined_call_operand.hbm [shape: bf16[128,128], index: 13, kind: input, shape index: {}]
  %s14 = inlined_call_operand.vmem [shape: f32[16,128], index: 14, kind: input, shape index: {}]
  %s15 = inlined_call_operand.hbm [shape: bf16[128,128], index: 15, kind: input, shape index: {}]
  %s16 = inlined_call_operand.hbm [shape: bf16[128,128], index: 16, kind: input, shape index: {}]
  %s17 = inlined_call_operand.vmem [shape: f32[8,128], index: 17, kind: input, shape index: {}]
  %s18 = inlined_call_operand.hbm [shape: bf16[20,128,128], index: 18, kind: input, shape index: {}]
  %s19 = inlined_call_operand.vmem [shape: f32[8,4], index: 19, kind: input, shape index: {}]
  %s20 = inlined_call_operand.vmem [shape: f32[8,4], index: 20, kind: output, shape index: {}]
  %s21 = sld [smem:[#allocation0]]
  $region149: #{tpu_custom_call.1} parent=0
    _
  %s23 = ssub.s32 1, %s21
  %s24 = scalar_select 0, %s23, %s21
  $region1: #{tpu_custom_call.1} parent=0
    #allocation7 [shape = 'u8[4096]{0}', space=vmem, size = 0x1000, scoped, tag = 'input window, operand 0, single buffered']
    #allocation8 [shape = 's32[1]{0}', space=sflag, size = 0x4, scoped, tag = 'scoped memory for tpu_custom_call.1']
    #allocation9 [shape = 'u8[8192]{0}', space=vmem, size = 0x2000, scoped, tag = 'input window, operand 1, single buffered']
    #allocation10 [shape = 's32[1]{0}', space=sflag, size = 0x4, scoped, tag = 'scoped memory for tpu_custom_call.1']
    #allocation11 [shape = 'u8[4096]{0}', space=vmem, size = 0x1000, scoped, tag = 'input window, operand 4, single buffered']
    #allocation12 [shape = 'u8[65536]{0}', space=vmem, size = 0x10000, scoped, tag = 'input window, operand 5, single buffered']
    #allocation13 [shape = 's32[1]{0}', space=sflag, size = 0x4, scoped, tag = 'scoped memory for tpu_custom_call.1']
    #allocation14 [shape = 'u8[8192]{0}', space=vmem, size = 0x2000, scoped, tag = 'input window, operand 6, single buffered']
    #allocation15 [shape = 'u8[262144]{0}', space=vmem, size = 0x40000, scoped, tag = 'input window, operand 7, single buffered']
    #allocation16 [shape = 's32[1]{0}', space=sflag, size = 0x4, scoped, tag = 'scoped memory for tpu_custom_call.1']
    #allocation17 [shape = 'u8[262144]{0}', space=vmem, size = 0x40000, scoped, tag = 'input window, operand 9, single buffered']
    #allocation18 [shape = 'u8[32768]{0}', space=vmem, size = 0x8000, scoped, tag = 'input window, operand 11, single buffered']
    #allocation19 [shape = 's32[1]{0}', space=sflag, size = 0x4, scoped, tag = 'scoped memory for tpu_custom_call.1']
    #allocation20 [shape = 'u8[32768]{0}', space=vmem, size = 0x8000, scoped, tag = 'input window, operand 12, single buffered']
    #allocation21 [shape = 'u8[32768]{0}', space=vmem, size = 0x8000, scoped, tag = 'input window, operand 13, single buffered']
    #allocation22 [shape = 's32[1]{0}', space=sflag, size = 0x4, scoped, tag = 'scoped memory for tpu_custom_call.1']
    #allocation23 [shape = 'u8[32768]{0}', space=vmem, size = 0x8000, scoped, tag = 'input window, operand 15, single buffered']
    #allocation24 [shape = 'u8[32768]{0}', space=vmem, size = 0x8000, scoped, tag = 'input window, operand 16, single buffered']
    #allocation25 [shape = 's32[1]{0}', space=sflag, size = 0x4, scoped, tag = 'scoped memory for tpu_custom_call.1']
    #allocation26 [shape = 'u8[655360]{0}', space=vmem, size = 0xa0000, scoped, tag = 'input window, operand 18, single buffered']
    %25 = vsyncpa [#allocation8], 0
    %26 = vsyncpa [#allocation10], 0
    %27 = vsyncpa [#allocation13], 0
    %28 = vsyncpa [#allocation16], 0
    %29 = vsyncpa [#allocation19], 0
    %30 = vsyncpa [#allocation22], 0
    %31 = vsyncpa [#allocation25], 0
    // Predicated region
    $region2: #{tpu_custom_call.1} parent=1 // pred_check
      _
    $region3: #{tpu_custom_call.1} parent=1 // pred_check_branch
      %33 = sbr.rel (0) target = $region5
    $region4: #{tpu_custom_call.1} parent=1 // pred_region
      %s35 = ssub.s32 128, 128
      %36 = vsyncadd [#allocation8], %s35
      %s38 = sshll.u32 [#allocation7], 4
      %s39 = int_to_ptr.vmem [resolvable:$true] %s38
      %41 = dma.hbm_to_vmem [thread:$0]  %s0, 128, %s39, [#allocation8]
    $region5: #{tpu_custom_call.1} parent=1 // pred_fallthru
      _
    // Predicated region
    $region6: #{tpu_custom_call.1} parent=1 // pred_check
      _
    $region7: #{tpu_custom_call.1} parent=1 // pred_check_branch
      %43 = sbr.rel (0) target = $region9
    $region8: #{tpu_custom_call.1} parent=1 // pred_region
      %s45 = ssub.s32 256, 256
      %46 = vsyncadd [#allocation10], %s45
      %s47 = sshll.u32 [#allocation9], 4
      %s48 = int_to_ptr.vmem [resolvable:$true] %s47
      %53 = dma.hbm_to_vmem [thread:$0]  %s1, 256, %s48, [#allocation10], 128, 128, 8
    $region9: #{tpu_custom_call.1} parent=1 // pred_fallthru
      _
    // Predicated region
    $region10: #{tpu_custom_call.1} parent=1 // pred_check
      _
    $region11: #{tpu_custom_call.1} parent=1 // pred_check_branch
      %55 = sbr.rel (0) target = $region13
    $region12: #{tpu_custom_call.1} parent=1 // pred_region
      _
    $region13: #{tpu_custom_call.1} parent=1 // pred_fallthru
      _
    // Predicated region
    $region14: #{tpu_custom_call.1} parent=1 // pred_check
      _
    $region15: #{tpu_custom_call.1} parent=1 // pred_check_branch
      %57 = sbr.rel (0) target = $region17
    $region16: #{tpu_custom_call.1} parent=1 // pred_region
      _
    $region17: #{tpu_custom_call.1} parent=1 // pred_fallthru
      _
    // Predicated region
    $region18: #{tpu_custom_call.1} parent=1 // pred_check
      _
    $region19: #{tpu_custom_call.1} parent=1 // pred_check_branch
      %59 = sbr.rel (0) target = $region21
    $region20: #{tpu_custom_call.1} parent=1 // pred_region
      %s61 = ssub.s32 128, 128
      %62 = vsyncadd [#allocation10], %s61
      %s64 = sshll.u32 [#allocation11], 4
      %s65 = int_to_ptr.vmem [resolvable:$true] %s64
      %67 = dma.hbm_to_vmem [thread:$0]  %s4, 128, %s65, [#allocation10]
    $region21: #{tpu_custom_call.1} parent=1 // pred_fallthru
      _
    // Predicated region
    $region22: #{tpu_custom_call.1} parent=1 // pred_check
      _
    $region23: #{tpu_custom_call.1} parent=1 // pred_check_branch
      %69 = sbr.rel (0) target = $region25
    $region24: #{tpu_custom_call.1} parent=1 // pred_region
      %s71 = ssub.s32 2048, 2048
      %72 = vsyncadd [#allocation13], %s71
      %s73 = sshll.u32 [#allocation12], 4
      %s74 = int_to_ptr.vmem [resolvable:$true] %s73
      %79 = dma.hbm_to_vmem [thread:$0]  %s5, 2048, %s74, [#allocation13], 128, 128, 8
    $region25: #{tpu_custom_call.1} parent=1 // pred_fallthru
      _
    // Predicated region
    $region26: #{tpu_custom_call.1} parent=1 // pred_check
      _
    $region27: #{tpu_custom_call.1} parent=1 // pred_check_branch
      %81 = sbr.rel (0) target = $region29
    $region28: #{tpu_custom_call.1} parent=1 // pred_region
      %s83 = ssub.s32 256, 256
      %84 = vsyncadd [#allocation13], %s83
      %s85 = sshll.u32 [#allocation14], 4
      %s86 = int_to_ptr.vmem [resolvable:$true] %s85
      %91 = dma.hbm_to_vmem [thread:$0]  %s6, 256, %s86, [#allocation13], 128, 128, 8
    $region29: #{tpu_custom_call.1} parent=1 // pred_fallthru
      _
    // Predicated region
    $region30: #{tpu_custom_call.1} parent=1 // pred_check
      _
    $region31: #{tpu_custom_call.1} parent=1 // pred_check_branch
      %93 = sbr.rel (0) target = $region33
    $region32: #{tpu_custom_call.1} parent=1 // pred_region
      %s95 = ssub.s32 8192, 8192
      %96 = vsyncadd [#allocation16], %s95
      %s97 = sshll.u32 [#allocation15], 4
      %s98 = int_to_ptr.vmem [resolvable:$true] %s97
      %103 = dma.hbm_to_vmem [thread:$0]  %s7, 8192, %s98, [#allocation16], 256, 256, 16
    $region33: #{tpu_custom_call.1} parent=1 // pred_fallthru
      _
    // Predicated region
    $region34: #{tpu_custom_call.1} parent=1 // pred_check
      _
    $region35: #{tpu_custom_call.1} parent=1 // pred_check_branch
      %105 = sbr.rel (0) target = $region37
    $region36: #{tpu_custom_call.1} parent=1 // pred_region
      _
    $region37: #{tpu_custom_call.1} parent=1 // pred_fallthru
      _
    // Predicated region
    $region38: #{tpu_custom_call.1} parent=1 // pred_check
      _
    $region39: #{tpu_custom_call.1} parent=1 // pred_check_branch
      %107 = sbr.rel (0) target = $region41
    $region40: #{tpu_custom_call.1} parent=1 // pred_region
      %s109 = ssub.s32 8192, 8192
      %110 = vsyncadd [#allocation16], %s109
      %s111 = sshll.u32 [#allocation17], 4
      %s112 = int_to_ptr.vmem [resolvable:$true] %s111
      %117 = dma.hbm_to_vmem [thread:$0]  %s9, 8192, %s112, [#allocation16], 256, 256, 16
    $region41: #{tpu_custom_call.1} parent=1 // pred_fallthru
      _
    // Predicated region
    $region42: #{tpu_custom_call.1} parent=1 // pred_check
      _
    $region43: #{tpu_custom_call.1} parent=1 // pred_check_branch
      %119 = sbr.rel (0) target = $region45
    $region44: #{tpu_custom_call.1} parent=1 // pred_region
      _
    $region45: #{tpu_custom_call.1} parent=1 // pred_fallthru
      _
    // Predicated region
    $region46: #{tpu_custom_call.1} parent=1 // pred_check
      _
    $region47: #{tpu_custom_call.1} parent=1 // pred_check_branch
      %121 = sbr.rel (0) target = $region49
    $region48: #{tpu_custom_call.1} parent=1 // pred_region
      %s123 = ssub.s32 1024, 1024
      %124 = vsyncadd [#allocation19], %s123
      %s125 = sshll.u32 [#allocation18], 4
      %s126 = int_to_ptr.vmem [resolvable:$true] %s125
      %131 = dma.hbm_to_vmem [thread:$0]  %s11, 1024, %s126, [#allocation19], 64, 64, 4
    $region49: #{tpu_custom_call.1} parent=1 // pred_fallthru
      _
    // Predicated region
    $region50: #{tpu_custom_call.1} parent=1 // pred_check
      _
    $region51: #{tpu_custom_call.1} parent=1 // pred_check_branch
      %133 = sbr.rel (0) target = $region53
    $region52: #{tpu_custom_call.1} parent=1 // pred_region
      %s135 = ssub.s32 1024, 1024
      %136 = vsyncadd [#allocation19], %s135
      %s137 = sshll.u32 [#allocation20], 4
      %s138 = int_to_ptr.vmem [resolvable:$true] %s137
      %143 = dma.hbm_to_vmem [thread:$0]  %s12, 1024, %s138, [#allocation19], 64, 64, 4
    $region53: #{tpu_custom_call.1} parent=1 // pred_fallthru
      _
    // Predicated region
    $region54: #{tpu_custom_call.1} parent=1 // pred_check
      _
    $region55: #{tpu_custom_call.1} parent=1 // pred_check_branch
      %145 = sbr.rel (0) target = $region57
    $region56: #{tpu_custom_call.1} parent=1 // pred_region
      %s147 = ssub.s32 1024, 1024
      %148 = vsyncadd [#allocation22], %s147
      %s149 = sshll.u32 [#allocation21], 4
      %s150 = int_to_ptr.vmem [resolvable:$true] %s149
      %155 = dma.hbm_to_vmem [thread:$0]  %s13, 1024, %s150, [#allocation22], 64, 64, 4
    $region57: #{tpu_custom_call.1} parent=1 // pred_fallthru
      _
    // Predicated region
    $region58: #{tpu_custom_call.1} parent=1 // pred_check
      _
    $region59: #{tpu_custom_call.1} parent=1 // pred_check_branch
      %157 = sbr.rel (0) target = $region61
    $region60: #{tpu_custom_call.1} parent=1 // pred_region
      _
    $region61: #{tpu_custom_call.1} parent=1 // pred_fallthru
      _
    // Predicated region
    $region62: #{tpu_custom_call.1} parent=1 // pred_check
      _
    $region63: #{tpu_custom_call.1} parent=1 // pred_check_branch
      %159 = sbr.rel (0) target = $region65
    $region64: #{tpu_custom_call.1} parent=1 // pred_region
      %s161 = ssub.s32 1024, 1024
      %162 = vsyncadd [#allocation22], %s161
      %s163 = sshll.u32 [#allocation23], 4
      %s164 = int_to_ptr.vmem [resolvable:$true] %s163
      %169 = dma.hbm_to_vmem [thread:$0]  %s15, 1024, %s164, [#allocation22], 64, 64, 4
    $region65: #{tpu_custom_call.1} parent=1 // pred_fallthru
      _
    // Predicated region
    $region66: #{tpu_custom_call.1} parent=1 // pred_check
      _
    $region67: #{tpu_custom_call.1} parent=1 // pred_check_branch
      %171 = sbr.rel (0) target = $region69
    $region68: #{tpu_custom_call.1} parent=1 // pred_region
      %s173 = ssub.s32 1024, 1024
      %174 = vsyncadd [#allocation25], %s173
      %s175 = sshll.u32 [#allocation24], 4
      %s176 = int_to_ptr.vmem [resolvable:$true] %s175
      %181 = dma.hbm_to_vmem [thread:$0]  %s16, 1024, %s176, [#allocation25], 64, 64, 4
    $region69: #{tpu_custom_call.1} parent=1 // pred_fallthru
      _
    // Predicated region
    $region70: #{tpu_custom_call.1} parent=1 // pred_check
      _
    $region71: #{tpu_custom_call.1} parent=1 // pred_check_branch
      %183 = sbr.rel (0) target = $region73
    $region72: #{tpu_custom_call.1} parent=1 // pred_region
      _
    $region73: #{tpu_custom_call.1} parent=1 // pred_fallthru
      _
    // Predicated region
    $region74: #{tpu_custom_call.1} parent=1 // pred_check
      _
    $region75: #{tpu_custom_call.1} parent=1 // pred_check_branch
      %185 = sbr.rel (0) target = $region77
    $region76: #{tpu_custom_call.1} parent=1 // pred_region
      %s187 = ssub.s32 20480, 20480
      %188 = vsyncadd [#allocation25], %s187
      %s189 = sshll.u32 [#allocation26], 4
      %s190 = int_to_ptr.vmem [resolvable:$true] %s189
      %195 = dma.hbm_to_vmem [thread:$0]  %s18, 20480, %s190, [#allocation25], 64, 64, 4
    $region77: #{tpu_custom_call.1} parent=1 // pred_fallthru
      _
    // Predicated region
    $region78: #{tpu_custom_call.1} parent=1 // pred_check
      _
    $region79: #{tpu_custom_call.1} parent=1 // pred_check_branch
      %197 = sbr.rel (0) target = $region81
    $region80: #{tpu_custom_call.1} parent=1 // pred_region
      _
    $region81: #{tpu_custom_call.1} parent=1 // pred_fallthru
      _
    // Predicated region
    $region82: #{tpu_custom_call.1} parent=1 // pred_check
      _
    $region83: #{tpu_custom_call.1} parent=1 // pred_check_branch
      %199 = sbr.rel (0) target = $region85
    $region84: #{tpu_custom_call.1} parent=1 // pred_region
      %200 = dma.done [#allocation8], 128
    $region85: #{tpu_custom_call.1} parent=1 // pred_fallthru
      _
    // Predicated region
    $region86: #{tpu_custom_call.1} parent=1 // pred_check
      _
    $region87: #{tpu_custom_call.1} parent=1 // pred_check_branch
      %202 = sbr.rel (0) target = $region89
    $region88: #{tpu_custom_call.1} parent=1 // pred_region
      %203 = dma.done [#allocation10], 256
    $region89: #{tpu_custom_call.1} parent=1 // pred_fallthru
      _
    // Predicated region
    $region90: #{tpu_custom_call.1} parent=1 // pred_check
      _
    $region91: #{tpu_custom_call.1} parent=1 // pred_check_branch
      %205 = sbr.rel (0) target = $region93
    $region92: #{tpu_custom_call.1} parent=1 // pred_region
      %206 = dma.done [#allocation10], 128
    $region93: #{tpu_custom_call.1} parent=1 // pred_fallthru
      _
    // Predicated region
    $region94: #{tpu_custom_call.1} parent=1 // pred_check
      _
    $region95: #{tpu_custom_call.1} parent=1 // pred_check_branch
      %208 = sbr.rel (0) target = $region97
    $region96: #{tpu_custom_call.1} parent=1 // pred_region
      %209 = dma.done [#allocation13], 2048
    $region97: #{tpu_custom_call.1} parent=1 // pred_fallthru
      _
    // Predicated region
    $region98: #{tpu_custom_call.1} parent=1 // pred_check
      _
    $region99: #{tpu_custom_call.1} parent=1 // pred_check_branch
      %211 = sbr.rel (0) target = $region101
    $region100: #{tpu_custom_call.1} parent=1 // pred_region
      %212 = dma.done [#allocation13], 256
    $region101: #{tpu_custom_call.1} parent=1 // pred_fallthru
      _
    // Predicated region
    $region102: #{tpu_custom_call.1} parent=1 // pred_check
      _
    $region103: #{tpu_custom_call.1} parent=1 // pred_check_branch
      %214 = sbr.rel (0) target = $region105
    $region104: #{tpu_custom_call.1} parent=1 // pred_region
      %215 = dma.done [#allocation16], 8192
    $region105: #{tpu_custom_call.1} parent=1 // pred_fallthru
      _
    // Predicated region
    $region106: #{tpu_custom_call.1} parent=1 // pred_check
      _
    $region107: #{tpu_custom_call.1} parent=1 // pred_check_branch
      %217 = sbr.rel (0) target = $region109
    $region108: #{tpu_custom_call.1} parent=1 // pred_region
      %218 = dma.done [#allocation16], 8192
    $region109: #{tpu_custom_call.1} parent=1 // pred_fallthru
      _
    // Predicated region
    $region110: #{tpu_custom_call.1} parent=1 // pred_check
      _
    $region111: #{tpu_custom_call.1} parent=1 // pred_check_branch
      %220 = sbr.rel (0) target = $region113
    $region112: #{tpu_custom_call.1} parent=1 // pred_region
      %221 = dma.done [#allocation19], 1024
    $region113: #{tpu_custom_call.1} parent=1 // pred_fallthru
      _
    // Predicated region
    $region114: #{tpu_custom_call.1} parent=1 // pred_check
      _
    $region115: #{tpu_custom_call.1} parent=1 // pred_check_branch
      %223 = sbr.rel (0) target = $region117
    $region116: #{tpu_custom_call.1} parent=1 // pred_region
      %224 = dma.done [#allocation19], 1024
    $region117: #{tpu_custom_call.1} parent=1 // pred_fallthru
      _
    // Predicated region
    $region118: #{tpu_custom_call.1} parent=1 // pred_check
      _
    $region119: #{tpu_custom_call.1} parent=1 // pred_check_branch
      %226 = sbr.rel (0) target = $region121
    $region120: #{tpu_custom_call.1} parent=1 // pred_region
      %227 = dma.done [#allocation22], 1024
    $region121: #{tpu_custom_call.1} parent=1 // pred_fallthru
      _
    // Predicated region
    $region122: #{tpu_custom_call.1} parent=1 // pred_check
      _
    $region123: #{tpu_custom_call.1} parent=1 // pred_check_branch
      %229 = sbr.rel (0) target = $region125
    $region124: #{tpu_custom_call.1} parent=1 // pred_region
      %230 = dma.done [#allocation22], 1024
    $region125: #{tpu_custom_call.1} parent=1 // pred_fallthru
      _
    // Predicated region
    $region126: #{tpu_custom_call.1} parent=1 // pred_check
      _
    $region127: #{tpu_custom_call.1} parent=1 // pred_check_branch
      %232 = sbr.rel (0) target = $region129
    $region128: #{tpu_custom_call.1} parent=1 // pred_region
      %233 = dma.done [#allocation25], 1024
    $region129: #{tpu_custom_call.1} parent=1 // pred_fallthru
      _
    // Predicated region
    $region130: #{tpu_custom_call.1} parent=1 // pred_check
      _
    $region131: #{tpu_custom_call.1} parent=1 // pred_check_branch
      %235 = sbr.rel (0) target = $region133
    $region132: #{tpu_custom_call.1} parent=1 // pred_region
      %236 = dma.done [#allocation25], 20480
    $region133: #{tpu_custom_call.1} parent=1 // pred_fallthru
      _
    %238 = vst [vmem:[#allocation4] sm:$0xff] 0.0
    %239 = vst [vmem:[#allocation5] sm:$0xff] 0.0
    %240 = vst [vmem:[#allocation5 + $0x8] sm:$0xff] 0.0
    %241 = vst [vmem:[#allocation6] sm:$0xff] 0.0
    %v242 = vld [vmem:[#allocation7] sm:$0xff]
    %243 = vst [vmem:[#allocation2] sm:$0xff] %v242
    %244 = vst [vmem:[#allocation2 + $0x8] sm:$0xff] 0.0
    %v245 = vld [vmem:[#allocation9] sm:$0xff]
    %v246 = vld [vmem:[#allocation9 + $0x8] sm:$0xff]
    %v247 = vld [vmem:[#allocation12] sm:$0xff]
    %v248 = vld [vmem:[#allocation12 + $0x8] sm:$0xff]
    %v249 = vld [vmem:[#allocation12 + $0x10] sm:$0xff]
    %v250 = vld [vmem:[#allocation12 + $0x18] sm:$0xff]
    %v251 = vld [vmem:[#allocation12 + $0x20] sm:$0xff]
    %v252 = vld [vmem:[#allocation12 + $0x28] sm:$0xff]
    %v253 = vld [vmem:[#allocation12 + $0x30] sm:$0xff]
    %v254 = vld [vmem:[#allocation12 + $0x38] sm:$0xff]
    %v255 = vld [vmem:[#allocation12 + $0x40] sm:$0xff]
    %v256 = vld [vmem:[#allocation12 + $0x48] sm:$0xff]
    %v257 = vld [vmem:[#allocation12 + $0x50] sm:$0xff]
    %v258 = vld [vmem:[#allocation12 + $0x58] sm:$0xff]
    %v259 = vld [vmem:[#allocation12 + $0x60] sm:$0xff]
    %v260 = vld [vmem:[#allocation12 + $0x68] sm:$0xff]
    %v261 = vld [vmem:[#allocation12 + $0x70] sm:$0xff]
    %v262 = vld [vmem:[#allocation12 + $0x78] sm:$0xff]
    %v263 = vld [vmem:[#allocation14] sm:$0xff]
    %v264 = vld [vmem:[#allocation14 + $0x8] sm:$0xff]
    %265 = vmatprep.subr.mxu0 0.0
    %266 = vmatpush1.msra.mxu0 %v247
    %267 = vmatprep.subr.mxu0 0.0
    %268 = vmatpush1.msra.mxu0 %v248
    %269 = vmatprep.subr.mxu0 0.0
    %270 = vmatpush1.msra.mxu0 %v249
    %271 = vmatprep.subr.mxu0 0.0
    %272 = vmatpush1.msra.mxu0 %v250
    %273 = vmatprep.subr.mxu0 0.0
    %274 = vmatpush1.msra.mxu0 %v251
    %275 = vmatprep.subr.mxu0 0.0
    %276 = vmatpush1.msra.mxu0 %v252
    %277 = vmatprep.subr.mxu0 0.0
    %278 = vmatpush1.msra.mxu0 %v253
    %279 = vmatprep.subr.mxu0 0.0
    %280 = vmatpush1.msra.mxu0 %v254
    %281 = vmatprep.subr.mxu0 0.0
    %282 = vmatpush1.msra.mxu0 %v255
    %283 = vmatprep.subr.mxu0 0.0
    %284 = vmatpush1.msra.mxu0 %v256
    %285 = vmatprep.subr.mxu0 0.0
    %286 = vmatpush1.msra.mxu0 %v257
    %287 = vmatprep.subr.mxu0 0.0
    %288 = vmatpush1.msra.mxu0 %v258
    %289 = vmatprep.subr.mxu0 0.0
    %290 = vmatpush1.msra.mxu0 %v259
    %291 = vmatprep.subr.mxu0 0.0
    %292 = vmatpush1.msra.mxu0 %v260
    %293 = vmatprep.subr.mxu0 0.0
    %294 = vmatpush1.msra.mxu0 %v261
    %295 = vmatprep.subr.mxu0 0.0
    %296 = vmatpush1.msra.mxu0 %v262
    %297 = vmatprep.subr.mxu0 0.0
    %298 = vmatpush1.msra.mxu0 0.0
    %299 = vmatprep.subr.mxu0 0.0
    %300 = vmatpush1.msra.mxu0 0.0
    %301 = vmatprep.subr.mxu0 0.0
    %302 = vmatpush1.msra.mxu0 0.0
    %303 = vmatprep.subr.mxu0 0.0
    %304 = vmatpush1.msra.mxu0 0.0
    %305 = vmatprep.subr.mxu0 0.0
    %306 = vmatpush1.msra.mxu0 0.0
    %307 = vmatprep.subr.mxu0 0.0
    %308 = vmatpush1.msra.mxu0 0.0
    %309 = vmatprep.subr.mxu0 0.0
    %310 = vmatpush1.msra.mxu0 0.0
    %311 = vmatprep.subr.mxu0 0.0
    %312 = vmatpush1.msra.mxu0 0.0
    %313 = vmatprep.subr.mxu0 0.0
    %314 = vmatpush1.msra.mxu0 0.0
    %315 = vmatprep.subr.mxu0 0.0
    %316 = vmatpush1.msra.mxu0 0.0
    %317 = vmatprep.subr.mxu0 0.0
    %318 = vmatpush1.msra.mxu0 0.0
    %319 = vmatprep.subr.mxu0 0.0
    %320 = vmatpush1.msra.mxu0 0.0
    %321 = vmatprep.subr.mxu0 0.0
    %322 = vmatpush1.msra.mxu0 0.0
    %323 = vmatprep.subr.mxu0 0.0
    %324 = vmatpush1.msra.mxu0 0.0
    %325 = vmatprep.subr.mxu0 0.0
    %326 = vmatpush1.msra.mxu0 0.0
    %327 = vmatprep.subr.mxu0 0.0
    %328 = vmatpush1.msra.mxu0 0.0
    %329 = vmatprep.mubr.f32.mxu0 0.0
    %330 = vmatmul.mubr.f32.gmra.mrb[0].mxu0 %v245
    %v331 = vpop.f32.mrb[0].mxu0
    %v332 = vadd.f32 %v263, %v331
    %v333 = vpop.f32.mrb[0].mxu0
    %334 = vmatprep.mubr.f32.mxu0 0.0
    %335 = vmatmul.mubr.f32.gmra.mrb[0].mxu0 %v246
    %v336 = vpop.f32.mrb[0].mxu0
    %v337 = vadd.f32 %v264, %v336
    %v338 = vpop.f32.mrb[0].mxu0
    %339 = vdwg.mxu0
    %340 = vst [vmem:[#allocation3] sm:$0xff] %v332
    %341 = vst [vmem:[#allocation3 + $0x10] sm:$0xff] %v337
    %342 = vst [vmem:[#allocation3 + $0x8] sm:$0xff] 0.0
    %343 = vst [vmem:[#allocation3 + $0x18] sm:$0xff] 0.0
    loop: start=0, step=1, limit=10
    $region134: #{tpu_custom_call.1} parent=1 // loop_pre_header
      _
    $region135: #{tpu_custom_call.1} parent=1 // loop_header
      %s345 = sphi 0, %s349
      %p346 = scmp.ge.s32.totalorder %s345, 10
    $region136: #{tpu_custom_call.1} parent=1 // loop_header_branch
      %348 = sbr.rel (%p346) target = $region140
    $region137: #{tpu_custom_call.1} parent=1 // loop_body
      %s350 = smul.u32 %s345, 2
      %v351 = vld [vmem:[#allocation2] sm:$0xff]
      %v352 = vld [vmem:[#allocation2 + $0x8] sm:$0xff]
      %v353 = vld [vmem:[#allocation4] sm:$0xff]
      %v354 = vld [vmem:[#allocation15] sm:$0xff]
      %v355 = vld [vmem:[#allocation15 + $0x8] sm:$0xff]
      %v356 = vld [vmem:[#allocation15 + $0x10] sm:$0xff]
      %v357 = vld [vmem:[#allocation15 + $0x18] sm:$0xff]
      %v358 = vld [vmem:[#allocation15 + $0x20] sm:$0xff]
      %v359 = vld [vmem:[#allocation15 + $0x28] sm:$0xff]
      %v360 = vld [vmem:[#allocation15 + $0x30] sm:$0xff]
      %v361 = vld [vmem:[#allocation15 + $0x38] sm:$0xff]
      %v362 = vld [vmem:[#allocation15 + $0x40] sm:$0xff]
      %v363 = vld [vmem:[#allocation15 + $0x48] sm:$0xff]
      %v364 = vld [vmem:[#allocation15 + $0x50] sm:$0xff]
      %v365 = vld [vmem:[#allocation15 + $0x58] sm:$0xff]
      %v366 = vld [vmem:[#allocation15 + $0x60] sm:$0xff]
      %v367 = vld [vmem:[#allocation15 + $0x68] sm:$0xff]
      %v368 = vld [vmem:[#allocation15 + $0x70] sm:$0xff]
      %v369 = vld [vmem:[#allocation15 + $0x78] sm:$0xff]
      %v370 = vld [vmem:[#allocation15 + $0x80] sm:$0xff]
      %v371 = vld [vmem:[#allocation15 + $0x88] sm:$0xff]
      %v372 = vld [vmem:[#allocation15 + $0x90] sm:$0xff]
      %v373 = vld [vmem:[#allocation15 + $0x98] sm:$0xff]
      %v374 = vld [vmem:[#allocation15 + $0xa0] sm:$0xff]
      %v375 = vld [vmem:[#allocation15 + $0xa8] sm:$0xff]
      %v376 = vld [vmem:[#allocation15 + $0xb0] sm:$0xff]
      %v377 = vld [vmem:[#allocation15 + $0xb8] sm:$0xff]
      %v378 = vld [vmem:[#allocation15 + $0xc0] sm:$0xff]
      %v379 = vld [vmem:[#allocation15 + $0xc8] sm:$0xff]
      %v380 = vld [vmem:[#allocation15 + $0xd0] sm:$0xff]
      %v381 = vld [vmem:[#allocation15 + $0xd8] sm:$0xff]
      %v382 = vld [vmem:[#allocation15 + $0xe0] sm:$0xff]
      %v383 = vld [vmem:[#allocation15 + $0xe8] sm:$0xff]
      %v384 = vld [vmem:[#allocation15 + $0xf0] sm:$0xff]
      %v385 = vld [vmem:[#allocation15 + $0xf8] sm:$0xff]
      %v386 = vld [vmem:[#allocation15 + $0x100] sm:$0xff]
      %v387 = vld [vmem:[#allocation15 + $0x108] sm:$0xff]
      %v388 = vld [vmem:[#allocation15 + $0x110] sm:$0xff]
      %v389 = vld [vmem:[#allocation15 + $0x118] sm:$0xff]
      %v390 = vld [vmem:[#allocation15 + $0x120] sm:$0xff]
      %v391 = vld [vmem:[#allocation15 + $0x128] sm:$0xff]
      %v392 = vld [vmem:[#allocation15 + $0x130] sm:$0xff]
      %v393 = vld [vmem:[#allocation15 + $0x138] sm:$0xff]
      %v394 = vld [vmem:[#allocation15 + $0x140] sm:$0xff]
      %v395 = vld [vmem:[#allocation15 + $0x148] sm:$0xff]
      %v396 = vld [vmem:[#allocation15 + $0x150] sm:$0xff]
      %v397 = vld [vmem:[#allocation15 + $0x158] sm:$0xff]
      %v398 = vld [vmem:[#allocation15 + $0x160] sm:$0xff]
      %v399 = vld [vmem:[#allocation15 + $0x168] sm:$0xff]
      %v400 = vld [vmem:[#allocation15 + $0x170] sm:$0xff]
      %v401 = vld [vmem:[#allocation15 + $0x178] sm:$0xff]
      %v402 = vld [vmem:[#allocation15 + $0x180] sm:$0xff]
      %v403 = vld [vmem:[#allocation15 + $0x188] sm:$0xff]
      %v404 = vld [vmem:[#allocation15 + $0x190] sm:$0xff]
      %v405 = vld [vmem:[#allocation15 + $0x198] sm:$0xff]
      %v406 = vld [vmem:[#allocation15 + $0x1a0] sm:$0xff]
      %v407 = vld [vmem:[#allocation15 + $0x1a8] sm:$0xff]
      %v408 = vld [vmem:[#allocation15 + $0x1b0] sm:$0xff]
      %v409 = vld [vmem:[#allocation15 + $0x1b8] sm:$0xff]
      %v410 = vld [vmem:[#allocation15 + $0x1c0] sm:$0xff]
      %v411 = vld [vmem:[#allocation15 + $0x1c8] sm:$0xff]
      %v412 = vld [vmem:[#allocation15 + $0x1d0] sm:$0xff]
      %v413 = vld [vmem:[#allocation15 + $0x1d8] sm:$0xff]
      %v414 = vld [vmem:[#allocation15 + $0x1e0] sm:$0xff]
      %v415 = vld [vmem:[#allocation15 + $0x1e8] sm:$0xff]
      %v416 = vld [vmem:[#allocation15 + $0x1f0] sm:$0xff]
      %v417 = vld [vmem:[#allocation15 + $0x1f8] sm:$0xff]
      %v418 = vld [vmem:[%s8] sm:$0xff]
      %v419 = vld [vmem:[%s8 + $0x8] sm:$0xff]
      %v420 = vld [vmem:[%s8 + $0x10] sm:$0xff]
      %v421 = vld [vmem:[%s8 + $0x18] sm:$0xff]
      %v422 = vpack.c.bf16 %v351, %v351
      %v423 = vpack.c.bf16 %v352, %v352
      %v488 = vunpack.c.l.b16 %v354
      %v489 = vunpack.c.h.b16 %v354
      %v490 = vunpack.c.l.b16 %v355
      %v491 = vunpack.c.h.b16 %v355
      %v492 = vunpack.c.l.b16 %v356
      %v493 = vunpack.c.h.b16 %v356
      %v494 = vunpack.c.l.b16 %v357
      %v495 = vunpack.c.h.b16 %v357
      %v496 = vunpack.c.l.b16 %v358
      %v497 = vunpack.c.h.b16 %v358
      %v498 = vunpack.c.l.b16 %v359
      %v499 = vunpack.c.h.b16 %v359
      %v500 = vunpack.c.l.b16 %v360
      %v501 = vunpack.c.h.b16 %v360
      %v502 = vunpack.c.l.b16 %v361
      %v503 = vunpack.c.h.b16 %v361
      %v504 = vunpack.c.l.b16 %v362
      %v505 = vunpack.c.h.b16 %v362
      %v506 = vunpack.c.l.b16 %v363
      %v507 = vunpack.c.h.b16 %v363
      %v508 = vunpack.c.l.b16 %v364
      %v509 = vunpack.c.h.b16 %v364
      %v510 = vunpack.c.l.b16 %v365
      %v511 = vunpack.c.h.b16 %v365
      %v512 = vunpack.c.l.b16 %v366
      %v513 = vunpack.c.h.b16 %v366
      %v514 = vunpack.c.l.b16 %v367
      %v515 = vunpack.c.h.b16 %v367
      %v516 = vunpack.c.l.b16 %v368
      %v517 = vunpack.c.h.b16 %v368
      %v518 = vunpack.c.l.b16 %v369
      %v519 = vunpack.c.h.b16 %v369
      %v520 = vunpack.c.l.b16 %v370
      %v521 = vunpack.c.h.b16 %v370
      %v522 = vunpack.c.l.b16 %v371
      %v523 = vunpack.c.h.b16 %v371
      %v524 = vunpack.c.l.b16 %v372
      %v525 = vunpack.c.h.b16 %v372
      %v526 = vunpack.c.l.b16 %v373
      %v527 = vunpack.c.h.b16 %v373
      %v528 = vunpack.c.l.b16 %v374
      %v529 = vunpack.c.h.b16 %v374
      %v530 = vunpack.c.l.b16 %v375
      %v531 = vunpack.c.h.b16 %v375
      %v532 = vunpack.c.l.b16 %v376
      %v533 = vunpack.c.h.b16 %v376
      %v534 = vunpack.c.l.b16 %v377
      %v535 = vunpack.c.h.b16 %v377
      %v536 = vunpack.c.l.b16 %v378
      %v537 = vunpack.c.h.b16 %v378
      %v538 = vunpack.c.l.b16 %v379
      %v539 = vunpack.c.h.b16 %v379
      %v540 = vunpack.c.l.b16 %v380
      %v541 = vunpack.c.h.b16 %v380
      %v542 = vunpack.c.l.b16 %v381
      %v543 = vunpack.c.h.b16 %v381
      %v544 = vunpack.c.l.b16 %v382
      %v545 = vunpack.c.h.b16 %v382
      %v546 = vunpack.c.l.b16 %v383
      %v547 = vunpack.c.h.b16 %v383
      %v548 = vunpack.c.l.b16 %v384
      %v549 = vunpack.c.h.b16 %v384
      %v550 = vunpack.c.l.b16 %v385
      %v551 = vunpack.c.h.b16 %v385
      %v552 = vunpack.c.l.b16 %v386
      %v553 = vunpack.c.h.b16 %v386
      %v554 = vunpack.c.l.b16 %v387
      %v555 = vunpack.c.h.b16 %v387
      %v556 = vunpack.c.l.b16 %v388
      %v557 = vunpack.c.h.b16 %v388
      %v558 = vunpack.c.l.b16 %v389
      %v559 = vunpack.c.h.b16 %v389
      %v560 = vunpack.c.l.b16 %v390
      %v561 = vunpack.c.h.b16 %v390
      %v562 = vunpack.c.l.b16 %v391
      %v563 = vunpack.c.h.b16 %v391
      %v564 = vunpack.c.l.b16 %v392
      %v565 = vunpack.c.h.b16 %v392
      %v566 = vunpack.c.l.b16 %v393
      %v567 = vunpack.c.h.b16 %v393
      %v568 = vunpack.c.l.b16 %v394
      %v569 = vunpack.c.h.b16 %v394
      %v570 = vunpack.c.l.b16 %v395
      %v571 = vunpack.c.h.b16 %v395
      %v572 = vunpack.c.l.b16 %v396
      %v573 = vunpack.c.h.b16 %v396
      %v574 = vunpack.c.l.b16 %v397
      %v575 = vunpack.c.h.b16 %v397
      %v576 = vunpack.c.l.b16 %v398
      %v577 = vunpack.c.h.b16 %v398
      %v578 = vunpack.c.l.b16 %v399
      %v579 = vunpack.c.h.b16 %v399
      %v580 = vunpack.c.l.b16 %v400
      %v581 = vunpack.c.h.b16 %v400
      %v582 = vunpack.c.l.b16 %v401
      %v583 = vunpack.c.h.b16 %v401
      %v584 = vunpack.c.l.b16 %v402
      %v585 = vunpack.c.h.b16 %v402
      %v586 = vunpack.c.l.b16 %v403
      %v587 = vunpack.c.h.b16 %v403
      %v588 = vunpack.c.l.b16 %v404
      %v589 = vunpack.c.h.b16 %v404
      %v590 = vunpack.c.l.b16 %v405
      %v591 = vunpack.c.h.b16 %v405
      %v592 = vunpack.c.l.b16 %v406
      %v593 = vunpack.c.h.b16 %v406
      %v594 = vunpack.c.l.b16 %v407
      %v595 = vunpack.c.h.b16 %v407
      %v596 = vunpack.c.l.b16 %v408
      %v597 = vunpack.c.h.b16 %v408
      %v598 = vunpack.c.l.b16 %v409
      %v599 = vunpack.c.h.b16 %v409
      %v600 = vunpack.c.l.b16 %v410
      %v601 = vunpack.c.h.b16 %v410
      %v602 = vunpack.c.l.b16 %v411
      %v603 = vunpack.c.h.b16 %v411
      %v604 = vunpack.c.l.b16 %v412
      %v605 = vunpack.c.h.b16 %v412
      %v606 = vunpack.c.l.b16 %v413
      %v607 = vunpack.c.h.b16 %v413
      %v608 = vunpack.c.l.b16 %v414
      %v609 = vunpack.c.h.b16 %v414
      %v610 = vunpack.c.l.b16 %v415
      %v611 = vunpack.c.h.b16 %v415
      %v612 = vunpack.c.l.b16 %v416
      %v613 = vunpack.c.h.b16 %v416
      %v614 = vunpack.c.l.b16 %v417
      %v615 = vunpack.c.h.b16 %v417
      %v616 = vpack.c.b16 %v492, %v488
      %v617 = vpack.c.b16 %v493, %v489
      %v618 = vpack.c.b16 %v494, %v490
      %v619 = vpack.c.b16 %v495, %v491
      %v620 = vpack.c.b16 %v500, %v496
      %v621 = vpack.c.b16 %v501, %v497
      %v622 = vpack.c.b16 %v502, %v498
      %v623 = vpack.c.b16 %v503, %v499
      %v624 = vpack.c.b16 %v508, %v504
      %v625 = vpack.c.b16 %v509, %v505
      %v626 = vpack.c.b16 %v510, %v506
      %v627 = vpack.c.b16 %v511, %v507
      %v628 = vpack.c.b16 %v516, %v512
      %v629 = vpack.c.b16 %v517, %v513
      %v630 = vpack.c.b16 %v518, %v514
      %v631 = vpack.c.b16 %v519, %v515
      %v632 = vpack.c.b16 %v524, %v520
      %v633 = vpack.c.b16 %v525, %v521
      %v634 = vpack.c.b16 %v526, %v522
      %v635 = vpack.c.b16 %v527, %v523
      %v636 = vpack.c.b16 %v532, %v528
      %v637 = vpack.c.b16 %v533, %v529
      %v638 = vpack.c.b16 %v534, %v530
      %v639 = vpack.c.b16 %v535, %v531
      %v640 = vpack.c.b16 %v540, %v536
      %v641 = vpack.c.b16 %v541, %v537
      %v642 = vpack.c.b16 %v542, %v538
      %v643 = vpack.c.b16 %v543, %v539
      %v644 = vpack.c.b16 %v548, %v544
      %v645 = vpack.c.b16 %v549, %v545
      %v646 = vpack.c.b16 %v550, %v546
      %v647 = vpack.c.b16 %v551, %v547
      %v648 = vpack.c.b16 %v556, %v552
      %v649 = vpack.c.b16 %v557, %v553
      %v650 = vpack.c.b16 %v558, %v554
      %v651 = vpack.c.b16 %v559, %v555
      %v652 = vpack.c.b16 %v564, %v560
      %v653 = vpack.c.b16 %v565, %v561
      %v654 = vpack.c.b16 %v566, %v562
      %v655 = vpack.c.b16 %v567, %v563
      %v656 = vpack.c.b16 %v572, %v568
      %v657 = vpack.c.b16 %v573, %v569
      %v658 = vpack.c.b16 %v574, %v570
      %v659 = vpack.c.b16 %v575, %v571
      %v660 = vpack.c.b16 %v580, %v576
      %v661 = vpack.c.b16 %v581, %v577
      %v662 = vpack.c.b16 %v582, %v578
      %v663 = vpack.c.b16 %v583, %v579
      %v664 = vpack.c.b16 %v588, %v584
      %v665 = vpack.c.b16 %v589, %v585
      %v666 = vpack.c.b16 %v590, %v586
      %v667 = vpack.c.b16 %v591, %v587
      %v668 = vpack.c.b16 %v596, %v592
      %v669 = vpack.c.b16 %v597, %v593
      %v670 = vpack.c.b16 %v598, %v594
      %v671 = vpack.c.b16 %v599, %v595
      %v672 = vpack.c.b16 %v604, %v600
      %v673 = vpack.c.b16 %v605, %v601
      %v674 = vpack.c.b16 %v606, %v602
      %v675 = vpack.c.b16 %v607, %v603
      %v676 = vpack.c.b16 %v612, %v608
      %v677 = vpack.c.b16 %v613, %v609
      %v678 = vpack.c.b16 %v614, %v610
      %v679 = vpack.c.b16 %v615, %v611
      %744 = vmatprep.subr.bf16.mxu0 %v617
      %745 = vmatpush1.bf16.msra.mxu0 %v616
      %746 = vmatprep.subr.bf16.mxu0 %v621
      %747 = vmatpush1.bf16.msra.mxu0 %v620
      %748 = vmatprep.subr.bf16.mxu0 %v625
      %749 = vmatpush1.bf16.msra.mxu0 %v624
      %750 = vmatprep.subr.bf16.mxu0 %v629
      %751 = vmatpush1.bf16.msra.mxu0 %v628
      %752 = vmatprep.subr.bf16.mxu0 %v633
      %753 = vmatpush1.bf16.msra.mxu0 %v632
      %754 = vmatprep.subr.bf16.mxu0 %v637
      %755 = vmatpush1.bf16.msra.mxu0 %v636
      %756 = vmatprep.subr.bf16.mxu0 %v641
      %757 = vmatpush1.bf16.msra.mxu0 %v640
      %758 = vmatprep.subr.bf16.mxu0 %v645
      %759 = vmatpush1.bf16.msra.mxu0 %v644
      %760 = vmatprep.subr.bf16.mxu0 %v649
      %761 = vmatpush1.bf16.msra.mxu0 %v648
      %762 = vmatprep.subr.bf16.mxu0 %v653
      %763 = vmatpush1.bf16.msra.mxu0 %v652
      %764 = vmatprep.subr.bf16.mxu0 %v657
      %765 = vmatpush1.bf16.msra.mxu0 %v656
      %766 = vmatprep.subr.bf16.mxu0 %v661
      %767 = vmatpush1.bf16.msra.mxu0 %v660
      %768 = vmatprep.subr.bf16.mxu0 %v665
      %769 = vmatpush1.bf16.msra.mxu0 %v664
      %770 = vmatprep.subr.bf16.mxu0 %v669
      %771 = vmatpush1.bf16.msra.mxu0 %v668
      %772 = vmatprep.subr.bf16.mxu0 %v673
      %773 = vmatpush1.bf16.msra.mxu0 %v672
      %774 = vmatprep.subr.bf16.mxu0 %v677
      %775 = vmatpush1.bf16.msra.mxu0 %v676
      %776 = vmatprep.mubr.bf16.mxu0 %v423
      %777 = vmatmul.mubr.bf16.gmra.mrb[0].mxu0 %v422
      %v778 = vpop.f32.mrb[0].mxu0
      %v779 = vadd.f32 %v418, %v778
      %v780 = vpop.f32.mrb[0].mxu0
      %v781 = vadd.f32 %v419, %v780
      %v782 = vpop.f32.mrb[0].mxu0
      %v783 = vpop.f32.mrb[0].mxu0
      %784 = vdwg.mxu0
      %785 = vmatprep.subr.bf16.mxu0 %v619
      %786 = vmatpush1.bf16.msra.mxu0 %v618
      %787 = vmatprep.subr.bf16.mxu0 %v623
      %788 = vmatpush1.bf16.msra.mxu0 %v622
      %789 = vmatprep.subr.bf16.mxu0 %v627
      %790 = vmatpush1.bf16.msra.mxu0 %v626
      %791 = vmatprep.subr.bf16.mxu0 %v631
      %792 = vmatpush1.bf16.msra.mxu0 %v630
      %793 = vmatprep.subr.bf16.mxu0 %v635
      %794 = vmatpush1.bf16.msra.mxu0 %v634
      %795 = vmatprep.subr.bf16.mxu0 %v639
      %796 = vmatpush1.bf16.msra.mxu0 %v638
      %797 = vmatprep.subr.bf16.mxu0 %v643
      %798 = vmatpush1.bf16.msra.mxu0 %v642
      %799 = vmatprep.subr.bf16.mxu0 %v647
      %800 = vmatpush1.bf16.msra.mxu0 %v646
      %801 = vmatprep.subr.bf16.mxu0 %v651
      %802 = vmatpush1.bf16.msra.mxu0 %v650
      %803 = vmatprep.subr.bf16.mxu0 %v655
      %804 = vmatpush1.bf16.msra.mxu0 %v654
      %805 = vmatprep.subr.bf16.mxu0 %v659
      %806 = vmatpush1.bf16.msra.mxu0 %v658
      %807 = vmatprep.subr.bf16.mxu0 %v663
      %808 = vmatpush1.bf16.msra.mxu0 %v662
      %809 = vmatprep.subr.bf16.mxu0 %v667
      %810 = vmatpush1.bf16.msra.mxu0 %v666
      %811 = vmatprep.subr.bf16.mxu0 %v671
      %812 = vmatpush1.bf16.msra.mxu0 %v670
      %813 = vmatprep.subr.bf16.mxu0 %v675
      %814 = vmatpush1.bf16.msra.mxu0 %v674
      %815 = vmatprep.subr.bf16.mxu0 %v679
      %816 = vmatpush1.bf16.msra.mxu0 %v678
      %817 = vmatprep.mubr.bf16.mxu0 %v423
      %818 = vmatmul.mubr.bf16.gmra.mrb[0].mxu0 %v422
      %v819 = vpop.f32.mrb[0].mxu0
      %v820 = vadd.f32 %v420, %v819
      %v821 = vpop.f32.mrb[0].mxu0
      %v822 = vadd.f32 %v421, %v821
      %v823 = vpop.f32.mrb[0].mxu0
      %v824 = vpop.f32.mrb[0].mxu0
      %825 = vdwg.mxu0
      %v826 = vxor.u32 %v779, 2147483648
      %v827 = vmul.f32 %v826, 1.442695
      %v828 = vpow.pop %v827
      %v829 = vadd.f32 %v828, 1.0
      %v830 = vrcp.pop %v829
      %v831 = vmul.f32 1.0, %v830
      %v832 = vxor.u32 %v781, 2147483648
      %v833 = vmul.f32 %v832, 1.442695
      %v834 = vpow.pop %v833
      %v835 = vadd.f32 %v834, 1.0
      %v836 = vrcp.pop %v835
      %v837 = vmul.f32 1.0, %v836
      %v838 = vtanh.pop %v820
      %v839 = vxor.u32 %v822, 2147483648
      %v840 = vmul.f32 %v839, 1.442695
      %v841 = vpow.pop %v840
      %v842 = vadd.f32 %v841, 1.0
      %v843 = vrcp.pop %v842
      %v844 = vmul.f32 1.0, %v843
      %v845 = vmul.f32 %v837, %v353
      %v846 = vmul.f32 %v831, %v838
      %v847 = vadd.f32 %v845, %v846
      %v848 = vtanh.pop %v847
      %v849 = vmul.f32 %v844, %v848
      %v850 = vld [vmem:[#allocation3] sm:$0xff]
      %v851 = vld [vmem:[#allocation3 + $0x8] sm:$0xff]
      %v852 = vld [vmem:[#allocation3 + $0x10] sm:$0xff]
      %v853 = vld [vmem:[#allocation3 + $0x18] sm:$0xff]
      %v854 = vld [vmem:[#allocation5] sm:$0xff]
      %v855 = vld [vmem:[#allocation5 + $0x8] sm:$0xff]
      %v856 = vld [vmem:[#allocation17] sm:$0xff]
      %v857 = vld [vmem:[#allocation17 + $0x8] sm:$0xff]
      %v858 = vld [vmem:[#allocation17 + $0x10] sm:$0xff]
      %v859 = vld [vmem:[#allocation17 + $0x18] sm:$0xff]
      %v860 = vld [vmem:[#allocation17 + $0x20] sm:$0xff]
      %v861 = vld [vmem:[#allocation17 + $0x28] sm:$0xff]
      %v862 = vld [vmem:[#allocation17 + $0x30] sm:$0xff]
      %v863 = vld [vmem:[#allocation17 + $0x38] sm:$0xff]
      %v864 = vld [vmem:[#allocation17 + $0x40] sm:$0xff]
      %v865 = vld [vmem:[#allocation17 + $0x48] sm:$0xff]
      %v866 = vld [vmem:[#allocation17 + $0x50] sm:$0xff]
      %v867 = vld [vmem:[#allocation17 + $0x58] sm:$0xff]
      %v868 = vld [vmem:[#allocation17 + $0x60] sm:$0xff]
      %v869 = vld [vmem:[#allocation17 + $0x68] sm:$0xff]
      %v870 = vld [vmem:[#allocation17 + $0x70] sm:$0xff]
      %v871 = vld [vmem:[#allocation17 + $0x78] sm:$0xff]
      %v872 = vld [vmem:[#allocation17 + $0x80] sm:$0xff]
      %v873 = vld [vmem:[#allocation17 + $0x88] sm:$0xff]
      %v874 = vld [vmem:[#allocation17 + $0x90] sm:$0xff]
      %v875 = vld [vmem:[#allocation17 + $0x98] sm:$0xff]
      %v876 = vld [vmem:[#allocation17 + $0xa0] sm:$0xff]
      %v877 = vld [vmem:[#allocation17 + $0xa8] sm:$0xff]
      %v878 = vld [vmem:[#allocation17 + $0xb0] sm:$0xff]
      %v879 = vld [vmem:[#allocation17 + $0xb8] sm:$0xff]
      %v880 = vld [vmem:[#allocation17 + $0xc0] sm:$0xff]
      %v881 = vld [vmem:[#allocation17 + $0xc8] sm:$0xff]
      %v882 = vld [vmem:[#allocation17 + $0xd0] sm:$0xff]
      %v883 = vld [vmem:[#allocation17 + $0xd8] sm:$0xff]
      %v884 = vld [vmem:[#allocation17 + $0xe0] sm:$0xff]
      %v885 = vld [vmem:[#allocation17 + $0xe8] sm:$0xff]
      %v886 = vld [vmem:[#allocation17 + $0xf0] sm:$0xff]
      %v887 = vld [vmem:[#allocation17 + $0xf8] sm:$0xff]
      %v888 = vld [vmem:[#allocation17 + $0x100] sm:$0xff]
      %v889 = vld [vmem:[#allocation17 + $0x108] sm:$0xff]
      %v890 = vld [vmem:[#allocation17 + $0x110] sm:$0xff]
      %v891 = vld [vmem:[#allocation17 + $0x118] sm:$0xff]
      %v892 = vld [vmem:[#allocation17 + $0x120] sm:$0xff]
      %v893 = vld [vmem:[#allocation17 + $0x128] sm:$0xff]
      %v894 = vld [vmem:[#allocation17 + $0x130] sm:$0xff]
      %v895 = vld [vmem:[#allocation17 + $0x138] sm:$0xff]
      %v896 = vld [vmem:[#allocation17 + $0x140] sm:$0xff]
      %v897 = vld [vmem:[#allocation17 + $0x148] sm:$0xff]
      %v898 = vld [vmem:[#allocation17 + $0x150] sm:$0xff]
      %v899 = vld [vmem:[#allocation17 + $0x158] sm:$0xff]
      %v900 = vld [vmem:[#allocation17 + $0x160] sm:$0xff]
      %v901 = vld [vmem:[#allocation17 + $0x168] sm:$0xff]
      %v902 = vld [vmem:[#allocation17 + $0x170] sm:$0xff]
      %v903 = vld [vmem:[#allocation17 + $0x178] sm:$0xff]
      %v904 = vld [vmem:[#allocation17 + $0x180] sm:$0xff]
      %v905 = vld [vmem:[#allocation17 + $0x188] sm:$0xff]
      %v906 = vld [vmem:[#allocation17 + $0x190] sm:$0xff]
      %v907 = vld [vmem:[#allocation17 + $0x198] sm:$0xff]
      %v908 = vld [vmem:[#allocation17 + $0x1a0] sm:$0xff]
      %v909 = vld [vmem:[#allocation17 + $0x1a8] sm:$0xff]
      %v910 = vld [vmem:[#allocation17 + $0x1b0] sm:$0xff]
      %v911 = vld [vmem:[#allocation17 + $0x1b8] sm:$0xff]
      %v912 = vld [vmem:[#allocation17 + $0x1c0] sm:$0xff]
      %v913 = vld [vmem:[#allocation17 + $0x1c8] sm:$0xff]
      %v914 = vld [vmem:[#allocation17 + $0x1d0] sm:$0xff]
      %v915 = vld [vmem:[#allocation17 + $0x1d8] sm:$0xff]
      %v916 = vld [vmem:[#allocation17 + $0x1e0] sm:$0xff]
      %v917 = vld [vmem:[#allocation17 + $0x1e8] sm:$0xff]
      %v918 = vld [vmem:[#allocation17 + $0x1f0] sm:$0xff]
      %v919 = vld [vmem:[#allocation17 + $0x1f8] sm:$0xff]
      %v920 = vld [vmem:[%s10] sm:$0xff]
      %v921 = vld [vmem:[%s10 + $0x8] sm:$0xff]
      %v922 = vld [vmem:[%s10 + $0x10] sm:$0xff]
      %v923 = vld [vmem:[%s10 + $0x18] sm:$0xff]
      %v924 = vld [vmem:[%s10 + $0x20] sm:$0xff]
      %v925 = vld [vmem:[%s10 + $0x28] sm:$0xff]
      %v926 = vld [vmem:[%s10 + $0x30] sm:$0xff]
      %v927 = vld [vmem:[%s10 + $0x38] sm:$0xff]
      %v928 = vpack.c.bf16 %v852, %v850
      %v929 = vpack.c.bf16 %v853, %v851
      %v994 = vunpack.c.l.b16 %v856
      %v995 = vunpack.c.h.b16 %v856
      %v996 = vunpack.c.l.b16 %v857
      %v997 = vunpack.c.h.b16 %v857
      %v998 = vunpack.c.l.b16 %v858
      %v999 = vunpack.c.h.b16 %v858
      %v1000 = vunpack.c.l.b16 %v859
      %v1001 = vunpack.c.h.b16 %v859
      %v1002 = vunpack.c.l.b16 %v860
      %v1003 = vunpack.c.h.b16 %v860
      %v1004 = vunpack.c.l.b16 %v861
      %v1005 = vunpack.c.h.b16 %v861
      %v1006 = vunpack.c.l.b16 %v862
      %v1007 = vunpack.c.h.b16 %v862
      %v1008 = vunpack.c.l.b16 %v863
      %v1009 = vunpack.c.h.b16 %v863
      %v1010 = vunpack.c.l.b16 %v864
      %v1011 = vunpack.c.h.b16 %v864
      %v1012 = vunpack.c.l.b16 %v865
      %v1013 = vunpack.c.h.b16 %v865
      %v1014 = vunpack.c.l.b16 %v866
      %v1015 = vunpack.c.h.b16 %v866
      %v1016 = vunpack.c.l.b16 %v867
      %v1017 = vunpack.c.h.b16 %v867
      %v1018 = vunpack.c.l.b16 %v868
      %v1019 = vunpack.c.h.b16 %v868
      %v1020 = vunpack.c.l.b16 %v869
      %v1021 = vunpack.c.h.b16 %v869
      %v1022 = vunpack.c.l.b16 %v870
      %v1023 = vunpack.c.h.b16 %v870
      %v1024 = vunpack.c.l.b16 %v871
      %v1025 = vunpack.c.h.b16 %v871
      %v1026 = vunpack.c.l.b16 %v872
      %v1027 = vunpack.c.h.b16 %v872
      %v1028 = vunpack.c.l.b16 %v873
      %v1029 = vunpack.c.h.b16 %v873
      %v1030 = vunpack.c.l.b16 %v874
      %v1031 = vunpack.c.h.b16 %v874
      %v1032 = vunpack.c.l.b16 %v875
      %v1033 = vunpack.c.h.b16 %v875
      %v1034 = vunpack.c.l.b16 %v876
      %v1035 = vunpack.c.h.b16 %v876
      %v1036 = vunpack.c.l.b16 %v877
      %v1037 = vunpack.c.h.b16 %v877
      %v1038 = vunpack.c.l.b16 %v878
      %v1039 = vunpack.c.h.b16 %v878
      %v1040 = vunpack.c.l.b16 %v879
      %v1041 = vunpack.c.h.b16 %v879
      %v1042 = vunpack.c.l.b16 %v880
      %v1043 = vunpack.c.h.b16 %v880
      %v1044 = vunpack.c.l.b16 %v881
      %v1045 = vunpack.c.h.b16 %v881
      %v1046 = vunpack.c.l.b16 %v882
      %v1047 = vunpack.c.h.b16 %v882
      %v1048 = vunpack.c.l.b16 %v883
      %v1049 = vunpack.c.h.b16 %v883
      %v1050 = vunpack.c.l.b16 %v884
      %v1051 = vunpack.c.h.b16 %v884
      %v1052 = vunpack.c.l.b16 %v885
      %v1053 = vunpack.c.h.b16 %v885
      %v1054 = vunpack.c.l.b16 %v886
      %v1055 = vunpack.c.h.b16 %v886
      %v1056 = vunpack.c.l.b16 %v887
      %v1057 = vunpack.c.h.b16 %v887
      %v1058 = vunpack.c.l.b16 %v888
      %v1059 = vunpack.c.h.b16 %v888
      %v1060 = vunpack.c.l.b16 %v889
      %v1061 = vunpack.c.h.b16 %v889
      %v1062 = vunpack.c.l.b16 %v890
      %v1063 = vunpack.c.h.b16 %v890
      %v1064 = vunpack.c.l.b16 %v891
      %v1065 = vunpack.c.h.b16 %v891
      %v1066 = vunpack.c.l.b16 %v892
      %v1067 = vunpack.c.h.b16 %v892
      %v1068 = vunpack.c.l.b16 %v893
      %v1069 = vunpack.c.h.b16 %v893
      %v1070 = vunpack.c.l.b16 %v894
      %v1071 = vunpack.c.h.b16 %v894
      %v1072 = vunpack.c.l.b16 %v895
      %v1073 = vunpack.c.h.b16 %v895
      %v1074 = vunpack.c.l.b16 %v896
      %v1075 = vunpack.c.h.b16 %v896
      %v1076 = vunpack.c.l.b16 %v897
      %v1077 = vunpack.c.h.b16 %v897
      %v1078 = vunpack.c.l.b16 %v898
      %v1079 = vunpack.c.h.b16 %v898
      %v1080 = vunpack.c.l.b16 %v899
      %v1081 = vunpack.c.h.b16 %v899
      %v1082 = vunpack.c.l.b16 %v900
      %v1083 = vunpack.c.h.b16 %v900
      %v1084 = vunpack.c.l.b16 %v901
      %v1085 = vunpack.c.h.b16 %v901
      %v1086 = vunpack.c.l.b16 %v902
      %v1087 = vunpack.c.h.b16 %v902
      %v1088 = vunpack.c.l.b16 %v903
      %v1089 = vunpack.c.h.b16 %v903
      %v1090 = vunpack.c.l.b16 %v904
      %v1091 = vunpack.c.h.b16 %v904
      %v1092 = vunpack.c.l.b16 %v905
      %v1093 = vunpack.c.h.b16 %v905
      %v1094 = vunpack.c.l.b16 %v906
      %v1095 = vunpack.c.h.b16 %v906
      %v1096 = vunpack.c.l.b16 %v907
      %v1097 = vunpack.c.h.b16 %v907
      %v1098 = vunpack.c.l.b16 %v908
      %v1099 = vunpack.c.h.b16 %v908
      %v1100 = vunpack.c.l.b16 %v909
      %v1101 = vunpack.c.h.b16 %v909
      %v1102 = vunpack.c.l.b16 %v910
      %v1103 = vunpack.c.h.b16 %v910
      %v1104 = vunpack.c.l.b16 %v911
      %v1105 = vunpack.c.h.b16 %v911
      %v1106 = vunpack.c.l.b16 %v912
      %v1107 = vunpack.c.h.b16 %v912
      %v1108 = vunpack.c.l.b16 %v913
      %v1109 = vunpack.c.h.b16 %v913
      %v1110 = vunpack.c.l.b16 %v914
      %v1111 = vunpack.c.h.b16 %v914
      %v1112 = vunpack.c.l.b16 %v915
      %v1113 = vunpack.c.h.b16 %v915
      %v1114 = vunpack.c.l.b16 %v916
      %v1115 = vunpack.c.h.b16 %v916
      %v1116 = vunpack.c.l.b16 %v917
      %v1117 = vunpack.c.h.b16 %v917
      %v1118 = vunpack.c.l.b16 %v918
      %v1119 = vunpack.c.h.b16 %v918
      %v1120 = vunpack.c.l.b16 %v919
      %v1121 = vunpack.c.h.b16 %v919
      %v1122 = vpack.c.b16 %v998, %v994
      %v1123 = vpack.c.b16 %v999, %v995
      %v1124 = vpack.c.b16 %v1000, %v996
      %v1125 = vpack.c.b16 %v1001, %v997
      %v1126 = vpack.c.b16 %v1006, %v1002
      %v1127 = vpack.c.b16 %v1007, %v1003
      %v1128 = vpack.c.b16 %v1008, %v1004
      %v1129 = vpack.c.b16 %v1009, %v1005
      %v1130 = vpack.c.b16 %v1014, %v1010
      %v1131 = vpack.c.b16 %v1015, %v1011
      %v1132 = vpack.c.b16 %v1016, %v1012
      %v1133 = vpack.c.b16 %v1017, %v1013
      %v1134 = vpack.c.b16 %v1022, %v1018
      %v1135 = vpack.c.b16 %v1023, %v1019
      %v1136 = vpack.c.b16 %v1024, %v1020
      %v1137 = vpack.c.b16 %v1025, %v1021
      %v1138 = vpack.c.b16 %v1030, %v1026
      %v1139 = vpack.c.b16 %v1031, %v1027
      %v1140 = vpack.c.b16 %v1032, %v1028
      %v1141 = vpack.c.b16 %v1033, %v1029
      %v1142 = vpack.c.b16 %v1038, %v1034
      %v1143 = vpack.c.b16 %v1039, %v1035
      %v1144 = vpack.c.b16 %v1040, %v1036
      %v1145 = vpack.c.b16 %v1041, %v1037
      %v1146 = vpack.c.b16 %v1046, %v1042
      %v1147 = vpack.c.b16 %v1047, %v1043
      %v1148 = vpack.c.b16 %v1048, %v1044
      %v1149 = vpack.c.b16 %v1049, %v1045
      %v1150 = vpack.c.b16 %v1054, %v1050
      %v1151 = vpack.c.b16 %v1055, %v1051
      %v1152 = vpack.c.b16 %v1056, %v1052
      %v1153 = vpack.c.b16 %v1057, %v1053
      %v1154 = vpack.c.b16 %v1062, %v1058
      %v1155 = vpack.c.b16 %v1063, %v1059
      %v1156 = vpack.c.b16 %v1064, %v1060
      %v1157 = vpack.c.b16 %v1065, %v1061
      %v1158 = vpack.c.b16 %v1070, %v1066
      %v1159 = vpack.c.b16 %v1071, %v1067
      %v1160 = vpack.c.b16 %v1072, %v1068
      %v1161 = vpack.c.b16 %v1073, %v1069
      %v1162 = vpack.c.b16 %v1078, %v1074
      %v1163 = vpack.c.b16 %v1079, %v1075
      %v1164 = vpack.c.b16 %v1080, %v1076
      %v1165 = vpack.c.b16 %v1081, %v1077
      %v1166 = vpack.c.b16 %v1086, %v1082
      %v1167 = vpack.c.b16 %v1087, %v1083
      %v1168 = vpack.c.b16 %v1088, %v1084
      %v1169 = vpack.c.b16 %v1089, %v1085
      %v1170 = vpack.c.b16 %v1094, %v1090
      %v1171 = vpack.c.b16 %v1095, %v1091
      %v1172 = vpack.c.b16 %v1096, %v1092
      %v1173 = vpack.c.b16 %v1097, %v1093
      %v1174 = vpack.c.b16 %v1102, %v1098
      %v1175 = vpack.c.b16 %v1103, %v1099
      %v1176 = vpack.c.b16 %v1104, %v1100
      %v1177 = vpack.c.b16 %v1105, %v1101
      %v1178 = vpack.c.b16 %v1110, %v1106
      %v1179 = vpack.c.b16 %v1111, %v1107
      %v1180 = vpack.c.b16 %v1112, %v1108
      %v1181 = vpack.c.b16 %v1113, %v1109
      %v1182 = vpack.c.b16 %v1118, %v1114
      %v1183 = vpack.c.b16 %v1119, %v1115
      %v1184 = vpack.c.b16 %v1120, %v1116
      %v1185 = vpack.c.b16 %v1121, %v1117
      %1250 = vmatprep.subr.bf16.mxu0 %v1123
      %1251 = vmatpush1.bf16.msra.mxu0 %v1122
      %1252 = vmatprep.subr.bf16.mxu0 %v1127
      %1253 = vmatpush1.bf16.msra.mxu0 %v1126
      %1254 = vmatprep.subr.bf16.mxu0 %v1131
      %1255 = vmatpush1.bf16.msra.mxu0 %v1130
      %1256 = vmatprep.subr.bf16.mxu0 %v1135
      %1257 = vmatpush1.bf16.msra.mxu0 %v1134
      %1258 = vmatprep.subr.bf16.mxu0 %v1139
      %1259 = vmatpush1.bf16.msra.mxu0 %v1138
      %1260 = vmatprep.subr.bf16.mxu0 %v1143
      %1261 = vmatpush1.bf16.msra.mxu0 %v1142
      %1262 = vmatprep.subr.bf16.mxu0 %v1147
      %1263 = vmatpush1.bf16.msra.mxu0 %v1146
      %1264 = vmatprep.subr.bf16.mxu0 %v1151
      %1265 = vmatpush1.bf16.msra.mxu0 %v1150
      %1266 = vmatprep.subr.bf16.mxu0 %v1155
      %1267 = vmatpush1.bf16.msra.mxu0 %v1154
      %1268 = vmatprep.subr.bf16.mxu0 %v1159
      %1269 = vmatpush1.bf16.msra.mxu0 %v1158
      %1270 = vmatprep.subr.bf16.mxu0 %v1163
      %1271 = vmatpush1.bf16.msra.mxu0 %v1162
      %1272 = vmatprep.subr.bf16.mxu0 %v1167
      %1273 = vmatpush1.bf16.msra.mxu0 %v1166
      %1274 = vmatprep.subr.bf16.mxu0 %v1171
      %1275 = vmatpush1.bf16.msra.mxu0 %v1170
      %1276 = vmatprep.subr.bf16.mxu0 %v1175
      %1277 = vmatpush1.bf16.msra.mxu0 %v1174
      %1278 = vmatprep.subr.bf16.mxu0 %v1179
      %1279 = vmatpush1.bf16.msra.mxu0 %v1178
      %1280 = vmatprep.subr.bf16.mxu0 %v1183
      %1281 = vmatpush1.bf16.msra.mxu0 %v1182
      %1282 = vmatprep.mubr.bf16.mxu0 %v929
      %1283 = vmatmul.mubr.bf16.gmra.mrb[0].mxu0 %v928
      %v1284 = vpop.f32.mrb[0].mxu0
      %v1285 = vadd.f32 %v920, %v1284
      %v1286 = vpop.f32.mrb[0].mxu0
      %v1287 = vadd.f32 %v921, %v1286
      %v1288 = vpop.f32.mrb[0].mxu0
      %v1289 = vadd.f32 %v924, %v1288
      %v1290 = vpop.f32.mrb[0].mxu0
      %v1291 = vadd.f32 %v925, %v1290
      %1292 = vdwg.mxu0
      %1293 = vmatprep.subr.bf16.mxu0 %v1125
      %1294 = vmatpush1.bf16.msra.mxu0 %v1124
      %1295 = vmatprep.subr.bf16.mxu0 %v1129
      %1296 = vmatpush1.bf16.msra.mxu0 %v1128
      %1297 = vmatprep.subr.bf16.mxu0 %v1133
      %1298 = vmatpush1.bf16.msra.mxu0 %v1132
      %1299 = vmatprep.subr.bf16.mxu0 %v1137
      %1300 = vmatpush1.bf16.msra.mxu0 %v1136
      %1301 = vmatprep.subr.bf16.mxu0 %v1141
      %1302 = vmatpush1.bf16.msra.mxu0 %v1140
      %1303 = vmatprep.subr.bf16.mxu0 %v1145
      %1304 = vmatpush1.bf16.msra.mxu0 %v1144
      %1305 = vmatprep.subr.bf16.mxu0 %v1149
      %1306 = vmatpush1.bf16.msra.mxu0 %v1148
      %1307 = vmatprep.subr.bf16.mxu0 %v1153
      %1308 = vmatpush1.bf16.msra.mxu0 %v1152
      %1309 = vmatprep.subr.bf16.mxu0 %v1157
      %1310 = vmatpush1.bf16.msra.mxu0 %v1156
      %1311 = vmatprep.subr.bf16.mxu0 %v1161
      %1312 = vmatpush1.bf16.msra.mxu0 %v1160
      %1313 = vmatprep.subr.bf16.mxu0 %v1165
      %1314 = vmatpush1.bf16.msra.mxu0 %v1164
      %1315 = vmatprep.subr.bf16.mxu0 %v1169
      %1316 = vmatpush1.bf16.msra.mxu0 %v1168
      %1317 = vmatprep.subr.bf16.mxu0 %v1173
      %1318 = vmatpush1.bf16.msra.mxu0 %v1172
      %1319 = vmatprep.subr.bf16.mxu0 %v1177
      %1320 = vmatpush1.bf16.msra.mxu0 %v1176
      %1321 = vmatprep.subr.bf16.mxu0 %v1181
      %1322 = vmatpush1.bf16.msra.mxu0 %v1180
      %1323 = vmatprep.subr.bf16.mxu0 %v1185
      %1324 = vmatpush1.bf16.msra.mxu0 %v1184
      %1325 = vmatprep.mubr.bf16.mxu0 %v929
      %1326 = vmatmul.mubr.bf16.gmra.mrb[0].mxu0 %v928
      %v1327 = vpop.f32.mrb[0].mxu0
      %v1328 = vadd.f32 %v922, %v1327
      %v1329 = vpop.f32.mrb[0].mxu0
      %v1330 = vadd.f32 %v923, %v1329
      %v1331 = vpop.f32.mrb[0].mxu0
      %v1332 = vadd.f32 %v926, %v1331
      %v1333 = vpop.f32.mrb[0].mxu0
      %v1334 = vadd.f32 %v927, %v1333
      %1335 = vdwg.mxu0
      %v1336 = vxor.u32 %v1285, 2147483648
      %v1337 = vxor.u32 %v1289, 2147483648
      %v1338 = vmul.f32 %v1336, 1.442695
      %v1339 = vpow.pop %v1338
      %v1340 = vmul.f32 %v1337, 1.442695
      %v1341 = vpow.pop %v1340
      %v1342 = vadd.f32 %v1339, 1.0
      %v1343 = vadd.f32 %v1341, 1.0
      %v1344 = vrcp.pop %v1342
      %v1345 = vmul.f32 1.0, %v1344
      %v1346 = vrcp.pop %v1343
      %v1347 = vmul.f32 1.0, %v1346
      %v1348 = vxor.u32 %v1287, 2147483648
      %v1349 = vxor.u32 %v1291, 2147483648
      %v1350 = vmul.f32 %v1348, 1.442695
      %v1351 = vpow.pop %v1350
      %v1352 = vmul.f32 %v1349, 1.442695
      %v1353 = vpow.pop %v1352
      %v1354 = vadd.f32 %v1351, 1.0
      %v1355 = vadd.f32 %v1353, 1.0
      %v1356 = vrcp.pop %v1354
      %v1357 = vmul.f32 1.0, %v1356
      %v1358 = vrcp.pop %v1355
      %v1359 = vmul.f32 1.0, %v1358
      %v1360 = vtanh.pop %v1328
      %v1361 = vtanh.pop %v1332
      %v1362 = vxor.u32 %v1330, 2147483648
      %v1363 = vxor.u32 %v1334, 2147483648
      %v1364 = vmul.f32 %v1362, 1.442695
      %v1365 = vpow.pop %v1364
      %v1366 = vmul.f32 %v1363, 1.442695
      %v1367 = vpow.pop %v1366
      %v1368 = vadd.f32 %v1365, 1.0
      %v1369 = vadd.f32 %v1367, 1.0
      %v1370 = vrcp.pop %v1368
      %v1371 = vmul.f32 1.0, %v1370
      %v1372 = vrcp.pop %v1369
      %v1373 = vmul.f32 1.0, %v1372
      %v1374 = vmul.f32 %v1357, %v854
      %v1375 = vmul.f32 %v1359, %v855
      %v1376 = vmul.f32 %v1345, %v1360
      %v1377 = vmul.f32 %v1347, %v1361
      %v1378 = vadd.f32 %v1374, %v1376
      %v1379 = vadd.f32 %v1375, %v1377
      %v1380 = vtanh.pop %v1378
      %v1381 = vtanh.pop %v1379
      %v1382 = vmul.f32 %v1371, %v1380
      %v1383 = vmul.f32 %v1373, %v1381
      %1384 = vst [vmem:[#allocation4] sm:$0xff] %v847
      %1385 = vst [vmem:[#allocation5] sm:$0xff] %v1378
      %1386 = vst [vmem:[#allocation5 + $0x8] sm:$0xff] %v1379
      %1387 = vst [vmem:[#allocation2 + $0x8] sm:$0xff] %v849
      %1388 = vst [vmem:[#allocation3 + $0x8] sm:$0xff] %v1382
      %1389 = vst [vmem:[#allocation3 + $0x18] sm:$0xff] %v1383
      %v1390 = vld [vmem:[#allocation6] sm:$0xff]
      %v1391 = vpack.c.bf16 %v849, %v849
      %s1392 = smul.u32 %s350, 16
      %s1393 = smul.addr %s1392, 4
      %s1394 = scalar_lea.vmem [#allocation26], %s1393
      %v1395 = vld [vmem:[%s1394] sm:$0xf]
      %v1396 = vld [vmem:[%s1394 + $0x4] sm:$0xf]
      %v1397 = vld [vmem:[%s1394 + $0x8] sm:$0xf]
      %v1398 = vld [vmem:[%s1394 + $0xc] sm:$0xf]
      %v1399 = vld [vmem:[%s1394 + $0x10] sm:$0xf]
      %v1400 = vld [vmem:[%s1394 + $0x14] sm:$0xf]
      %v1401 = vld [vmem:[%s1394 + $0x18] sm:$0xf]
      %v1402 = vld [vmem:[%s1394 + $0x1c] sm:$0xf]
      %v1403 = vld [vmem:[%s1394 + $0x20] sm:$0xf]
      %v1404 = vld [vmem:[%s1394 + $0x24] sm:$0xf]
      %v1405 = vld [vmem:[%s1394 + $0x28] sm:$0xf]
      %v1406 = vld [vmem:[%s1394 + $0x2c] sm:$0xf]
      %v1407 = vld [vmem:[%s1394 + $0x30] sm:$0xf]
      %v1408 = vld [vmem:[%s1394 + $0x34] sm:$0xf]
      %v1409 = vld [vmem:[%s1394 + $0x38] sm:$0xf]
      %v1410 = vld [vmem:[%s1394 + $0x3c] sm:$0xf]
      %v1427 = vunpack.c.l.b16 %v1395
      %v1428 = vunpack.c.l.b16 %v1396
      %v1429 = vunpack.c.l.b16 %v1397
      %v1430 = vunpack.c.l.b16 %v1398
      %v1431 = vunpack.c.l.b16 %v1399
      %v1432 = vunpack.c.l.b16 %v1400
      %v1433 = vunpack.c.l.b16 %v1401
      %v1434 = vunpack.c.l.b16 %v1402
      %v1435 = vunpack.c.l.b16 %v1403
      %v1436 = vunpack.c.l.b16 %v1404
      %v1437 = vunpack.c.l.b16 %v1405
      %v1438 = vunpack.c.l.b16 %v1406
      %v1439 = vunpack.c.l.b16 %v1407
      %v1440 = vunpack.c.l.b16 %v1408
      %v1441 = vunpack.c.l.b16 %v1409
      %v1442 = vunpack.c.l.b16 %v1410
      %v1443 = vpack.c.b16 %v1428, %v1427
      %v1444 = vpack.c.b16 %v1430, %v1429
      %v1445 = vpack.c.b16 %v1432, %v1431
      %v1446 = vpack.c.b16 %v1434, %v1433
      %v1447 = vpack.c.b16 %v1436, %v1435
      %v1448 = vpack.c.b16 %v1438, %v1437
      %v1449 = vpack.c.b16 %v1440, %v1439
      %v1450 = vpack.c.b16 %v1442, %v1441
      %1459 = vmatprep.subr.bf16.mxu0 0
      %1460 = vmatpush1.bf16.msra.mxu0 %v1443
      %1461 = vmatprep.subr.bf16.mxu0 0
      %1462 = vmatpush1.bf16.msra.mxu0 %v1444
      %1463 = vmatprep.subr.bf16.mxu0 0
      %1464 = vmatpush1.bf16.msra.mxu0 %v1445
      %1465 = vmatprep.subr.bf16.mxu0 0
      %1466 = vmatpush1.bf16.msra.mxu0 %v1446
      %1467 = vmatprep.subr.bf16.mxu0 0
      %1468 = vmatpush1.bf16.msra.mxu0 %v1447
      %1469 = vmatprep.subr.bf16.mxu0 0
      %1470 = vmatpush1.bf16.msra.mxu0 %v1448
      %1471 = vmatprep.subr.bf16.mxu0 0
      %1472 = vmatpush1.bf16.msra.mxu0 %v1449
      %1473 = vmatprep.subr.bf16.mxu0 0
      %1474 = vmatpush1.bf16.msra.mxu0 %v1450
      %1475 = vmatprep.subr.bf16.mxu0 0
      %1476 = vmatpush1.bf16.msra.mxu0 0
      %1477 = vmatprep.subr.bf16.mxu0 0
      %1478 = vmatpush1.bf16.msra.mxu0 0
      %1479 = vmatprep.subr.bf16.mxu0 0
      %1480 = vmatpush1.bf16.msra.mxu0 0
      %1481 = vmatprep.subr.bf16.mxu0 0
      %1482 = vmatpush1.bf16.msra.mxu0 0
      %1483 = vmatprep.subr.bf16.mxu0 0
      %1484 = vmatpush1.bf16.msra.mxu0 0
      %1485 = vmatprep.subr.bf16.mxu0 0
      %1486 = vmatpush1.bf16.msra.mxu0 0
      %1487 = vmatprep.subr.bf16.mxu0 0
      %1488 = vmatpush1.bf16.msra.mxu0 0
      %1489 = vmatprep.subr.bf16.mxu0 0
      %1490 = vmatpush1.bf16.msra.mxu0 0
      %1491 = vmatprep.mubr.bf16.mxu0 0
      %1492 = vmatmul.mubr.bf16.gmra.mrb[0].mxu0 %v1391
      %v1493 = vpop.f32.mrb[0].mxu0
      %v1494 = vadd.f32 0.0, %v1493
      %v1495 = vpop.f32.mrb[0].mxu0
      %v1496 = vpop.f32.mrb[0].mxu0
      %v1497 = vpop.f32.mrb[0].mxu0
      %1498 = vdwg.mxu0
      %v1499 = vadd.f32 %v1390, %v1494
      %1500 = vst [vmem:[#allocation6] sm:$0xff] %v1499
      %v1501 = vld [vmem:[%s2] sm:$0xff]
      %v1502 = vld [vmem:[%s2 + $0x8] sm:$0xff]
      %v1503 = vld [vmem:[%s3] sm:$0xff]
      %v1504 = vld [vmem:[%s3 + $0x8] sm:$0xff]
      %v1505 = vld [vmem:[#allocation11] sm:$0xff]
      %v1506 = vld [vmem:[#allocation18] sm:$0xf]
      %v1507 = vld [vmem:[#allocation18 + $0x4] sm:$0xf]
      %v1508 = vld [vmem:[#allocation18 + $0x8] sm:$0xf]
      %v1509 = vld [vmem:[#allocation18 + $0xc] sm:$0xf]
      %v1510 = vld [vmem:[#allocation18 + $0x10] sm:$0xf]
      %v1511 = vld [vmem:[#allocation18 + $0x14] sm:$0xf]
      %v1512 = vld [vmem:[#allocation18 + $0x18] sm:$0xf]
      %v1513 = vld [vmem:[#allocation18 + $0x1c] sm:$0xf]
      %v1514 = vld [vmem:[#allocation18 + $0x20] sm:$0xf]
      %v1515 = vld [vmem:[#allocation18 + $0x24] sm:$0xf]
      %v1516 = vld [vmem:[#allocation18 + $0x28] sm:$0xf]
      %v1517 = vld [vmem:[#allocation18 + $0x2c] sm:$0xf]
      %v1518 = vld [vmem:[#allocation18 + $0x30] sm:$0xf]
      %v1519 = vld [vmem:[#allocation18 + $0x34] sm:$0xf]
      %v1520 = vld [vmem:[#allocation18 + $0x38] sm:$0xf]
      %v1521 = vld [vmem:[#allocation18 + $0x3c] sm:$0xf]
      %v1522 = vld [vmem:[#allocation20] sm:$0xf]
      %v1523 = vld [vmem:[#allocation20 + $0x4] sm:$0xf]
      %v1524 = vld [vmem:[#allocation20 + $0x8] sm:$0xf]
      %v1525 = vld [vmem:[#allocation20 + $0xc] sm:$0xf]
      %v1526 = vld [vmem:[#allocation20 + $0x10] sm:$0xf]
      %v1527 = vld [vmem:[#allocation20 + $0x14] sm:$0xf]
      %v1528 = vld [vmem:[#allocation20 + $0x18] sm:$0xf]
      %v1529 = vld [vmem:[#allocation20 + $0x1c] sm:$0xf]
      %v1530 = vld [vmem:[#allocation20 + $0x20] sm:$0xf]
      %v1531 = vld [vmem:[#allocation20 + $0x24] sm:$0xf]
      %v1532 = vld [vmem:[#allocation20 + $0x28] sm:$0xf]
      %v1533 = vld [vmem:[#allocation20 + $0x2c] sm:$0xf]
      %v1534 = vld [vmem:[#allocation20 + $0x30] sm:$0xf]
      %v1535 = vld [vmem:[#allocation20 + $0x34] sm:$0xf]
      %v1536 = vld [vmem:[#allocation20 + $0x38] sm:$0xf]
      %v1537 = vld [vmem:[#allocation20 + $0x3c] sm:$0xf]
      %v1538 = vld [vmem:[#allocation21] sm:$0xf]
      %v1539 = vld [vmem:[#allocation21 + $0x4] sm:$0xf]
      %v1540 = vld [vmem:[#allocation21 + $0x8] sm:$0xf]
      %v1541 = vld [vmem:[#allocation21 + $0xc] sm:$0xf]
      %v1542 = vld [vmem:[#allocation21 + $0x10] sm:$0xf]
      %v1543 = vld [vmem:[#allocation21 + $0x14] sm:$0xf]
      %v1544 = vld [vmem:[#allocation21 + $0x18] sm:$0xf]
      %v1545 = vld [vmem:[#allocation21 + $0x1c] sm:$0xf]
      %v1546 = vld [vmem:[#allocation21 + $0x20] sm:$0xf]
      %v1547 = vld [vmem:[#allocation21 + $0x24] sm:$0xf]
      %v1548 = vld [vmem:[#allocation21 + $0x28] sm:$0xf]
      %v1549 = vld [vmem:[#allocation21 + $0x2c] sm:$0xf]
      %v1550 = vld [vmem:[#allocation21 + $0x30] sm:$0xf]
      %v1551 = vld [vmem:[#allocation21 + $0x34] sm:$0xf]
      %v1552 = vld [vmem:[#allocation21 + $0x38] sm:$0xf]
      %v1553 = vld [vmem:[#allocation21 + $0x3c] sm:$0xf]
      %v1554 = vld [vmem:[%s14] sm:$0xff]
      %v1555 = vld [vmem:[%s14 + $0x8] sm:$0xff]
      %v1556 = vld [vmem:[#allocation23] sm:$0xf]
      %v1557 = vld [vmem:[#allocation23 + $0x4] sm:$0xf]
      %v1558 = vld [vmem:[#allocation23 + $0x8] sm:$0xf]
      %v1559 = vld [vmem:[#allocation23 + $0xc] sm:$0xf]
      %v1560 = vld [vmem:[#allocation23 + $0x10] sm:$0xf]
      %v1561 = vld [vmem:[#allocation23 + $0x14] sm:$0xf]
      %v1562 = vld [vmem:[#allocation23 + $0x18] sm:$0xf]
      %v1563 = vld [vmem:[#allocation23 + $0x1c] sm:$0xf]
      %v1564 = vld [vmem:[#allocation23 + $0x20] sm:$0xf]
      %v1565 = vld [vmem:[#allocation23 + $0x24] sm:$0xf]
      %v1566 = vld [vmem:[#allocation23 + $0x28] sm:$0xf]
      %v1567 = vld [vmem:[#allocation23 + $0x2c] sm:$0xf]
      %v1568 = vld [vmem:[#allocation23 + $0x30] sm:$0xf]
      %v1569 = vld [vmem:[#allocation23 + $0x34] sm:$0xf]
      %v1570 = vld [vmem:[#allocation23 + $0x38] sm:$0xf]
      %v1571 = vld [vmem:[#allocation23 + $0x3c] sm:$0xf]
      %v1572 = vld [vmem:[#allocation24] sm:$0xf]
      %v1573 = vld [vmem:[#allocation24 + $0x4] sm:$0xf]
      %v1574 = vld [vmem:[#allocation24 + $0x8] sm:$0xf]
      %v1575 = vld [vmem:[#allocation24 + $0xc] sm:$0xf]
      %v1576 = vld [vmem:[#allocation24 + $0x10] sm:$0xf]
      %v1577 = vld [vmem:[#allocation24 + $0x14] sm:$0xf]
      %v1578 = vld [vmem:[#allocation24 + $0x18] sm:$0xf]
      %v1579 = vld [vmem:[#allocation24 + $0x1c] sm:$0xf]
      %v1580 = vld [vmem:[#allocation24 + $0x20] sm:$0xf]
      %v1581 = vld [vmem:[#allocation24 + $0x24] sm:$0xf]
      %v1582 = vld [vmem:[#allocation24 + $0x28] sm:$0xf]
      %v1583 = vld [vmem:[#allocation24 + $0x2c] sm:$0xf]
      %v1584 = vld [vmem:[#allocation24 + $0x30] sm:$0xf]
      %v1585 = vld [vmem:[#allocation24 + $0x34] sm:$0xf]
      %v1586 = vld [vmem:[#allocation24 + $0x38] sm:$0xf]
      %v1587 = vld [vmem:[#allocation24 + $0x3c] sm:$0xf]
      %v1588 = vld [vmem:[%s17] sm:$0xff]
      %v1589 = vpack.c.bf16 %v1383, %v1382
      %v1606 = vunpack.c.l.b16 %v1506
      %v1607 = vunpack.c.l.b16 %v1507
      %v1608 = vunpack.c.l.b16 %v1508
      %v1609 = vunpack.c.l.b16 %v1509
      %v1610 = vunpack.c.l.b16 %v1510
      %v1611 = vunpack.c.l.b16 %v1511
      %v1612 = vunpack.c.l.b16 %v1512
      %v1613 = vunpack.c.l.b16 %v1513
      %v1614 = vunpack.c.l.b16 %v1514
      %v1615 = vunpack.c.l.b16 %v1515
      %v1616 = vunpack.c.l.b16 %v1516
      %v1617 = vunpack.c.l.b16 %v1517
      %v1618 = vunpack.c.l.b16 %v1518
      %v1619 = vunpack.c.l.b16 %v1519
      %v1620 = vunpack.c.l.b16 %v1520
      %v1621 = vunpack.c.l.b16 %v1521
      %v1622 = vpack.c.b16 %v1607, %v1606
      %v1623 = vpack.c.b16 %v1609, %v1608
      %v1624 = vpack.c.b16 %v1611, %v1610
      %v1625 = vpack.c.b16 %v1613, %v1612
      %v1626 = vpack.c.b16 %v1615, %v1614
      %v1627 = vpack.c.b16 %v1617, %v1616
      %v1628 = vpack.c.b16 %v1619, %v1618
      %v1629 = vpack.c.b16 %v1621, %v1620
      %1638 = vmatprep.subr.bf16.mxu0 0
      %1639 = vmatpush1.bf16.msra.mxu0 %v1622
      %1640 = vmatprep.subr.bf16.mxu0 0
      %1641 = vmatpush1.bf16.msra.mxu0 %v1623
      %1642 = vmatprep.subr.bf16.mxu0 0
      %1643 = vmatpush1.bf16.msra.mxu0 %v1624
      %1644 = vmatprep.subr.bf16.mxu0 0
      %1645 = vmatpush1.bf16.msra.mxu0 %v1625
      %1646 = vmatprep.subr.bf16.mxu0 0
      %1647 = vmatpush1.bf16.msra.mxu0 %v1626
      %1648 = vmatprep.subr.bf16.mxu0 0
      %1649 = vmatpush1.bf16.msra.mxu0 %v1627
      %1650 = vmatprep.subr.bf16.mxu0 0
      %1651 = vmatpush1.bf16.msra.mxu0 %v1628
      %1652 = vmatprep.subr.bf16.mxu0 0
      %1653 = vmatpush1.bf16.msra.mxu0 %v1629
      %1654 = vmatprep.subr.bf16.mxu0 0
      %1655 = vmatpush1.bf16.msra.mxu0 0
      %1656 = vmatprep.subr.bf16.mxu0 0
      %1657 = vmatpush1.bf16.msra.mxu0 0
      %1658 = vmatprep.subr.bf16.mxu0 0
      %1659 = vmatpush1.bf16.msra.mxu0 0
      %1660 = vmatprep.subr.bf16.mxu0 0
      %1661 = vmatpush1.bf16.msra.mxu0 0
      %1662 = vmatprep.subr.bf16.mxu0 0
      %1663 = vmatpush1.bf16.msra.mxu0 0
      %1664 = vmatprep.subr.bf16.mxu0 0
      %1665 = vmatpush1.bf16.msra.mxu0 0
      %1666 = vmatprep.subr.bf16.mxu0 0
      %1667 = vmatpush1.bf16.msra.mxu0 0
      %1668 = vmatprep.subr.bf16.mxu0 0
      %1669 = vmatpush1.bf16.msra.mxu0 0
      %1670 = vmatprep.mubr.bf16.mxu0 0
      %1671 = vmatmul.mubr.bf16.gmra.mrb[0].mxu0 %v1391
      %v1672 = vpop.f32.mrb[0].mxu0
      %v1673 = vadd.f32 0.0, %v1672
      %v1674 = vpop.f32.mrb[0].mxu0
      %v1675 = vpop.f32.mrb[0].mxu0
      %v1676 = vpop.f32.mrb[0].mxu0
      %1677 = vdwg.mxu0
      %v1694 = vunpack.c.l.b16 %v1538
      %v1695 = vunpack.c.l.b16 %v1539
      %v1696 = vunpack.c.l.b16 %v1540
      %v1697 = vunpack.c.l.b16 %v1541
      %v1698 = vunpack.c.l.b16 %v1542
      %v1699 = vunpack.c.l.b16 %v1543
      %v1700 = vunpack.c.l.b16 %v1544
      %v1701 = vunpack.c.l.b16 %v1545
      %v1702 = vunpack.c.l.b16 %v1546
      %v1703 = vunpack.c.l.b16 %v1547
      %v1704 = vunpack.c.l.b16 %v1548
      %v1705 = vunpack.c.l.b16 %v1549
      %v1706 = vunpack.c.l.b16 %v1550
      %v1707 = vunpack.c.l.b16 %v1551
      %v1708 = vunpack.c.l.b16 %v1552
      %v1709 = vunpack.c.l.b16 %v1553
      %v1710 = vpack.c.b16 %v1695, %v1694
      %v1711 = vpack.c.b16 %v1697, %v1696
      %v1712 = vpack.c.b16 %v1699, %v1698
      %v1713 = vpack.c.b16 %v1701, %v1700
      %v1714 = vpack.c.b16 %v1703, %v1702
      %v1715 = vpack.c.b16 %v1705, %v1704
      %v1716 = vpack.c.b16 %v1707, %v1706
      %v1717 = vpack.c.b16 %v1709, %v1708
      %1726 = vmatprep.subr.bf16.mxu0 0
      %1727 = vmatpush1.bf16.msra.mxu0 %v1710
      %1728 = vmatprep.subr.bf16.mxu0 0
      %1729 = vmatpush1.bf16.msra.mxu0 %v1711
      %1730 = vmatprep.subr.bf16.mxu0 0
      %1731 = vmatpush1.bf16.msra.mxu0 %v1712
      %1732 = vmatprep.subr.bf16.mxu0 0
      %1733 = vmatpush1.bf16.msra.mxu0 %v1713
      %1734 = vmatprep.subr.bf16.mxu0 0
      %1735 = vmatpush1.bf16.msra.mxu0 %v1714
      %1736 = vmatprep.subr.bf16.mxu0 0
      %1737 = vmatpush1.bf16.msra.mxu0 %v1715
      %1738 = vmatprep.subr.bf16.mxu0 0
      %1739 = vmatpush1.bf16.msra.mxu0 %v1716
      %1740 = vmatprep.subr.bf16.mxu0 0
      %1741 = vmatpush1.bf16.msra.mxu0 %v1717
      %1742 = vmatprep.subr.bf16.mxu0 0
      %1743 = vmatpush1.bf16.msra.mxu0 0
      %1744 = vmatprep.subr.bf16.mxu0 0
      %1745 = vmatpush1.bf16.msra.mxu0 0
      %1746 = vmatprep.subr.bf16.mxu0 0
      %1747 = vmatpush1.bf16.msra.mxu0 0
      %1748 = vmatprep.subr.bf16.mxu0 0
      %1749 = vmatpush1.bf16.msra.mxu0 0
      %1750 = vmatprep.subr.bf16.mxu0 0
      %1751 = vmatpush1.bf16.msra.mxu0 0
      %1752 = vmatprep.subr.bf16.mxu0 0
      %1753 = vmatpush1.bf16.msra.mxu0 0
      %1754 = vmatprep.subr.bf16.mxu0 0
      %1755 = vmatpush1.bf16.msra.mxu0 0
      %1756 = vmatprep.subr.bf16.mxu0 0
      %1757 = vmatpush1.bf16.msra.mxu0 0
      %1758 = vmatprep.mubr.bf16.mxu0 0
      %1759 = vmatmul.mubr.bf16.gmra.mrb[0].mxu0 %v1391
      %v1760 = vpop.f32.mrb[0].mxu0
      %v1761 = vadd.f32 0.0, %v1760
      %v1762 = vpop.f32.mrb[0].mxu0
      %v1763 = vpop.f32.mrb[0].mxu0
      %v1764 = vpop.f32.mrb[0].mxu0
      %1765 = vdwg.mxu0
      %vm1766 = vcmask 64512
      %v1768 = vsel %vm1766, %v1503, 0
      %v1771 = vsel %vm1766, %v1504, 0
      %1773 = vmatprep.subr.mxu0 0.0
      %1774 = vmatpush1.msra.mxu0 %v1761
      %1775 = vmatprep.subr.mxu0 0.0
      %1776 = vmatpush1.msra.mxu0 0.0
      %1777 = vmatprep.subr.mxu0 0.0
      %1778 = vmatpush1.msra.mxu0 0.0
      %1779 = vmatprep.subr.mxu0 0.0
      %1780 = vmatpush1.msra.mxu0 0.0
      %1781 = vmatprep.subr.mxu0 0.0
      %1782 = vmatpush1.msra.mxu0 0.0
      %1783 = vmatprep.subr.mxu0 0.0
      %1784 = vmatpush1.msra.mxu0 0.0
      %1785 = vmatprep.subr.mxu0 0.0
      %1786 = vmatpush1.msra.mxu0 0.0
      %1787 = vmatprep.subr.mxu0 0.0
      %1788 = vmatpush1.msra.mxu0 0.0
      %1789 = vmatprep.subr.mxu0 0.0
      %1790 = vmatpush1.msra.mxu0 0.0
      %1791 = vmatprep.subr.mxu0 0.0
      %1792 = vmatpush1.msra.mxu0 0.0
      %1793 = vmatprep.subr.mxu0 0.0
      %1794 = vmatpush1.msra.mxu0 0.0
      %1795 = vmatprep.subr.mxu0 0.0
      %1796 = vmatpush1.msra.mxu0 0.0
      %1797 = vmatprep.subr.mxu0 0.0
      %1798 = vmatpush1.msra.mxu0 0.0
      %1799 = vmatprep.subr.mxu0 0.0
      %1800 = vmatpush1.msra.mxu0 0.0
      %1801 = vmatprep.subr.mxu0 0.0
      %1802 = vmatpush1.msra.mxu0 0.0
      %1803 = vmatprep.subr.mxu0 0.0
      %1804 = vmatpush1.msra.mxu0 0.0
      %1805 = vmatprep.subr.mxu0 0.0
      %1806 = vmatpush1.msra.mxu0 0.0
      %1807 = vmatprep.subr.mxu0 0.0
      %1808 = vmatpush1.msra.mxu0 0.0
      %1809 = vmatprep.subr.mxu0 0.0
      %1810 = vmatpush1.msra.mxu0 0.0
      %1811 = vmatprep.subr.mxu0 0.0
      %1812 = vmatpush1.msra.mxu0 0.0
      %1813 = vmatprep.subr.mxu0 0.0
      %1814 = vmatpush1.msra.mxu0 0.0
      %1815 = vmatprep.subr.mxu0 0.0
      %1816 = vmatpush1.msra.mxu0 0.0
      %1817 = vmatprep.subr.mxu0 0.0
      %1818 = vmatpush1.msra.mxu0 0.0
      %1819 = vmatprep.subr.mxu0 0.0
      %1820 = vmatpush1.msra.mxu0 0.0
      %1821 = vmatprep.subr.mxu0 0.0
      %1822 = vmatpush1.msra.mxu0 0.0
      %1823 = vmatprep.subr.mxu0 0.0
      %1824 = vmatpush1.msra.mxu0 0.0
      %1825 = vmatprep.subr.mxu0 0.0
      %1826 = vmatpush1.msra.mxu0 0.0
      %1827 = vmatprep.subr.mxu0 0.0
      %1828 = vmatpush1.msra.mxu0 0.0
      %1829 = vmatprep.subr.mxu0 0.0
      %1830 = vmatpush1.msra.mxu0 0.0
      %1831 = vmatprep.subr.mxu0 0.0
      %1832 = vmatpush1.msra.mxu0 0.0
      %1833 = vmatprep.subr.mxu0 0.0
      %1834 = vmatpush1.msra.mxu0 0.0
      %1835 = vmatprep.subr.mxu0 0.0
      %1836 = vmatpush1.msra.mxu0 0.0
      %1837 = vmatprep.mubr.f32.mxu0 0.0
      %1838 = vmatmul.mubr.f32.gmra.mrb[0].mxu0 %v1768
      %v1839 = vpop.f32.mrb[0].mxu0
      %v1840 = vadd.f32 0.0, %v1839
      %v1841 = vpop.f32.mrb[0].mxu0
      %1842 = vmatprep.mubr.f32.mxu0 0.0
      %1843 = vmatmul.mubr.f32.gmra.mrb[0].mxu0 %v1771
      %v1844 = vpop.f32.mrb[0].mxu0
      %v1845 = vadd.f32 0.0, %v1844
      %v1846 = vpop.f32.mrb[0].mxu0
      %1847 = vdwg.mxu0
      %v1849 = vsel %vm1766, %v1501, 0
      %v1852 = vsel %vm1766, %v1502, 0
      %1854 = vmatprep.subr.mxu0 0.0
      %1855 = vmatpush1.msra.mxu0 %v1673
      %1856 = vmatprep.subr.mxu0 0.0
      %1857 = vmatpush1.msra.mxu0 0.0
      %1858 = vmatprep.subr.mxu0 0.0
      %1859 = vmatpush1.msra.mxu0 0.0
      %1860 = vmatprep.subr.mxu0 0.0
      %1861 = vmatpush1.msra.mxu0 0.0
      %1862 = vmatprep.subr.mxu0 0.0
      %1863 = vmatpush1.msra.mxu0 0.0
      %1864 = vmatprep.subr.mxu0 0.0
      %1865 = vmatpush1.msra.mxu0 0.0
      %1866 = vmatprep.subr.mxu0 0.0
      %1867 = vmatpush1.msra.mxu0 0.0
      %1868 = vmatprep.subr.mxu0 0.0
      %1869 = vmatpush1.msra.mxu0 0.0
      %1870 = vmatprep.subr.mxu0 0.0
      %1871 = vmatpush1.msra.mxu0 0.0
      %1872 = vmatprep.subr.mxu0 0.0
      %1873 = vmatpush1.msra.mxu0 0.0
      %1874 = vmatprep.subr.mxu0 0.0
      %1875 = vmatpush1.msra.mxu0 0.0
      %1876 = vmatprep.subr.mxu0 0.0
      %1877 = vmatpush1.msra.mxu0 0.0
      %1878 = vmatprep.subr.mxu0 0.0
      %1879 = vmatpush1.msra.mxu0 0.0
      %1880 = vmatprep.subr.mxu0 0.0
      %1881 = vmatpush1.msra.mxu0 0.0
      %1882 = vmatprep.subr.mxu0 0.0
      %1883 = vmatpush1.msra.mxu0 0.0
      %1884 = vmatprep.subr.mxu0 0.0
      %1885 = vmatpush1.msra.mxu0 0.0
      %1886 = vmatprep.subr.mxu0 0.0
      %1887 = vmatpush1.msra.mxu0 0.0
      %1888 = vmatprep.subr.mxu0 0.0
      %1889 = vmatpush1.msra.mxu0 0.0
      %1890 = vmatprep.subr.mxu0 0.0
      %1891 = vmatpush1.msra.mxu0 0.0
      %1892 = vmatprep.subr.mxu0 0.0
      %1893 = vmatpush1.msra.mxu0 0.0
      %1894 = vmatprep.subr.mxu0 0.0
      %1895 = vmatpush1.msra.mxu0 0.0
      %1896 = vmatprep.subr.mxu0 0.0
      %1897 = vmatpush1.msra.mxu0 0.0
      %1898 = vmatprep.subr.mxu0 0.0
      %1899 = vmatpush1.msra.mxu0 0.0
      %1900 = vmatprep.subr.mxu0 0.0
      %1901 = vmatpush1.msra.mxu0 0.0
      %1902 = vmatprep.subr.mxu0 0.0
      %1903 = vmatpush1.msra.mxu0 0.0
      %1904 = vmatprep.subr.mxu0 0.0
      %1905 = vmatpush1.msra.mxu0 0.0
      %1906 = vmatprep.subr.mxu0 0.0
      %1907 = vmatpush1.msra.mxu0 0.0
      %1908 = vmatprep.subr.mxu0 0.0
      %1909 = vmatpush1.msra.mxu0 0.0
      %1910 = vmatprep.subr.mxu0 0.0
      %1911 = vmatpush1.msra.mxu0 0.0
      %1912 = vmatprep.subr.mxu0 0.0
      %1913 = vmatpush1.msra.mxu0 0.0
      %1914 = vmatprep.subr.mxu0 0.0
      %1915 = vmatpush1.msra.mxu0 0.0
      %1916 = vmatprep.subr.mxu0 0.0
      %1917 = vmatpush1.msra.mxu0 0.0
      %1918 = vmatprep.mubr.f32.mxu0 0.0
      %1919 = vmatmul.mubr.f32.gmra.mrb[0].mxu0 %v1849
      %v1920 = vpop.f32.mrb[0].mxu0
      %v1921 = vadd.f32 %v1840, %v1920
      %v1922 = vpop.f32.mrb[0].mxu0
      %1923 = vmatprep.mubr.f32.mxu0 0.0
      %1924 = vmatmul.mubr.f32.gmra.mrb[0].mxu0 %v1852
      %v1925 = vpop.f32.mrb[0].mxu0
      %v1926 = vadd.f32 %v1845, %v1925
      %v1927 = vpop.f32.mrb[0].mxu0
      %1928 = vdwg.mxu0
      %v1945 = vunpack.c.l.b16 %v1522
      %v1946 = vunpack.c.l.b16 %v1523
      %v1947 = vunpack.c.l.b16 %v1524
      %v1948 = vunpack.c.l.b16 %v1525
      %v1949 = vunpack.c.l.b16 %v1526
      %v1950 = vunpack.c.l.b16 %v1527
      %v1951 = vunpack.c.l.b16 %v1528
      %v1952 = vunpack.c.l.b16 %v1529
      %v1953 = vunpack.c.l.b16 %v1530
      %v1954 = vunpack.c.l.b16 %v1531
      %v1955 = vunpack.c.l.b16 %v1532
      %v1956 = vunpack.c.l.b16 %v1533
      %v1957 = vunpack.c.l.b16 %v1534
      %v1958 = vunpack.c.l.b16 %v1535
      %v1959 = vunpack.c.l.b16 %v1536
      %v1960 = vunpack.c.l.b16 %v1537
      %v1961 = vpack.c.b16 %v1946, %v1945
      %v1962 = vpack.c.b16 %v1948, %v1947
      %v1963 = vpack.c.b16 %v1950, %v1949
      %v1964 = vpack.c.b16 %v1952, %v1951
      %v1965 = vpack.c.b16 %v1954, %v1953
      %v1966 = vpack.c.b16 %v1956, %v1955
      %v1967 = vpack.c.b16 %v1958, %v1957
      %v1968 = vpack.c.b16 %v1960, %v1959
      %1977 = vmatprep.subr.bf16.mxu0 0
      %1978 = vmatpush1.bf16.msra.mxu0 %v1961
      %1979 = vmatprep.subr.bf16.mxu0 0
      %1980 = vmatpush1.bf16.msra.mxu0 %v1962
      %1981 = vmatprep.subr.bf16.mxu0 0
      %1982 = vmatpush1.bf16.msra.mxu0 %v1963
      %1983 = vmatprep.subr.bf16.mxu0 0
      %1984 = vmatpush1.bf16.msra.mxu0 %v1964
      %1985 = vmatprep.subr.bf16.mxu0 0
      %1986 = vmatpush1.bf16.msra.mxu0 %v1965
      %1987 = vmatprep.subr.bf16.mxu0 0
      %1988 = vmatpush1.bf16.msra.mxu0 %v1966
      %1989 = vmatprep.subr.bf16.mxu0 0
      %1990 = vmatpush1.bf16.msra.mxu0 %v1967
      %1991 = vmatprep.subr.bf16.mxu0 0
      %1992 = vmatpush1.bf16.msra.mxu0 %v1968
      %1993 = vmatprep.subr.bf16.mxu0 0
      %1994 = vmatpush1.bf16.msra.mxu0 0
      %1995 = vmatprep.subr.bf16.mxu0 0
      %1996 = vmatpush1.bf16.msra.mxu0 0
      %1997 = vmatprep.subr.bf16.mxu0 0
      %1998 = vmatpush1.bf16.msra.mxu0 0
      %1999 = vmatprep.subr.bf16.mxu0 0
      %2000 = vmatpush1.bf16.msra.mxu0 0
      %2001 = vmatprep.subr.bf16.mxu0 0
      %2002 = vmatpush1.bf16.msra.mxu0 0
      %2003 = vmatprep.subr.bf16.mxu0 0
      %2004 = vmatpush1.bf16.msra.mxu0 0
      %2005 = vmatprep.subr.bf16.mxu0 0
      %2006 = vmatpush1.bf16.msra.mxu0 0
      %2007 = vmatprep.subr.bf16.mxu0 0
      %2008 = vmatpush1.bf16.msra.mxu0 0
      %2009 = vmatprep.mubr.bf16.mxu0 0
      %2010 = vmatmul.mubr.bf16.gmra.mrb[0].mxu0 %v1589
      %v2011 = vpop.f32.mrb[0].mxu0
      %v2012 = vadd.f32 0.0, %v2011
      %v2013 = vpop.f32.mrb[0].mxu0
      %v2014 = vpop.f32.mrb[0].mxu0
      %v2015 = vadd.f32 0.0, %v2014
      %v2016 = vpop.f32.mrb[0].mxu0
      %2017 = vdwg.mxu0
      %v2018 = vadd.f32 %v1921, %v2012
      %v2019 = vadd.f32 %v1926, %v2015
      %v2020 = vadd.f32 %v2018, %v1554
      %v2021 = vadd.f32 %v2019, %v1555
      %vm2022 = vcmp.ge.f32.partialorder %v2020, 0.0
      %vm2023 = vcmp.ge.f32.partialorder %v2021, 0.0
      %v2024 = vmul.f32 %v2020, 0.01
      %v2025 = vmul.f32 %v2021, 0.01
      %v2026 = vsel %vm2022, %v2020, %v2024
      %v2027 = vsel %vm2023, %v2021, %v2025
      %v2044 = vunpack.c.l.b16 %v1556
      %v2045 = vunpack.c.l.b16 %v1557
      %v2046 = vunpack.c.l.b16 %v1558
      %v2047 = vunpack.c.l.b16 %v1559
      %v2048 = vunpack.c.l.b16 %v1560
      %v2049 = vunpack.c.l.b16 %v1561
      %v2050 = vunpack.c.l.b16 %v1562
      %v2051 = vunpack.c.l.b16 %v1563
      %v2052 = vunpack.c.l.b16 %v1564
      %v2053 = vunpack.c.l.b16 %v1565
      %v2054 = vunpack.c.l.b16 %v1566
      %v2055 = vunpack.c.l.b16 %v1567
      %v2056 = vunpack.c.l.b16 %v1568
      %v2057 = vunpack.c.l.b16 %v1569
      %v2058 = vunpack.c.l.b16 %v1570
      %v2059 = vunpack.c.l.b16 %v1571
      %v2060 = vpack.c.b16 %v2045, %v2044
      %v2061 = vpack.c.b16 %v2047, %v2046
      %v2062 = vpack.c.b16 %v2049, %v2048
      %v2063 = vpack.c.b16 %v2051, %v2050
      %v2064 = vpack.c.b16 %v2053, %v2052
      %v2065 = vpack.c.b16 %v2055, %v2054
      %v2066 = vpack.c.b16 %v2057, %v2056
      %v2067 = vpack.c.b16 %v2059, %v2058
      %2076 = vmatprep.subr.bf16.mxu0 0
      %2077 = vmatpush1.bf16.msra.mxu0 %v2060
      %2078 = vmatprep.subr.bf16.mxu0 0
      %2079 = vmatpush1.bf16.msra.mxu0 %v2061
      %2080 = vmatprep.subr.bf16.mxu0 0
      %2081 = vmatpush1.bf16.msra.mxu0 %v2062
      %2082 = vmatprep.subr.bf16.mxu0 0
      %2083 = vmatpush1.bf16.msra.mxu0 %v2063
      %2084 = vmatprep.subr.bf16.mxu0 0
      %2085 = vmatpush1.bf16.msra.mxu0 %v2064
      %2086 = vmatprep.subr.bf16.mxu0 0
      %2087 = vmatpush1.bf16.msra.mxu0 %v2065
      %2088 = vmatprep.subr.bf16.mxu0 0
      %2089 = vmatpush1.bf16.msra.mxu0 %v2066
      %2090 = vmatprep.subr.bf16.mxu0 0
      %2091 = vmatpush1.bf16.msra.mxu0 %v2067
      %2092 = vmatprep.subr.bf16.mxu0 0
      %2093 = vmatpush1.bf16.msra.mxu0 0
      %2094 = vmatprep.subr.bf16.mxu0 0
      %2095 = vmatpush1.bf16.msra.mxu0 0
      %2096 = vmatprep.subr.bf16.mxu0 0
      %2097 = vmatpush1.bf16.msra.mxu0 0
      %2098 = vmatprep.subr.bf16.mxu0 0
      %2099 = vmatpush1.bf16.msra.mxu0 0
      %2100 = vmatprep.subr.bf16.mxu0 0
      %2101 = vmatpush1.bf16.msra.mxu0 0
      %2102 = vmatprep.subr.bf16.mxu0 0
      %2103 = vmatpush1.bf16.msra.mxu0 0
      %2104 = vmatprep.subr.bf16.mxu0 0
      %2105 = vmatpush1.bf16.msra.mxu0 0
      %2106 = vmatprep.subr.bf16.mxu0 0
      %2107 = vmatpush1.bf16.msra.mxu0 0
      %2108 = vmatprep.mubr.bf16.mxu0 0
      %2109 = vmatmul.mubr.bf16.gmra.mrb[0].mxu0 %v1589
      %v2110 = vpop.f32.mrb[0].mxu0
      %v2111 = vadd.f32 0.0, %v2110
      %v2112 = vpop.f32.mrb[0].mxu0
      %v2113 = vpop.f32.mrb[0].mxu0
      %v2114 = vadd.f32 0.0, %v2113
      %v2115 = vpop.f32.mrb[0].mxu0
      %2116 = vdwg.mxu0
      %v2133 = vunpack.c.l.b16 %v1572
      %v2134 = vunpack.c.l.b16 %v1573
      %v2135 = vunpack.c.l.b16 %v1574
      %v2136 = vunpack.c.l.b16 %v1575
      %v2137 = vunpack.c.l.b16 %v1576
      %v2138 = vunpack.c.l.b16 %v1577
      %v2139 = vunpack.c.l.b16 %v1578
      %v2140 = vunpack.c.l.b16 %v1579
      %v2141 = vunpack.c.l.b16 %v1580
      %v2142 = vunpack.c.l.b16 %v1581
      %v2143 = vunpack.c.l.b16 %v1582
      %v2144 = vunpack.c.l.b16 %v1583
      %v2145 = vunpack.c.l.b16 %v1584
      %v2146 = vunpack.c.l.b16 %v1585
      %v2147 = vunpack.c.l.b16 %v1586
      %v2148 = vunpack.c.l.b16 %v1587
      %v2149 = vpack.c.b16 %v2134, %v2133
      %v2150 = vpack.c.b16 %v2136, %v2135
      %v2151 = vpack.c.b16 %v2138, %v2137
      %v2152 = vpack.c.b16 %v2140, %v2139
      %v2153 = vpack.c.b16 %v2142, %v2141
      %v2154 = vpack.c.b16 %v2144, %v2143
      %v2155 = vpack.c.b16 %v2146, %v2145
      %v2156 = vpack.c.b16 %v2148, %v2147
      %2165 = vmatprep.subr.bf16.mxu0 0
      %2166 = vmatpush1.bf16.msra.mxu0 %v2149
      %2167 = vmatprep.subr.bf16.mxu0 0
      %2168 = vmatpush1.bf16.msra.mxu0 %v2150
      %2169 = vmatprep.subr.bf16.mxu0 0
      %2170 = vmatpush1.bf16.msra.mxu0 %v2151
      %2171 = vmatprep.subr.bf16.mxu0 0
      %2172 = vmatpush1.bf16.msra.mxu0 %v2152
      %2173 = vmatprep.subr.bf16.mxu0 0
      %2174 = vmatpush1.bf16.msra.mxu0 %v2153
      %2175 = vmatprep.subr.bf16.mxu0 0
      %2176 = vmatpush1.bf16.msra.mxu0 %v2154
      %2177 = vmatprep.subr.bf16.mxu0 0
      %2178 = vmatpush1.bf16.msra.mxu0 %v2155
      %2179 = vmatprep.subr.bf16.mxu0 0
      %2180 = vmatpush1.bf16.msra.mxu0 %v2156
      %2181 = vmatprep.subr.bf16.mxu0 0
      %2182 = vmatpush1.bf16.msra.mxu0 0
      %2183 = vmatprep.subr.bf16.mxu0 0
      %2184 = vmatpush1.bf16.msra.mxu0 0
      %2185 = vmatprep.subr.bf16.mxu0 0
      %2186 = vmatpush1.bf16.msra.mxu0 0
      %2187 = vmatprep.subr.bf16.mxu0 0
      %2188 = vmatpush1.bf16.msra.mxu0 0
      %2189 = vmatprep.subr.bf16.mxu0 0
      %2190 = vmatpush1.bf16.msra.mxu0 0
      %2191 = vmatprep.subr.bf16.mxu0 0
      %2192 = vmatpush1.bf16.msra.mxu0 0
      %2193 = vmatprep.subr.bf16.mxu0 0
      %2194 = vmatpush1.bf16.msra.mxu0 0
      %2195 = vmatprep.subr.bf16.mxu0 0
      %2196 = vmatpush1.bf16.msra.mxu0 0
      %2197 = vmatprep.mubr.bf16.mxu0 0
      %2198 = vmatmul.mubr.bf16.gmra.mrb[0].mxu0 %v1391
      %v2199 = vpop.f32.mrb[0].mxu0
      %v2200 = vadd.f32 0.0, %v2199
      %v2201 = vpop.f32.mrb[0].mxu0
      %v2202 = vpop.f32.mrb[0].mxu0
      %v2203 = vpop.f32.mrb[0].mxu0
      %2204 = vdwg.mxu0
      %vm2205 = vcmask 130048
      %v2207 = vsel %vm2205, %v1505, 0
      %2209 = vmatprep.subr.mxu0 0.0
      %2210 = vmatpush1.msra.mxu0 %v2111
      %2211 = vmatprep.subr.mxu0 0.0
      %2212 = vmatpush1.msra.mxu0 %v2114
      %2213 = vmatprep.subr.mxu0 0.0
      %2214 = vmatpush1.msra.mxu0 0.0
      %2215 = vmatprep.subr.mxu0 0.0
      %2216 = vmatpush1.msra.mxu0 0.0
      %2217 = vmatprep.subr.mxu0 0.0
      %2218 = vmatpush1.msra.mxu0 0.0
      %2219 = vmatprep.subr.mxu0 0.0
      %2220 = vmatpush1.msra.mxu0 0.0
      %2221 = vmatprep.subr.mxu0 0.0
      %2222 = vmatpush1.msra.mxu0 0.0
      %2223 = vmatprep.subr.mxu0 0.0
      %2224 = vmatpush1.msra.mxu0 0.0
      %2225 = vmatprep.subr.mxu0 0.0
      %2226 = vmatpush1.msra.mxu0 0.0
      %2227 = vmatprep.subr.mxu0 0.0
      %2228 = vmatpush1.msra.mxu0 0.0
      %2229 = vmatprep.subr.mxu0 0.0
      %2230 = vmatpush1.msra.mxu0 0.0
      %2231 = vmatprep.subr.mxu0 0.0
      %2232 = vmatpush1.msra.mxu0 0.0
      %2233 = vmatprep.subr.mxu0 0.0
      %2234 = vmatpush1.msra.mxu0 0.0
      %2235 = vmatprep.subr.mxu0 0.0
      %2236 = vmatpush1.msra.mxu0 0.0
      %2237 = vmatprep.subr.mxu0 0.0
      %2238 = vmatpush1.msra.mxu0 0.0
      %2239 = vmatprep.subr.mxu0 0.0
      %2240 = vmatpush1.msra.mxu0 0.0
      %2241 = vmatprep.subr.mxu0 0.0
      %2242 = vmatpush1.msra.mxu0 0.0
      %2243 = vmatprep.subr.mxu0 0.0
      %2244 = vmatpush1.msra.mxu0 0.0
      %2245 = vmatprep.subr.mxu0 0.0
      %2246 = vmatpush1.msra.mxu0 0.0
      %2247 = vmatprep.subr.mxu0 0.0
      %2248 = vmatpush1.msra.mxu0 0.0
      %2249 = vmatprep.subr.mxu0 0.0
      %2250 = vmatpush1.msra.mxu0 0.0
      %2251 = vmatprep.subr.mxu0 0.0
      %2252 = vmatpush1.msra.mxu0 0.0
      %2253 = vmatprep.subr.mxu0 0.0
      %2254 = vmatpush1.msra.mxu0 0.0
      %2255 = vmatprep.subr.mxu0 0.0
      %2256 = vmatpush1.msra.mxu0 0.0
      %2257 = vmatprep.subr.mxu0 0.0
      %2258 = vmatpush1.msra.mxu0 0.0
      %2259 = vmatprep.subr.mxu0 0.0
      %2260 = vmatpush1.msra.mxu0 0.0
      %2261 = vmatprep.subr.mxu0 0.0
      %2262 = vmatpush1.msra.mxu0 0.0
      %2263 = vmatprep.subr.mxu0 0.0
      %2264 = vmatpush1.msra.mxu0 0.0
      %2265 = vmatprep.subr.mxu0 0.0
      %2266 = vmatpush1.msra.mxu0 0.0
      %2267 = vmatprep.subr.mxu0 0.0
      %2268 = vmatpush1.msra.mxu0 0.0
      %2269 = vmatprep.subr.mxu0 0.0
      %2270 = vmatpush1.msra.mxu0 0.0
      %2271 = vmatprep.subr.mxu0 0.0
      %2272 = vmatpush1.msra.mxu0 0.0
      %2273 = vmatprep.mubr.f32.mxu0 0.0
      %2274 = vmatmul.mubr.f32.gmra.mrb[0].mxu0 %v2207
      %v2275 = vpop.f32.mrb[0].mxu0
      %v2276 = vadd.f32 %v2200, %v2275
      %v2277 = vpop.f32.mrb[0].mxu0
      %2278 = vdwg.mxu0
      %v2279 = vadd.f32 %v2276, %v1588
      %vm2280 = vcmp.ge.f32.partialorder %v2279, 0.0
      %v2281 = vmul.f32 %v2279, 0.01
      %v2282 = vsel %vm2280, %v2279, %v2281
      %2283 = vst [vmem:[#allocation2] sm:$0xff] %v2282
      %2284 = vst [vmem:[#allocation3] sm:$0xff] %v2026
      %2285 = vst [vmem:[#allocation3 + $0x10] sm:$0xff] %v2027
      %s2286 = sadd.s32 %s350, 1
      %v2287 = vld [vmem:[#allocation2] sm:$0xff]
      %v2288 = vld [vmem:[#allocation2 + $0x8] sm:$0xff]
      %v2289 = vld [vmem:[#allocation4] sm:$0xff]
      %v2290 = vld [vmem:[#allocation15] sm:$0xff]
      %v2291 = vld [vmem:[#allocation15 + $0x8] sm:$0xff]
      %v2292 = vld [vmem:[#allocation15 + $0x10] sm:$0xff]
      %v2293 = vld [vmem:[#allocation15 + $0x18] sm:$0xff]
      %v2294 = vld [vmem:[#allocation15 + $0x20] sm:$0xff]
      %v2295 = vld [vmem:[#allocation15 + $0x28] sm:$0xff]
      %v2296 = vld [vmem:[#allocation15 + $0x30] sm:$0xff]
      %v2297 = vld [vmem:[#allocation15 + $0x38] sm:$0xff]
      %v2298 = vld [vmem:[#allocation15 + $0x40] sm:$0xff]
      %v2299 = vld [vmem:[#allocation15 + $0x48] sm:$0xff]
      %v2300 = vld [vmem:[#allocation15 + $0x50] sm:$0xff]
      %v2301 = vld [vmem:[#allocation15 + $0x58] sm:$0xff]
      %v2302 = vld [vmem:[#allocation15 + $0x60] sm:$0xff]
      %v2303 = vld [vmem:[#allocation15 + $0x68] sm:$0xff]
      %v2304 = vld [vmem:[#allocation15 + $0x70] sm:$0xff]
      %v2305 = vld [vmem:[#allocation15 + $0x78] sm:$0xff]
      %v2306 = vld [vmem:[#allocation15 + $0x80] sm:$0xff]
      %v2307 = vld [vmem:[#allocation15 + $0x88] sm:$0xff]
      %v2308 = vld [vmem:[#allocation15 + $0x90] sm:$0xff]
      %v2309 = vld [vmem:[#allocation15 + $0x98] sm:$0xff]
      %v2310 = vld [vmem:[#allocation15 + $0xa0] sm:$0xff]
      %v2311 = vld [vmem:[#allocation15 + $0xa8] sm:$0xff]
      %v2312 = vld [vmem:[#allocation15 + $0xb0] sm:$0xff]
      %v2313 = vld [vmem:[#allocation15 + $0xb8] sm:$0xff]
      %v2314 = vld [vmem:[#allocation15 + $0xc0] sm:$0xff]
      %v2315 = vld [vmem:[#allocation15 + $0xc8] sm:$0xff]
      %v2316 = vld [vmem:[#allocation15 + $0xd0] sm:$0xff]
      %v2317 = vld [vmem:[#allocation15 + $0xd8] sm:$0xff]
      %v2318 = vld [vmem:[#allocation15 + $0xe0] sm:$0xff]
      %v2319 = vld [vmem:[#allocation15 + $0xe8] sm:$0xff]
      %v2320 = vld [vmem:[#allocation15 + $0xf0] sm:$0xff]
      %v2321 = vld [vmem:[#allocation15 + $0xf8] sm:$0xff]
      %v2322 = vld [vmem:[#allocation15 + $0x100] sm:$0xff]
      %v2323 = vld [vmem:[#allocation15 + $0x108] sm:$0xff]
      %v2324 = vld [vmem:[#allocation15 + $0x110] sm:$0xff]
      %v2325 = vld [vmem:[#allocation15 + $0x118] sm:$0xff]
      %v2326 = vld [vmem:[#allocation15 + $0x120] sm:$0xff]
      %v2327 = vld [vmem:[#allocation15 + $0x128] sm:$0xff]
      %v2328 = vld [vmem:[#allocation15 + $0x130] sm:$0xff]
      %v2329 = vld [vmem:[#allocation15 + $0x138] sm:$0xff]
      %v2330 = vld [vmem:[#allocation15 + $0x140] sm:$0xff]
      %v2331 = vld [vmem:[#allocation15 + $0x148] sm:$0xff]
      %v2332 = vld [vmem:[#allocation15 + $0x150] sm:$0xff]
      %v2333 = vld [vmem:[#allocation15 + $0x158] sm:$0xff]
      %v2334 = vld [vmem:[#allocation15 + $0x160] sm:$0xff]
      %v2335 = vld [vmem:[#allocation15 + $0x168] sm:$0xff]
      %v2336 = vld [vmem:[#allocation15 + $0x170] sm:$0xff]
      %v2337 = vld [vmem:[#allocation15 + $0x178] sm:$0xff]
      %v2338 = vld [vmem:[#allocation15 + $0x180] sm:$0xff]
      %v2339 = vld [vmem:[#allocation15 + $0x188] sm:$0xff]
      %v2340 = vld [vmem:[#allocation15 + $0x190] sm:$0xff]
      %v2341 = vld [vmem:[#allocation15 + $0x198] sm:$0xff]
      %v2342 = vld [vmem:[#allocation15 + $0x1a0] sm:$0xff]
      %v2343 = vld [vmem:[#allocation15 + $0x1a8] sm:$0xff]
      %v2344 = vld [vmem:[#allocation15 + $0x1b0] sm:$0xff]
      %v2345 = vld [vmem:[#allocation15 + $0x1b8] sm:$0xff]
      %v2346 = vld [vmem:[#allocation15 + $0x1c0] sm:$0xff]
      %v2347 = vld [vmem:[#allocation15 + $0x1c8] sm:$0xff]
      %v2348 = vld [vmem:[#allocation15 + $0x1d0] sm:$0xff]
      %v2349 = vld [vmem:[#allocation15 + $0x1d8] sm:$0xff]
      %v2350 = vld [vmem:[#allocation15 + $0x1e0] sm:$0xff]
      %v2351 = vld [vmem:[#allocation15 + $0x1e8] sm:$0xff]
      %v2352 = vld [vmem:[#allocation15 + $0x1f0] sm:$0xff]
      %v2353 = vld [vmem:[#allocation15 + $0x1f8] sm:$0xff]
      %v2354 = vld [vmem:[%s8] sm:$0xff]
      %v2355 = vld [vmem:[%s8 + $0x8] sm:$0xff]
      %v2356 = vld [vmem:[%s8 + $0x10] sm:$0xff]
      %v2357 = vld [vmem:[%s8 + $0x18] sm:$0xff]
      %v2358 = vpack.c.bf16 %v2287, %v2287
      %v2359 = vpack.c.bf16 %v2288, %v2288
      %v2424 = vunpack.c.l.b16 %v2290
      %v2425 = vunpack.c.h.b16 %v2290
      %v2426 = vunpack.c.l.b16 %v2291
      %v2427 = vunpack.c.h.b16 %v2291
      %v2428 = vunpack.c.l.b16 %v2292
      %v2429 = vunpack.c.h.b16 %v2292
      %v2430 = vunpack.c.l.b16 %v2293
      %v2431 = vunpack.c.h.b16 %v2293
      %v2432 = vunpack.c.l.b16 %v2294
      %v2433 = vunpack.c.h.b16 %v2294
      %v2434 = vunpack.c.l.b16 %v2295
      %v2435 = vunpack.c.h.b16 %v2295
      %v2436 = vunpack.c.l.b16 %v2296
      %v2437 = vunpack.c.h.b16 %v2296
      %v2438 = vunpack.c.l.b16 %v2297
      %v2439 = vunpack.c.h.b16 %v2297
      %v2440 = vunpack.c.l.b16 %v2298
      %v2441 = vunpack.c.h.b16 %v2298
      %v2442 = vunpack.c.l.b16 %v2299
      %v2443 = vunpack.c.h.b16 %v2299
      %v2444 = vunpack.c.l.b16 %v2300
      %v2445 = vunpack.c.h.b16 %v2300
      %v2446 = vunpack.c.l.b16 %v2301
      %v2447 = vunpack.c.h.b16 %v2301
      %v2448 = vunpack.c.l.b16 %v2302
      %v2449 = vunpack.c.h.b16 %v2302
      %v2450 = vunpack.c.l.b16 %v2303
      %v2451 = vunpack.c.h.b16 %v2303
      %v2452 = vunpack.c.l.b16 %v2304
      %v2453 = vunpack.c.h.b16 %v2304
      %v2454 = vunpack.c.l.b16 %v2305
      %v2455 = vunpack.c.h.b16 %v2305
      %v2456 = vunpack.c.l.b16 %v2306
      %v2457 = vunpack.c.h.b16 %v2306
      %v2458 = vunpack.c.l.b16 %v2307
      %v2459 = vunpack.c.h.b16 %v2307
      %v2460 = vunpack.c.l.b16 %v2308
      %v2461 = vunpack.c.h.b16 %v2308
      %v2462 = vunpack.c.l.b16 %v2309
      %v2463 = vunpack.c.h.b16 %v2309
      %v2464 = vunpack.c.l.b16 %v2310
      %v2465 = vunpack.c.h.b16 %v2310
      %v2466 = vunpack.c.l.b16 %v2311
      %v2467 = vunpack.c.h.b16 %v2311
      %v2468 = vunpack.c.l.b16 %v2312
      %v2469 = vunpack.c.h.b16 %v2312
      %v2470 = vunpack.c.l.b16 %v2313
      %v2471 = vunpack.c.h.b16 %v2313
      %v2472 = vunpack.c.l.b16 %v2314
      %v2473 = vunpack.c.h.b16 %v2314
      %v2474 = vunpack.c.l.b16 %v2315
      %v2475 = vunpack.c.h.b16 %v2315
      %v2476 = vunpack.c.l.b16 %v2316
      %v2477 = vunpack.c.h.b16 %v2316
      %v2478 = vunpack.c.l.b16 %v2317
      %v2479 = vunpack.c.h.b16 %v2317
      %v2480 = vunpack.c.l.b16 %v2318
      %v2481 = vunpack.c.h.b16 %v2318
      %v2482 = vunpack.c.l.b16 %v2319
      %v2483 = vunpack.c.h.b16 %v2319
      %v2484 = vunpack.c.l.b16 %v2320
      %v2485 = vunpack.c.h.b16 %v2320
      %v2486 = vunpack.c.l.b16 %v2321
      %v2487 = vunpack.c.h.b16 %v2321
      %v2488 = vunpack.c.l.b16 %v2322
      %v2489 = vunpack.c.h.b16 %v2322
      %v2490 = vunpack.c.l.b16 %v2323
      %v2491 = vunpack.c.h.b16 %v2323
      %v2492 = vunpack.c.l.b16 %v2324
      %v2493 = vunpack.c.h.b16 %v2324
      %v2494 = vunpack.c.l.b16 %v2325
      %v2495 = vunpack.c.h.b16 %v2325
      %v2496 = vunpack.c.l.b16 %v2326
      %v2497 = vunpack.c.h.b16 %v2326
      %v2498 = vunpack.c.l.b16 %v2327
      %v2499 = vunpack.c.h.b16 %v2327
      %v2500 = vunpack.c.l.b16 %v2328
      %v2501 = vunpack.c.h.b16 %v2328
      %v2502 = vunpack.c.l.b16 %v2329
      %v2503 = vunpack.c.h.b16 %v2329
      %v2504 = vunpack.c.l.b16 %v2330
      %v2505 = vunpack.c.h.b16 %v2330
      %v2506 = vunpack.c.l.b16 %v2331
      %v2507 = vunpack.c.h.b16 %v2331
      %v2508 = vunpack.c.l.b16 %v2332
      %v2509 = vunpack.c.h.b16 %v2332
      %v2510 = vunpack.c.l.b16 %v2333
      %v2511 = vunpack.c.h.b16 %v2333
      %v2512 = vunpack.c.l.b16 %v2334
      %v2513 = vunpack.c.h.b16 %v2334
      %v2514 = vunpack.c.l.b16 %v2335
      %v2515 = vunpack.c.h.b16 %v2335
      %v2516 = vunpack.c.l.b16 %v2336
      %v2517 = vunpack.c.h.b16 %v2336
      %v2518 = vunpack.c.l.b16 %v2337
      %v2519 = vunpack.c.h.b16 %v2337
      %v2520 = vunpack.c.l.b16 %v2338
      %v2521 = vunpack.c.h.b16 %v2338
      %v2522 = vunpack.c.l.b16 %v2339
      %v2523 = vunpack.c.h.b16 %v2339
      %v2524 = vunpack.c.l.b16 %v2340
      %v2525 = vunpack.c.h.b16 %v2340
      %v2526 = vunpack.c.l.b16 %v2341
      %v2527 = vunpack.c.h.b16 %v2341
      %v2528 = vunpack.c.l.b16 %v2342
      %v2529 = vunpack.c.h.b16 %v2342
      %v2530 = vunpack.c.l.b16 %v2343
      %v2531 = vunpack.c.h.b16 %v2343
      %v2532 = vunpack.c.l.b16 %v2344
      %v2533 = vunpack.c.h.b16 %v2344
      %v2534 = vunpack.c.l.b16 %v2345
      %v2535 = vunpack.c.h.b16 %v2345
      %v2536 = vunpack.c.l.b16 %v2346
      %v2537 = vunpack.c.h.b16 %v2346
      %v2538 = vunpack.c.l.b16 %v2347
      %v2539 = vunpack.c.h.b16 %v2347
      %v2540 = vunpack.c.l.b16 %v2348
      %v2541 = vunpack.c.h.b16 %v2348
      %v2542 = vunpack.c.l.b16 %v2349
      %v2543 = vunpack.c.h.b16 %v2349
      %v2544 = vunpack.c.l.b16 %v2350
      %v2545 = vunpack.c.h.b16 %v2350
      %v2546 = vunpack.c.l.b16 %v2351
      %v2547 = vunpack.c.h.b16 %v2351
      %v2548 = vunpack.c.l.b16 %v2352
      %v2549 = vunpack.c.h.b16 %v2352
      %v2550 = vunpack.c.l.b16 %v2353
      %v2551 = vunpack.c.h.b16 %v2353
      %v2552 = vpack.c.b16 %v2428, %v2424
      %v2553 = vpack.c.b16 %v2429, %v2425
      %v2554 = vpack.c.b16 %v2430, %v2426
      %v2555 = vpack.c.b16 %v2431, %v2427
      %v2556 = vpack.c.b16 %v2436, %v2432
      %v2557 = vpack.c.b16 %v2437, %v2433
      %v2558 = vpack.c.b16 %v2438, %v2434
      %v2559 = vpack.c.b16 %v2439, %v2435
      %v2560 = vpack.c.b16 %v2444, %v2440
      %v2561 = vpack.c.b16 %v2445, %v2441
      %v2562 = vpack.c.b16 %v2446, %v2442
      %v2563 = vpack.c.b16 %v2447, %v2443
      %v2564 = vpack.c.b16 %v2452, %v2448
      %v2565 = vpack.c.b16 %v2453, %v2449
      %v2566 = vpack.c.b16 %v2454, %v2450
      %v2567 = vpack.c.b16 %v2455, %v2451
      %v2568 = vpack.c.b16 %v2460, %v2456
      %v2569 = vpack.c.b16 %v2461, %v2457
      %v2570 = vpack.c.b16 %v2462, %v2458
      %v2571 = vpack.c.b16 %v2463, %v2459
      %v2572 = vpack.c.b16 %v2468, %v2464
      %v2573 = vpack.c.b16 %v2469, %v2465
      %v2574 = vpack.c.b16 %v2470, %v2466
      %v2575 = vpack.c.b16 %v2471, %v2467
      %v2576 = vpack.c.b16 %v2476, %v2472
      %v2577 = vpack.c.b16 %v2477, %v2473
      %v2578 = vpack.c.b16 %v2478, %v2474
      %v2579 = vpack.c.b16 %v2479, %v2475
      %v2580 = vpack.c.b16 %v2484, %v2480
      %v2581 = vpack.c.b16 %v2485, %v2481
      %v2582 = vpack.c.b16 %v2486, %v2482
      %v2583 = vpack.c.b16 %v2487, %v2483
      %v2584 = vpack.c.b16 %v2492, %v2488
      %v2585 = vpack.c.b16 %v2493, %v2489
      %v2586 = vpack.c.b16 %v2494, %v2490
      %v2587 = vpack.c.b16 %v2495, %v2491
      %v2588 = vpack.c.b16 %v2500, %v2496
      %v2589 = vpack.c.b16 %v2501, %v2497
      %v2590 = vpack.c.b16 %v2502, %v2498
      %v2591 = vpack.c.b16 %v2503, %v2499
      %v2592 = vpack.c.b16 %v2508, %v2504
      %v2593 = vpack.c.b16 %v2509, %v2505
      %v2594 = vpack.c.b16 %v2510, %v2506
      %v2595 = vpack.c.b16 %v2511, %v2507
      %v2596 = vpack.c.b16 %v2516, %v2512
      %v2597 = vpack.c.b16 %v2517, %v2513
      %v2598 = vpack.c.b16 %v2518, %v2514
      %v2599 = vpack.c.b16 %v2519, %v2515
      %v2600 = vpack.c.b16 %v2524, %v2520
      %v2601 = vpack.c.b16 %v2525, %v2521
      %v2602 = vpack.c.b16 %v2526, %v2522
      %v2603 = vpack.c.b16 %v2527, %v2523
      %v2604 = vpack.c.b16 %v2532, %v2528
      %v2605 = vpack.c.b16 %v2533, %v2529
      %v2606 = vpack.c.b16 %v2534, %v2530
      %v2607 = vpack.c.b16 %v2535, %v2531
      %v2608 = vpack.c.b16 %v2540, %v2536
      %v2609 = vpack.c.b16 %v2541, %v2537
      %v2610 = vpack.c.b16 %v2542, %v2538
      %v2611 = vpack.c.b16 %v2543, %v2539
      %v2612 = vpack.c.b16 %v2548, %v2544
      %v2613 = vpack.c.b16 %v2549, %v2545
      %v2614 = vpack.c.b16 %v2550, %v2546
      %v2615 = vpack.c.b16 %v2551, %v2547
      %2680 = vmatprep.subr.bf16.mxu0 %v2553
      %2681 = vmatpush1.bf16.msra.mxu0 %v2552
      %2682 = vmatprep.subr.bf16.mxu0 %v2557
      %2683 = vmatpush1.bf16.msra.mxu0 %v2556
      %2684 = vmatprep.subr.bf16.mxu0 %v2561
      %2685 = vmatpush1.bf16.msra.mxu0 %v2560
      %2686 = vmatprep.subr.bf16.mxu0 %v2565
      %2687 = vmatpush1.bf16.msra.mxu0 %v2564
      %2688 = vmatprep.subr.bf16.mxu0 %v2569
      %2689 = vmatpush1.bf16.msra.mxu0 %v2568
      %2690 = vmatprep.subr.bf16.mxu0 %v2573
      %2691 = vmatpush1.bf16.msra.mxu0 %v2572
      %2692 = vmatprep.subr.bf16.mxu0 %v2577
      %2693 = vmatpush1.bf16.msra.mxu0 %v2576
      %2694 = vmatprep.subr.bf16.mxu0 %v2581
      %2695 = vmatpush1.bf16.msra.mxu0 %v2580
      %2696 = vmatprep.subr.bf16.mxu0 %v2585
      %2697 = vmatpush1.bf16.msra.mxu0 %v2584
      %2698 = vmatprep.subr.bf16.mxu0 %v2589
      %2699 = vmatpush1.bf16.msra.mxu0 %v2588
      %2700 = vmatprep.subr.bf16.mxu0 %v2593
      %2701 = vmatpush1.bf16.msra.mxu0 %v2592
      %2702 = vmatprep.subr.bf16.mxu0 %v2597
      %2703 = vmatpush1.bf16.msra.mxu0 %v2596
      %2704 = vmatprep.subr.bf16.mxu0 %v2601
      %2705 = vmatpush1.bf16.msra.mxu0 %v2600
      %2706 = vmatprep.subr.bf16.mxu0 %v2605
      %2707 = vmatpush1.bf16.msra.mxu0 %v2604
      %2708 = vmatprep.subr.bf16.mxu0 %v2609
      %2709 = vmatpush1.bf16.msra.mxu0 %v2608
      %2710 = vmatprep.subr.bf16.mxu0 %v2613
      %2711 = vmatpush1.bf16.msra.mxu0 %v2612
      %2712 = vmatprep.mubr.bf16.mxu0 %v2359
      %2713 = vmatmul.mubr.bf16.gmra.mrb[0].mxu0 %v2358
      %v2714 = vpop.f32.mrb[0].mxu0
      %v2715 = vadd.f32 %v2354, %v2714
      %v2716 = vpop.f32.mrb[0].mxu0
      %v2717 = vadd.f32 %v2355, %v2716
      %v2718 = vpop.f32.mrb[0].mxu0
      %v2719 = vpop.f32.mrb[0].mxu0
      %2720 = vdwg.mxu0
      %2721 = vmatprep.subr.bf16.mxu0 %v2555
      %2722 = vmatpush1.bf16.msra.mxu0 %v2554
      %2723 = vmatprep.subr.bf16.mxu0 %v2559
      %2724 = vmatpush1.bf16.msra.mxu0 %v2558
      %2725 = vmatprep.subr.bf16.mxu0 %v2563
      %2726 = vmatpush1.bf16.msra.mxu0 %v2562
      %2727 = vmatprep.subr.bf16.mxu0 %v2567
      %2728 = vmatpush1.bf16.msra.mxu0 %v2566
      %2729 = vmatprep.subr.bf16.mxu0 %v2571
      %2730 = vmatpush1.bf16.msra.mxu0 %v2570
      %2731 = vmatprep.subr.bf16.mxu0 %v2575
      %2732 = vmatpush1.bf16.msra.mxu0 %v2574
      %2733 = vmatprep.subr.bf16.mxu0 %v2579
      %2734 = vmatpush1.bf16.msra.mxu0 %v2578
      %2735 = vmatprep.subr.bf16.mxu0 %v2583
      %2736 = vmatpush1.bf16.msra.mxu0 %v2582
      %2737 = vmatprep.subr.bf16.mxu0 %v2587
      %2738 = vmatpush1.bf16.msra.mxu0 %v2586
      %2739 = vmatprep.subr.bf16.mxu0 %v2591
      %2740 = vmatpush1.bf16.msra.mxu0 %v2590
      %2741 = vmatprep.subr.bf16.mxu0 %v2595
      %2742 = vmatpush1.bf16.msra.mxu0 %v2594
      %2743 = vmatprep.subr.bf16.mxu0 %v2599
      %2744 = vmatpush1.bf16.msra.mxu0 %v2598
      %2745 = vmatprep.subr.bf16.mxu0 %v2603
      %2746 = vmatpush1.bf16.msra.mxu0 %v2602
      %2747 = vmatprep.subr.bf16.mxu0 %v2607
      %2748 = vmatpush1.bf16.msra.mxu0 %v2606
      %2749 = vmatprep.subr.bf16.mxu0 %v2611
      %2750 = vmatpush1.bf16.msra.mxu0 %v2610
      %2751 = vmatprep.subr.bf16.mxu0 %v2615
      %2752 = vmatpush1.bf16.msra.mxu0 %v2614
      %2753 = vmatprep.mubr.bf16.mxu0 %v2359
      %2754 = vmatmul.mubr.bf16.gmra.mrb[0].mxu0 %v2358
      %v2755 = vpop.f32.mrb[0].mxu0
      %v2756 = vadd.f32 %v2356, %v2755
      %v2757 = vpop.f32.mrb[0].mxu0
      %v2758 = vadd.f32 %v2357, %v2757
      %v2759 = vpop.f32.mrb[0].mxu0
      %v2760 = vpop.f32.mrb[0].mxu0
      %2761 = vdwg.mxu0
      %v2762 = vxor.u32 %v2715, 2147483648
      %v2763 = vmul.f32 %v2762, 1.442695
      %v2764 = vpow.pop %v2763
      %v2765 = vadd.f32 %v2764, 1.0
      %v2766 = vrcp.pop %v2765
      %v2767 = vmul.f32 1.0, %v2766
      %v2768 = vxor.u32 %v2717, 2147483648
      %v2769 = vmul.f32 %v2768, 1.442695
      %v2770 = vpow.pop %v2769
      %v2771 = vadd.f32 %v2770, 1.0
      %v2772 = vrcp.pop %v2771
      %v2773 = vmul.f32 1.0, %v2772
      %v2774 = vtanh.pop %v2756
      %v2775 = vxor.u32 %v2758, 2147483648
      %v2776 = vmul.f32 %v2775, 1.442695
      %v2777 = vpow.pop %v2776
      %v2778 = vadd.f32 %v2777, 1.0
      %v2779 = vrcp.pop %v2778
      %v2780 = vmul.f32 1.0, %v2779
      %v2781 = vmul.f32 %v2773, %v2289
      %v2782 = vmul.f32 %v2767, %v2774
      %v2783 = vadd.f32 %v2781, %v2782
      %v2784 = vtanh.pop %v2783
      %v2785 = vmul.f32 %v2780, %v2784
      %v2786 = vld [vmem:[#allocation3] sm:$0xff]
      %v2787 = vld [vmem:[#allocation3 + $0x8] sm:$0xff]
      %v2788 = vld [vmem:[#allocation3 + $0x10] sm:$0xff]
      %v2789 = vld [vmem:[#allocation3 + $0x18] sm:$0xff]
      %v2790 = vld [vmem:[#allocation5] sm:$0xff]
      %v2791 = vld [vmem:[#allocation5 + $0x8] sm:$0xff]
      %v2792 = vld [vmem:[#allocation17] sm:$0xff]
      %v2793 = vld [vmem:[#allocation17 + $0x8] sm:$0xff]
      %v2794 = vld [vmem:[#allocation17 + $0x10] sm:$0xff]
      %v2795 = vld [vmem:[#allocation17 + $0x18] sm:$0xff]
      %v2796 = vld [vmem:[#allocation17 + $0x20] sm:$0xff]
      %v2797 = vld [vmem:[#allocation17 + $0x28] sm:$0xff]
      %v2798 = vld [vmem:[#allocation17 + $0x30] sm:$0xff]
      %v2799 = vld [vmem:[#allocation17 + $0x38] sm:$0xff]
      %v2800 = vld [vmem:[#allocation17 + $0x40] sm:$0xff]
      %v2801 = vld [vmem:[#allocation17 + $0x48] sm:$0xff]
      %v2802 = vld [vmem:[#allocation17 + $0x50] sm:$0xff]
      %v2803 = vld [vmem:[#allocation17 + $0x58] sm:$0xff]
      %v2804 = vld [vmem:[#allocation17 + $0x60] sm:$0xff]
      %v2805 = vld [vmem:[#allocation17 + $0x68] sm:$0xff]
      %v2806 = vld [vmem:[#allocation17 + $0x70] sm:$0xff]
      %v2807 = vld [vmem:[#allocation17 + $0x78] sm:$0xff]
      %v2808 = vld [vmem:[#allocation17 + $0x80] sm:$0xff]
      %v2809 = vld [vmem:[#allocation17 + $0x88] sm:$0xff]
      %v2810 = vld [vmem:[#allocation17 + $0x90] sm:$0xff]
      %v2811 = vld [vmem:[#allocation17 + $0x98] sm:$0xff]
      %v2812 = vld [vmem:[#allocation17 + $0xa0] sm:$0xff]
      %v2813 = vld [vmem:[#allocation17 + $0xa8] sm:$0xff]
      %v2814 = vld [vmem:[#allocation17 + $0xb0] sm:$0xff]
      %v2815 = vld [vmem:[#allocation17 + $0xb8] sm:$0xff]
      %v2816 = vld [vmem:[#allocation17 + $0xc0] sm:$0xff]
      %v2817 = vld [vmem:[#allocation17 + $0xc8] sm:$0xff]
      %v2818 = vld [vmem:[#allocation17 + $0xd0] sm:$0xff]
      %v2819 = vld [vmem:[#allocation17 + $0xd8] sm:$0xff]
      %v2820 = vld [vmem:[#allocation17 + $0xe0] sm:$0xff]
      %v2821 = vld [vmem:[#allocation17 + $0xe8] sm:$0xff]
      %v2822 = vld [vmem:[#allocation17 + $0xf0] sm:$0xff]
      %v2823 = vld [vmem:[#allocation17 + $0xf8] sm:$0xff]
      %v2824 = vld [vmem:[#allocation17 + $0x100] sm:$0xff]
      %v2825 = vld [vmem:[#allocation17 + $0x108] sm:$0xff]
      %v2826 = vld [vmem:[#allocation17 + $0x110] sm:$0xff]
      %v2827 = vld [vmem:[#allocation17 + $0x118] sm:$0xff]
      %v2828 = vld [vmem:[#allocation17 + $0x120] sm:$0xff]
      %v2829 = vld [vmem:[#allocation17 + $0x128] sm:$0xff]
      %v2830 = vld [vmem:[#allocation17 + $0x130] sm:$0xff]
      %v2831 = vld [vmem:[#allocation17 + $0x138] sm:$0xff]
      %v2832 = vld [vmem:[#allocation17 + $0x140] sm:$0xff]
      %v2833 = vld [vmem:[#allocation17 + $0x148] sm:$0xff]
      %v2834 = vld [vmem:[#allocation17 + $0x150] sm:$0xff]
      %v2835 = vld [vmem:[#allocation17 + $0x158] sm:$0xff]
      %v2836 = vld [vmem:[#allocation17 + $0x160] sm:$0xff]
      %v2837 = vld [vmem:[#allocation17 + $0x168] sm:$0xff]
      %v2838 = vld [vmem:[#allocation17 + $0x170] sm:$0xff]
      %v2839 = vld [vmem:[#allocation17 + $0x178] sm:$0xff]
      %v2840 = vld [vmem:[#allocation17 + $0x180] sm:$0xff]
      %v2841 = vld [vmem:[#allocation17 + $0x188] sm:$0xff]
      %v2842 = vld [vmem:[#allocation17 + $0x190] sm:$0xff]
      %v2843 = vld [vmem:[#allocation17 + $0x198] sm:$0xff]
      %v2844 = vld [vmem:[#allocation17 + $0x1a0] sm:$0xff]
      %v2845 = vld [vmem:[#allocation17 + $0x1a8] sm:$0xff]
      %v2846 = vld [vmem:[#allocation17 + $0x1b0] sm:$0xff]
      %v2847 = vld [vmem:[#allocation17 + $0x1b8] sm:$0xff]
      %v2848 = vld [vmem:[#allocation17 + $0x1c0] sm:$0xff]
      %v2849 = vld [vmem:[#allocation17 + $0x1c8] sm:$0xff]
      %v2850 = vld [vmem:[#allocation17 + $0x1d0] sm:$0xff]
      %v2851 = vld [vmem:[#allocation17 + $0x1d8] sm:$0xff]
      %v2852 = vld [vmem:[#allocation17 + $0x1e0] sm:$0xff]
      %v2853 = vld [vmem:[#allocation17 + $0x1e8] sm:$0xff]
      %v2854 = vld [vmem:[#allocation17 + $0x1f0] sm:$0xff]
      %v2855 = vld [vmem:[#allocation17 + $0x1f8] sm:$0xff]
      %v2856 = vld [vmem:[%s10] sm:$0xff]
      %v2857 = vld [vmem:[%s10 + $0x8] sm:$0xff]
      %v2858 = vld [vmem:[%s10 + $0x10] sm:$0xff]
      %v2859 = vld [vmem:[%s10 + $0x18] sm:$0xff]
      %v2860 = vld [vmem:[%s10 + $0x20] sm:$0xff]
      %v2861 = vld [vmem:[%s10 + $0x28] sm:$0xff]
      %v2862 = vld [vmem:[%s10 + $0x30] sm:$0xff]
      %v2863 = vld [vmem:[%s10 + $0x38] sm:$0xff]
      %v2864 = vpack.c.bf16 %v2788, %v2786
      %v2865 = vpack.c.bf16 %v2789, %v2787
      %v2930 = vunpack.c.l.b16 %v2792
      %v2931 = vunpack.c.h.b16 %v2792
      %v2932 = vunpack.c.l.b16 %v2793
      %v2933 = vunpack.c.h.b16 %v2793
      %v2934 = vunpack.c.l.b16 %v2794
      %v2935 = vunpack.c.h.b16 %v2794
      %v2936 = vunpack.c.l.b16 %v2795
      %v2937 = vunpack.c.h.b16 %v2795
      %v2938 = vunpack.c.l.b16 %v2796
      %v2939 = vunpack.c.h.b16 %v2796
      %v2940 = vunpack.c.l.b16 %v2797
      %v2941 = vunpack.c.h.b16 %v2797
      %v2942 = vunpack.c.l.b16 %v2798
      %v2943 = vunpack.c.h.b16 %v2798
      %v2944 = vunpack.c.l.b16 %v2799
      %v2945 = vunpack.c.h.b16 %v2799
      %v2946 = vunpack.c.l.b16 %v2800
      %v2947 = vunpack.c.h.b16 %v2800
      %v2948 = vunpack.c.l.b16 %v2801
      %v2949 = vunpack.c.h.b16 %v2801
      %v2950 = vunpack.c.l.b16 %v2802
      %v2951 = vunpack.c.h.b16 %v2802
      %v2952 = vunpack.c.l.b16 %v2803
      %v2953 = vunpack.c.h.b16 %v2803
      %v2954 = vunpack.c.l.b16 %v2804
      %v2955 = vunpack.c.h.b16 %v2804
      %v2956 = vunpack.c.l.b16 %v2805
      %v2957 = vunpack.c.h.b16 %v2805
      %v2958 = vunpack.c.l.b16 %v2806
      %v2959 = vunpack.c.h.b16 %v2806
      %v2960 = vunpack.c.l.b16 %v2807
      %v2961 = vunpack.c.h.b16 %v2807
      %v2962 = vunpack.c.l.b16 %v2808
      %v2963 = vunpack.c.h.b16 %v2808
      %v2964 = vunpack.c.l.b16 %v2809
      %v2965 = vunpack.c.h.b16 %v2809
      %v2966 = vunpack.c.l.b16 %v2810
      %v2967 = vunpack.c.h.b16 %v2810
      %v2968 = vunpack.c.l.b16 %v2811
      %v2969 = vunpack.c.h.b16 %v2811
      %v2970 = vunpack.c.l.b16 %v2812
      %v2971 = vunpack.c.h.b16 %v2812
      %v2972 = vunpack.c.l.b16 %v2813
      %v2973 = vunpack.c.h.b16 %v2813
      %v2974 = vunpack.c.l.b16 %v2814
      %v2975 = vunpack.c.h.b16 %v2814
      %v2976 = vunpack.c.l.b16 %v2815
      %v2977 = vunpack.c.h.b16 %v2815
      %v2978 = vunpack.c.l.b16 %v2816
      %v2979 = vunpack.c.h.b16 %v2816
      %v2980 = vunpack.c.l.b16 %v2817
      %v2981 = vunpack.c.h.b16 %v2817
      %v2982 = vunpack.c.l.b16 %v2818
      %v2983 = vunpack.c.h.b16 %v2818
      %v2984 = vunpack.c.l.b16 %v2819
      %v2985 = vunpack.c.h.b16 %v2819
      %v2986 = vunpack.c.l.b16 %v2820
      %v2987 = vunpack.c.h.b16 %v2820
      %v2988 = vunpack.c.l.b16 %v2821
      %v2989 = vunpack.c.h.b16 %v2821
      %v2990 = vunpack.c.l.b16 %v2822
      %v2991 = vunpack.c.h.b16 %v2822
      %v2992 = vunpack.c.l.b16 %v2823
      %v2993 = vunpack.c.h.b16 %v2823
      %v2994 = vunpack.c.l.b16 %v2824
      %v2995 = vunpack.c.h.b16 %v2824
      %v2996 = vunpack.c.l.b16 %v2825
      %v2997 = vunpack.c.h.b16 %v2825
      %v2998 = vunpack.c.l.b16 %v2826
      %v2999 = vunpack.c.h.b16 %v2826
      %v3000 = vunpack.c.l.b16 %v2827
      %v3001 = vunpack.c.h.b16 %v2827
      %v3002 = vunpack.c.l.b16 %v2828
      %v3003 = vunpack.c.h.b16 %v2828
      %v3004 = vunpack.c.l.b16 %v2829
      %v3005 = vunpack.c.h.b16 %v2829
      %v3006 = vunpack.c.l.b16 %v2830
      %v3007 = vunpack.c.h.b16 %v2830
      %v3008 = vunpack.c.l.b16 %v2831
      %v3009 = vunpack.c.h.b16 %v2831
      %v3010 = vunpack.c.l.b16 %v2832
      %v3011 = vunpack.c.h.b16 %v2832
      %v3012 = vunpack.c.l.b16 %v2833
      %v3013 = vunpack.c.h.b16 %v2833
      %v3014 = vunpack.c.l.b16 %v2834
      %v3015 = vunpack.c.h.b16 %v2834
      %v3016 = vunpack.c.l.b16 %v2835
      %v3017 = vunpack.c.h.b16 %v2835
      %v3018 = vunpack.c.l.b16 %v2836
      %v3019 = vunpack.c.h.b16 %v2836
      %v3020 = vunpack.c.l.b16 %v2837
      %v3021 = vunpack.c.h.b16 %v2837
      %v3022 = vunpack.c.l.b16 %v2838
      %v3023 = vunpack.c.h.b16 %v2838
      %v3024 = vunpack.c.l.b16 %v2839
      %v3025 = vunpack.c.h.b16 %v2839
      %v3026 = vunpack.c.l.b16 %v2840
      %v3027 = vunpack.c.h.b16 %v2840
      %v3028 = vunpack.c.l.b16 %v2841
      %v3029 = vunpack.c.h.b16 %v2841
      %v3030 = vunpack.c.l.b16 %v2842
      %v3031 = vunpack.c.h.b16 %v2842
      %v3032 = vunpack.c.l.b16 %v2843
      %v3033 = vunpack.c.h.b16 %v2843
      %v3034 = vunpack.c.l.b16 %v2844
      %v3035 = vunpack.c.h.b16 %v2844
      %v3036 = vunpack.c.l.b16 %v2845
      %v3037 = vunpack.c.h.b16 %v2845
      %v3038 = vunpack.c.l.b16 %v2846
      %v3039 = vunpack.c.h.b16 %v2846
      %v3040 = vunpack.c.l.b16 %v2847
      %v3041 = vunpack.c.h.b16 %v2847
      %v3042 = vunpack.c.l.b16 %v2848
      %v3043 = vunpack.c.h.b16 %v2848
      %v3044 = vunpack.c.l.b16 %v2849
      %v3045 = vunpack.c.h.b16 %v2849
      %v3046 = vunpack.c.l.b16 %v2850
      %v3047 = vunpack.c.h.b16 %v2850
      %v3048 = vunpack.c.l.b16 %v2851
      %v3049 = vunpack.c.h.b16 %v2851
      %v3050 = vunpack.c.l.b16 %v2852
      %v3051 = vunpack.c.h.b16 %v2852
      %v3052 = vunpack.c.l.b16 %v2853
      %v3053 = vunpack.c.h.b16 %v2853
      %v3054 = vunpack.c.l.b16 %v2854
      %v3055 = vunpack.c.h.b16 %v2854
      %v3056 = vunpack.c.l.b16 %v2855
      %v3057 = vunpack.c.h.b16 %v2855
      %v3058 = vpack.c.b16 %v2934, %v2930
      %v3059 = vpack.c.b16 %v2935, %v2931
      %v3060 = vpack.c.b16 %v2936, %v2932
      %v3061 = vpack.c.b16 %v2937, %v2933
      %v3062 = vpack.c.b16 %v2942, %v2938
      %v3063 = vpack.c.b16 %v2943, %v2939
      %v3064 = vpack.c.b16 %v2944, %v2940
      %v3065 = vpack.c.b16 %v2945, %v2941
      %v3066 = vpack.c.b16 %v2950, %v2946
      %v3067 = vpack.c.b16 %v2951, %v2947
      %v3068 = vpack.c.b16 %v2952, %v2948
      %v3069 = vpack.c.b16 %v2953, %v2949
      %v3070 = vpack.c.b16 %v2958, %v2954
      %v3071 = vpack.c.b16 %v2959, %v2955
      %v3072 = vpack.c.b16 %v2960, %v2956
      %v3073 = vpack.c.b16 %v2961, %v2957
      %v3074 = vpack.c.b16 %v2966, %v2962
      %v3075 = vpack.c.b16 %v2967, %v2963
      %v3076 = vpack.c.b16 %v2968, %v2964
      %v3077 = vpack.c.b16 %v2969, %v2965
      %v3078 = vpack.c.b16 %v2974, %v2970
      %v3079 = vpack.c.b16 %v2975, %v2971
      %v3080 = vpack.c.b16 %v2976, %v2972
      %v3081 = vpack.c.b16 %v2977, %v2973
      %v3082 = vpack.c.b16 %v2982, %v2978
      %v3083 = vpack.c.b16 %v2983, %v2979
      %v3084 = vpack.c.b16 %v2984, %v2980
      %v3085 = vpack.c.b16 %v2985, %v2981
      %v3086 = vpack.c.b16 %v2990, %v2986
      %v3087 = vpack.c.b16 %v2991, %v2987
      %v3088 = vpack.c.b16 %v2992, %v2988
      %v3089 = vpack.c.b16 %v2993, %v2989
      %v3090 = vpack.c.b16 %v2998, %v2994
      %v3091 = vpack.c.b16 %v2999, %v2995
      %v3092 = vpack.c.b16 %v3000, %v2996
      %v3093 = vpack.c.b16 %v3001, %v2997
      %v3094 = vpack.c.b16 %v3006, %v3002
      %v3095 = vpack.c.b16 %v3007, %v3003
      %v3096 = vpack.c.b16 %v3008, %v3004
      %v3097 = vpack.c.b16 %v3009, %v3005
      %v3098 = vpack.c.b16 %v3014, %v3010
      %v3099 = vpack.c.b16 %v3015, %v3011
      %v3100 = vpack.c.b16 %v3016, %v3012
      %v3101 = vpack.c.b16 %v3017, %v3013
      %v3102 = vpack.c.b16 %v3022, %v3018
      %v3103 = vpack.c.b16 %v3023, %v3019
      %v3104 = vpack.c.b16 %v3024, %v3020
      %v3105 = vpack.c.b16 %v3025, %v3021
      %v3106 = vpack.c.b16 %v3030, %v3026
      %v3107 = vpack.c.b16 %v3031, %v3027
      %v3108 = vpack.c.b16 %v3032, %v3028
      %v3109 = vpack.c.b16 %v3033, %v3029
      %v3110 = vpack.c.b16 %v3038, %v3034
      %v3111 = vpack.c.b16 %v3039, %v3035
      %v3112 = vpack.c.b16 %v3040, %v3036
      %v3113 = vpack.c.b16 %v3041, %v3037
      %v3114 = vpack.c.b16 %v3046, %v3042
      %v3115 = vpack.c.b16 %v3047, %v3043
      %v3116 = vpack.c.b16 %v3048, %v3044
      %v3117 = vpack.c.b16 %v3049, %v3045
      %v3118 = vpack.c.b16 %v3054, %v3050
      %v3119 = vpack.c.b16 %v3055, %v3051
      %v3120 = vpack.c.b16 %v3056, %v3052
      %v3121 = vpack.c.b16 %v3057, %v3053
      %3186 = vmatprep.subr.bf16.mxu0 %v3059
      %3187 = vmatpush1.bf16.msra.mxu0 %v3058
      %3188 = vmatprep.subr.bf16.mxu0 %v3063
      %3189 = vmatpush1.bf16.msra.mxu0 %v3062
      %3190 = vmatprep.subr.bf16.mxu0 %v3067
      %3191 = vmatpush1.bf16.msra.mxu0 %v3066
      %3192 = vmatprep.subr.bf16.mxu0 %v3071
      %3193 = vmatpush1.bf16.msra.mxu0 %v3070
      %3194 = vmatprep.subr.bf16.mxu0 %v3075
      %3195 = vmatpush1.bf16.msra.mxu0 %v3074
      %3196 = vmatprep.subr.bf16.mxu0 %v3079
      %3197 = vmatpush1.bf16.msra.mxu0 %v3078
      %3198 = vmatprep.subr.bf16.mxu0 %v3083
      %3199 = vmatpush1.bf16.msra.mxu0 %v3082
      %3200 = vmatprep.subr.bf16.mxu0 %v3087
      %3201 = vmatpush1.bf16.msra.mxu0 %v3086
      %3202 = vmatprep.subr.bf16.mxu0 %v3091
      %3203 = vmatpush1.bf16.msra.mxu0 %v3090
      %3204 = vmatprep.subr.bf16.mxu0 %v3095
      %3205 = vmatpush1.bf16.msra.mxu0 %v3094
      %3206 = vmatprep.subr.bf16.mxu0 %v3099
      %3207 = vmatpush1.bf16.msra.mxu0 %v3098
      %3208 = vmatprep.subr.bf16.mxu0 %v3103
      %3209 = vmatpush1.bf16.msra.mxu0 %v3102
      %3210 = vmatprep.subr.bf16.mxu0 %v3107
      %3211 = vmatpush1.bf16.msra.mxu0 %v3106
      %3212 = vmatprep.subr.bf16.mxu0 %v3111
      %3213 = vmatpush1.bf16.msra.mxu0 %v3110
      %3214 = vmatprep.subr.bf16.mxu0 %v3115
      %3215 = vmatpush1.bf16.msra.mxu0 %v3114
      %3216 = vmatprep.subr.bf16.mxu0 %v3119
      %3217 = vmatpush1.bf16.msra.mxu0 %v3118
      %3218 = vmatprep.mubr.bf16.mxu0 %v2865
      %3219 = vmatmul.mubr.bf16.gmra.mrb[0].mxu0 %v2864
      %v3220 = vpop.f32.mrb[0].mxu0
      %v3221 = vadd.f32 %v2856, %v3220
      %v3222 = vpop.f32.mrb[0].mxu0
      %v3223 = vadd.f32 %v2857, %v3222
      %v3224 = vpop.f32.mrb[0].mxu0
      %v3225 = vadd.f32 %v2860, %v3224
      %v3226 = vpop.f32.mrb[0].mxu0
      %v3227 = vadd.f32 %v2861, %v3226
      %3228 = vdwg.mxu0
      %3229 = vmatprep.subr.bf16.mxu0 %v3061
      %3230 = vmatpush1.bf16.msra.mxu0 %v3060
      %3231 = vmatprep.subr.bf16.mxu0 %v3065
      %3232 = vmatpush1.bf16.msra.mxu0 %v3064
      %3233 = vmatprep.subr.bf16.mxu0 %v3069
      %3234 = vmatpush1.bf16.msra.mxu0 %v3068
      %3235 = vmatprep.subr.bf16.mxu0 %v3073
      %3236 = vmatpush1.bf16.msra.mxu0 %v3072
      %3237 = vmatprep.subr.bf16.mxu0 %v3077
      %3238 = vmatpush1.bf16.msra.mxu0 %v3076
      %3239 = vmatprep.subr.bf16.mxu0 %v3081
      %3240 = vmatpush1.bf16.msra.mxu0 %v3080
      %3241 = vmatprep.subr.bf16.mxu0 %v3085
      %3242 = vmatpush1.bf16.msra.mxu0 %v3084
      %3243 = vmatprep.subr.bf16.mxu0 %v3089
      %3244 = vmatpush1.bf16.msra.mxu0 %v3088
      %3245 = vmatprep.subr.bf16.mxu0 %v3093
      %3246 = vmatpush1.bf16.msra.mxu0 %v3092
      %3247 = vmatprep.subr.bf16.mxu0 %v3097
      %3248 = vmatpush1.bf16.msra.mxu0 %v3096
      %3249 = vmatprep.subr.bf16.mxu0 %v3101
      %3250 = vmatpush1.bf16.msra.mxu0 %v3100
      %3251 = vmatprep.subr.bf16.mxu0 %v3105
      %3252 = vmatpush1.bf16.msra.mxu0 %v3104
      %3253 = vmatprep.subr.bf16.mxu0 %v3109
      %3254 = vmatpush1.bf16.msra.mxu0 %v3108
      %3255 = vmatprep.subr.bf16.mxu0 %v3113
      %3256 = vmatpush1.bf16.msra.mxu0 %v3112
      %3257 = vmatprep.subr.bf16.mxu0 %v3117
      %3258 = vmatpush1.bf16.msra.mxu0 %v3116
      %3259 = vmatprep.subr.bf16.mxu0 %v3121
      %3260 = vmatpush1.bf16.msra.mxu0 %v3120
      %3261 = vmatprep.mubr.bf16.mxu0 %v2865
      %3262 = vmatmul.mubr.bf16.gmra.mrb[0].mxu0 %v2864
      %v3263 = vpop.f32.mrb[0].mxu0
      %v3264 = vadd.f32 %v2858, %v3263
      %v3265 = vpop.f32.mrb[0].mxu0
      %v3266 = vadd.f32 %v2859, %v3265
      %v3267 = vpop.f32.mrb[0].mxu0
      %v3268 = vadd.f32 %v2862, %v3267
      %v3269 = vpop.f32.mrb[0].mxu0
      %v3270 = vadd.f32 %v2863, %v3269
      %3271 = vdwg.mxu0
      %v3272 = vxor.u32 %v3221, 2147483648
      %v3273 = vxor.u32 %v3225, 2147483648
      %v3274 = vmul.f32 %v3272, 1.442695
      %v3275 = vpow.pop %v3274
      %v3276 = vmul.f32 %v3273, 1.442695
      %v3277 = vpow.pop %v3276
      %v3278 = vadd.f32 %v3275, 1.0
      %v3279 = vadd.f32 %v3277, 1.0
      %v3280 = vrcp.pop %v3278
      %v3281 = vmul.f32 1.0, %v3280
      %v3282 = vrcp.pop %v3279
      %v3283 = vmul.f32 1.0, %v3282
      %v3284 = vxor.u32 %v3223, 2147483648
      %v3285 = vxor.u32 %v3227, 2147483648
      %v3286 = vmul.f32 %v3284, 1.442695
      %v3287 = vpow.pop %v3286
      %v3288 = vmul.f32 %v3285, 1.442695
      %v3289 = vpow.pop %v3288
      %v3290 = vadd.f32 %v3287, 1.0
      %v3291 = vadd.f32 %v3289, 1.0
      %v3292 = vrcp.pop %v3290
      %v3293 = vmul.f32 1.0, %v3292
      %v3294 = vrcp.pop %v3291
      %v3295 = vmul.f32 1.0, %v3294
      %v3296 = vtanh.pop %v3264
      %v3297 = vtanh.pop %v3268
      %v3298 = vxor.u32 %v3266, 2147483648
      %v3299 = vxor.u32 %v3270, 2147483648
      %v3300 = vmul.f32 %v3298, 1.442695
      %v3301 = vpow.pop %v3300
      %v3302 = vmul.f32 %v3299, 1.442695
      %v3303 = vpow.pop %v3302
      %v3304 = vadd.f32 %v3301, 1.0
      %v3305 = vadd.f32 %v3303, 1.0
      %v3306 = vrcp.pop %v3304
      %v3307 = vmul.f32 1.0, %v3306
      %v3308 = vrcp.pop %v3305
      %v3309 = vmul.f32 1.0, %v3308
      %v3310 = vmul.f32 %v3293, %v2790
      %v3311 = vmul.f32 %v3295, %v2791
      %v3312 = vmul.f32 %v3281, %v3296
      %v3313 = vmul.f32 %v3283, %v3297
      %v3314 = vadd.f32 %v3310, %v3312
      %v3315 = vadd.f32 %v3311, %v3313
      %v3316 = vtanh.pop %v3314
      %v3317 = vtanh.pop %v3315
      %v3318 = vmul.f32 %v3307, %v3316
      %v3319 = vmul.f32 %v3309, %v3317
      %3320 = vst [vmem:[#allocation4] sm:$0xff] %v2783
      %3321 = vst [vmem:[#allocation5] sm:$0xff] %v3314
      %3322 = vst [vmem:[#allocation5 + $0x8] sm:$0xff] %v3315
      %3323 = vst [vmem:[#allocation2 + $0x8] sm:$0xff] %v2785
      %3324 = vst [vmem:[#allocation3 + $0x8] sm:$0xff] %v3318
      %3325 = vst [vmem:[#allocation3 + $0x18] sm:$0xff] %v3319
      %v3326 = vld [vmem:[#allocation6] sm:$0xff]
      %v3327 = vpack.c.bf16 %v2785, %v2785
      %s3328 = smul.u32 %s2286, 16
      %s3329 = smul.addr %s3328, 4
      %s3330 = scalar_lea.vmem [#allocation26], %s3329
      %v3331 = vld [vmem:[%s3330] sm:$0xf]
      %v3332 = vld [vmem:[%s3330 + $0x4] sm:$0xf]
      %v3333 = vld [vmem:[%s3330 + $0x8] sm:$0xf]
      %v3334 = vld [vmem:[%s3330 + $0xc] sm:$0xf]
      %v3335 = vld [vmem:[%s3330 + $0x10] sm:$0xf]
      %v3336 = vld [vmem:[%s3330 + $0x14] sm:$0xf]
      %v3337 = vld [vmem:[%s3330 + $0x18] sm:$0xf]
      %v3338 = vld [vmem:[%s3330 + $0x1c] sm:$0xf]
      %v3339 = vld [vmem:[%s3330 + $0x20] sm:$0xf]
      %v3340 = vld [vmem:[%s3330 + $0x24] sm:$0xf]
      %v3341 = vld [vmem:[%s3330 + $0x28] sm:$0xf]
      %v3342 = vld [vmem:[%s3330 + $0x2c] sm:$0xf]
      %v3343 = vld [vmem:[%s3330 + $0x30] sm:$0xf]
      %v3344 = vld [vmem:[%s3330 + $0x34] sm:$0xf]
      %v3345 = vld [vmem:[%s3330 + $0x38] sm:$0xf]
      %v3346 = vld [vmem:[%s3330 + $0x3c] sm:$0xf]
      %v3363 = vunpack.c.l.b16 %v3331
      %v3364 = vunpack.c.l.b16 %v3332
      %v3365 = vunpack.c.l.b16 %v3333
      %v3366 = vunpack.c.l.b16 %v3334
      %v3367 = vunpack.c.l.b16 %v3335
      %v3368 = vunpack.c.l.b16 %v3336
      %v3369 = vunpack.c.l.b16 %v3337
      %v3370 = vunpack.c.l.b16 %v3338
      %v3371 = vunpack.c.l.b16 %v3339
      %v3372 = vunpack.c.l.b16 %v3340
      %v3373 = vunpack.c.l.b16 %v3341
      %v3374 = vunpack.c.l.b16 %v3342
      %v3375 = vunpack.c.l.b16 %v3343
      %v3376 = vunpack.c.l.b16 %v3344
      %v3377 = vunpack.c.l.b16 %v3345
      %v3378 = vunpack.c.l.b16 %v3346
      %v3379 = vpack.c.b16 %v3364, %v3363
      %v3380 = vpack.c.b16 %v3366, %v3365
      %v3381 = vpack.c.b16 %v3368, %v3367
      %v3382 = vpack.c.b16 %v3370, %v3369
      %v3383 = vpack.c.b16 %v3372, %v3371
      %v3384 = vpack.c.b16 %v3374, %v3373
      %v3385 = vpack.c.b16 %v3376, %v3375
      %v3386 = vpack.c.b16 %v3378, %v3377
      %3395 = vmatprep.subr.bf16.mxu0 0
      %3396 = vmatpush1.bf16.msra.mxu0 %v3379
      %3397 = vmatprep.subr.bf16.mxu0 0
      %3398 = vmatpush1.bf16.msra.mxu0 %v3380
      %3399 = vmatprep.subr.bf16.mxu0 0
      %3400 = vmatpush1.bf16.msra.mxu0 %v3381
      %3401 = vmatprep.subr.bf16.mxu0 0
      %3402 = vmatpush1.bf16.msra.mxu0 %v3382
      %3403 = vmatprep.subr.bf16.mxu0 0
      %3404 = vmatpush1.bf16.msra.mxu0 %v3383
      %3405 = vmatprep.subr.bf16.mxu0 0
      %3406 = vmatpush1.bf16.msra.mxu0 %v3384
      %3407 = vmatprep.subr.bf16.mxu0 0
      %3408 = vmatpush1.bf16.msra.mxu0 %v3385
      %3409 = vmatprep.subr.bf16.mxu0 0
      %3410 = vmatpush1.bf16.msra.mxu0 %v3386
      %3411 = vmatprep.subr.bf16.mxu0 0
      %3412 = vmatpush1.bf16.msra.mxu0 0
      %3413 = vmatprep.subr.bf16.mxu0 0
      %3414 = vmatpush1.bf16.msra.mxu0 0
      %3415 = vmatprep.subr.bf16.mxu0 0
      %3416 = vmatpush1.bf16.msra.mxu0 0
      %3417 = vmatprep.subr.bf16.mxu0 0
      %3418 = vmatpush1.bf16.msra.mxu0 0
      %3419 = vmatprep.subr.bf16.mxu0 0
      %3420 = vmatpush1.bf16.msra.mxu0 0
      %3421 = vmatprep.subr.bf16.mxu0 0
      %3422 = vmatpush1.bf16.msra.mxu0 0
      %3423 = vmatprep.subr.bf16.mxu0 0
      %3424 = vmatpush1.bf16.msra.mxu0 0
      %3425 = vmatprep.subr.bf16.mxu0 0
      %3426 = vmatpush1.bf16.msra.mxu0 0
      %3427 = vmatprep.mubr.bf16.mxu0 0
      %3428 = vmatmul.mubr.bf16.gmra.mrb[0].mxu0 %v3327
      %v3429 = vpop.f32.mrb[0].mxu0
      %v3430 = vadd.f32 0.0, %v3429
      %v3431 = vpop.f32.mrb[0].mxu0
      %v3432 = vpop.f32.mrb[0].mxu0
      %v3433 = vpop.f32.mrb[0].mxu0
      %3434 = vdwg.mxu0
      %v3435 = vadd.f32 %v3326, %v3430
      %3436 = vst [vmem:[#allocation6] sm:$0xff] %v3435
      %v3437 = vld [vmem:[%s2] sm:$0xff]
      %v3438 = vld [vmem:[%s2 + $0x8] sm:$0xff]
      %v3439 = vld [vmem:[%s3] sm:$0xff]
      %v3440 = vld [vmem:[%s3 + $0x8] sm:$0xff]
      %v3441 = vld [vmem:[#allocation11] sm:$0xff]
      %v3442 = vld [vmem:[#allocation18] sm:$0xf]
      %v3443 = vld [vmem:[#allocation18 + $0x4] sm:$0xf]
      %v3444 = vld [vmem:[#allocation18 + $0x8] sm:$0xf]
      %v3445 = vld [vmem:[#allocation18 + $0xc] sm:$0xf]
      %v3446 = vld [vmem:[#allocation18 + $0x10] sm:$0xf]
      %v3447 = vld [vmem:[#allocation18 + $0x14] sm:$0xf]
      %v3448 = vld [vmem:[#allocation18 + $0x18] sm:$0xf]
      %v3449 = vld [vmem:[#allocation18 + $0x1c] sm:$0xf]
      %v3450 = vld [vmem:[#allocation18 + $0x20] sm:$0xf]
      %v3451 = vld [vmem:[#allocation18 + $0x24] sm:$0xf]
      %v3452 = vld [vmem:[#allocation18 + $0x28] sm:$0xf]
      %v3453 = vld [vmem:[#allocation18 + $0x2c] sm:$0xf]
      %v3454 = vld [vmem:[#allocation18 + $0x30] sm:$0xf]
      %v3455 = vld [vmem:[#allocation18 + $0x34] sm:$0xf]
      %v3456 = vld [vmem:[#allocation18 + $0x38] sm:$0xf]
      %v3457 = vld [vmem:[#allocation18 + $0x3c] sm:$0xf]
      %v3458 = vld [vmem:[#allocation20] sm:$0xf]
      %v3459 = vld [vmem:[#allocation20 + $0x4] sm:$0xf]
      %v3460 = vld [vmem:[#allocation20 + $0x8] sm:$0xf]
      %v3461 = vld [vmem:[#allocation20 + $0xc] sm:$0xf]
      %v3462 = vld [vmem:[#allocation20 + $0x10] sm:$0xf]
      %v3463 = vld [vmem:[#allocation20 + $0x14] sm:$0xf]
      %v3464 = vld [vmem:[#allocation20 + $0x18] sm:$0xf]
      %v3465 = vld [vmem:[#allocation20 + $0x1c] sm:$0xf]
      %v3466 = vld [vmem:[#allocation20 + $0x20] sm:$0xf]
      %v3467 = vld [vmem:[#allocation20 + $0x24] sm:$0xf]
      %v3468 = vld [vmem:[#allocation20 + $0x28] sm:$0xf]
      %v3469 = vld [vmem:[#allocation20 + $0x2c] sm:$0xf]
      %v3470 = vld [vmem:[#allocation20 + $0x30] sm:$0xf]
      %v3471 = vld [vmem:[#allocation20 + $0x34] sm:$0xf]
      %v3472 = vld [vmem:[#allocation20 + $0x38] sm:$0xf]
      %v3473 = vld [vmem:[#allocation20 + $0x3c] sm:$0xf]
      %v3474 = vld [vmem:[#allocation21] sm:$0xf]
      %v3475 = vld [vmem:[#allocation21 + $0x4] sm:$0xf]
      %v3476 = vld [vmem:[#allocation21 + $0x8] sm:$0xf]
      %v3477 = vld [vmem:[#allocation21 + $0xc] sm:$0xf]
      %v3478 = vld [vmem:[#allocation21 + $0x10] sm:$0xf]
      %v3479 = vld [vmem:[#allocation21 + $0x14] sm:$0xf]
      %v3480 = vld [vmem:[#allocation21 + $0x18] sm:$0xf]
      %v3481 = vld [vmem:[#allocation21 + $0x1c] sm:$0xf]
      %v3482 = vld [vmem:[#allocation21 + $0x20] sm:$0xf]
      %v3483 = vld [vmem:[#allocation21 + $0x24] sm:$0xf]
      %v3484 = vld [vmem:[#allocation21 + $0x28] sm:$0xf]
      %v3485 = vld [vmem:[#allocation21 + $0x2c] sm:$0xf]
      %v3486 = vld [vmem:[#allocation21 + $0x30] sm:$0xf]
      %v3487 = vld [vmem:[#allocation21 + $0x34] sm:$0xf]
      %v3488 = vld [vmem:[#allocation21 + $0x38] sm:$0xf]
      %v3489 = vld [vmem:[#allocation21 + $0x3c] sm:$0xf]
      %v3490 = vld [vmem:[%s14] sm:$0xff]
      %v3491 = vld [vmem:[%s14 + $0x8] sm:$0xff]
      %v3492 = vld [vmem:[#allocation23] sm:$0xf]
      %v3493 = vld [vmem:[#allocation23 + $0x4] sm:$0xf]
      %v3494 = vld [vmem:[#allocation23 + $0x8] sm:$0xf]
      %v3495 = vld [vmem:[#allocation23 + $0xc] sm:$0xf]
      %v3496 = vld [vmem:[#allocation23 + $0x10] sm:$0xf]
      %v3497 = vld [vmem:[#allocation23 + $0x14] sm:$0xf]
      %v3498 = vld [vmem:[#allocation23 + $0x18] sm:$0xf]
      %v3499 = vld [vmem:[#allocation23 + $0x1c] sm:$0xf]
      %v3500 = vld [vmem:[#allocation23 + $0x20] sm:$0xf]
      %v3501 = vld [vmem:[#allocation23 + $0x24] sm:$0xf]
      %v3502 = vld [vmem:[#allocation23 + $0x28] sm:$0xf]
      %v3503 = vld [vmem:[#allocation23 + $0x2c] sm:$0xf]
      %v3504 = vld [vmem:[#allocation23 + $0x30] sm:$0xf]
      %v3505 = vld [vmem:[#allocation23 + $0x34] sm:$0xf]
      %v3506 = vld [vmem:[#allocation23 + $0x38] sm:$0xf]
      %v3507 = vld [vmem:[#allocation23 + $0x3c] sm:$0xf]
      %v3508 = vld [vmem:[#allocation24] sm:$0xf]
      %v3509 = vld [vmem:[#allocation24 + $0x4] sm:$0xf]
      %v3510 = vld [vmem:[#allocation24 + $0x8] sm:$0xf]
      %v3511 = vld [vmem:[#allocation24 + $0xc] sm:$0xf]
      %v3512 = vld [vmem:[#allocation24 + $0x10] sm:$0xf]
      %v3513 = vld [vmem:[#allocation24 + $0x14] sm:$0xf]
      %v3514 = vld [vmem:[#allocation24 + $0x18] sm:$0xf]
      %v3515 = vld [vmem:[#allocation24 + $0x1c] sm:$0xf]
      %v3516 = vld [vmem:[#allocation24 + $0x20] sm:$0xf]
      %v3517 = vld [vmem:[#allocation24 + $0x24] sm:$0xf]
      %v3518 = vld [vmem:[#allocation24 + $0x28] sm:$0xf]
      %v3519 = vld [vmem:[#allocation24 + $0x2c] sm:$0xf]
      %v3520 = vld [vmem:[#allocation24 + $0x30] sm:$0xf]
      %v3521 = vld [vmem:[#allocation24 + $0x34] sm:$0xf]
      %v3522 = vld [vmem:[#allocation24 + $0x38] sm:$0xf]
      %v3523 = vld [vmem:[#allocation24 + $0x3c] sm:$0xf]
      %v3524 = vld [vmem:[%s17] sm:$0xff]
      %v3525 = vpack.c.bf16 %v3319, %v3318
      %v3542 = vunpack.c.l.b16 %v3442
      %v3543 = vunpack.c.l.b16 %v3443
      %v3544 = vunpack.c.l.b16 %v3444
      %v3545 = vunpack.c.l.b16 %v3445
      %v3546 = vunpack.c.l.b16 %v3446
      %v3547 = vunpack.c.l.b16 %v3447
      %v3548 = vunpack.c.l.b16 %v3448
      %v3549 = vunpack.c.l.b16 %v3449
      %v3550 = vunpack.c.l.b16 %v3450
      %v3551 = vunpack.c.l.b16 %v3451
      %v3552 = vunpack.c.l.b16 %v3452
      %v3553 = vunpack.c.l.b16 %v3453
      %v3554 = vunpack.c.l.b16 %v3454
      %v3555 = vunpack.c.l.b16 %v3455
      %v3556 = vunpack.c.l.b16 %v3456
      %v3557 = vunpack.c.l.b16 %v3457
      %v3558 = vpack.c.b16 %v3543, %v3542
      %v3559 = vpack.c.b16 %v3545, %v3544
      %v3560 = vpack.c.b16 %v3547, %v3546
      %v3561 = vpack.c.b16 %v3549, %v3548
      %v3562 = vpack.c.b16 %v3551, %v3550
      %v3563 = vpack.c.b16 %v3553, %v3552
      %v3564 = vpack.c.b16 %v3555, %v3554
      %v3565 = vpack.c.b16 %v3557, %v3556
      %3574 = vmatprep.subr.bf16.mxu0 0
      %3575 = vmatpush1.bf16.msra.mxu0 %v3558
      %3576 = vmatprep.subr.bf16.mxu0 0
      %3577 = vmatpush1.bf16.msra.mxu0 %v3559
      %3578 = vmatprep.subr.bf16.mxu0 0
      %3579 = vmatpush1.bf16.msra.mxu0 %v3560
      %3580 = vmatprep.subr.bf16.mxu0 0
      %3581 = vmatpush1.bf16.msra.mxu0 %v3561
      %3582 = vmatprep.subr.bf16.mxu0 0
      %3583 = vmatpush1.bf16.msra.mxu0 %v3562
      %3584 = vmatprep.subr.bf16.mxu0 0
      %3585 = vmatpush1.bf16.msra.mxu0 %v3563
      %3586 = vmatprep.subr.bf16.mxu0 0
      %3587 = vmatpush1.bf16.msra.mxu0 %v3564
      %3588 = vmatprep.subr.bf16.mxu0 0
      %3589 = vmatpush1.bf16.msra.mxu0 %v3565
      %3590 = vmatprep.subr.bf16.mxu0 0
      %3591 = vmatpush1.bf16.msra.mxu0 0
      %3592 = vmatprep.subr.bf16.mxu0 0
      %3593 = vmatpush1.bf16.msra.mxu0 0
      %3594 = vmatprep.subr.bf16.mxu0 0
      %3595 = vmatpush1.bf16.msra.mxu0 0
      %3596 = vmatprep.subr.bf16.mxu0 0
      %3597 = vmatpush1.bf16.msra.mxu0 0
      %3598 = vmatprep.subr.bf16.mxu0 0
      %3599 = vmatpush1.bf16.msra.mxu0 0
      %3600 = vmatprep.subr.bf16.mxu0 0
      %3601 = vmatpush1.bf16.msra.mxu0 0
      %3602 = vmatprep.subr.bf16.mxu0 0
      %3603 = vmatpush1.bf16.msra.mxu0 0
      %3604 = vmatprep.subr.bf16.mxu0 0
      %3605 = vmatpush1.bf16.msra.mxu0 0
      %3606 = vmatprep.mubr.bf16.mxu0 0
      %3607 = vmatmul.mubr.bf16.gmra.mrb[0].mxu0 %v3327
      %v3608 = vpop.f32.mrb[0].mxu0
      %v3609 = vadd.f32 0.0, %v3608
      %v3610 = vpop.f32.mrb[0].mxu0
      %v3611 = vpop.f32.mrb[0].mxu0
      %v3612 = vpop.f32.mrb[0].mxu0
      %3613 = vdwg.mxu0
      %v3630 = vunpack.c.l.b16 %v3474
      %v3631 = vunpack.c.l.b16 %v3475
      %v3632 = vunpack.c.l.b16 %v3476
      %v3633 = vunpack.c.l.b16 %v3477
      %v3634 = vunpack.c.l.b16 %v3478
      %v3635 = vunpack.c.l.b16 %v3479
      %v3636 = vunpack.c.l.b16 %v3480
      %v3637 = vunpack.c.l.b16 %v3481
      %v3638 = vunpack.c.l.b16 %v3482
      %v3639 = vunpack.c.l.b16 %v3483
      %v3640 = vunpack.c.l.b16 %v3484
      %v3641 = vunpack.c.l.b16 %v3485
      %v3642 = vunpack.c.l.b16 %v3486
      %v3643 = vunpack.c.l.b16 %v3487
      %v3644 = vunpack.c.l.b16 %v3488
      %v3645 = vunpack.c.l.b16 %v3489
      %v3646 = vpack.c.b16 %v3631, %v3630
      %v3647 = vpack.c.b16 %v3633, %v3632
      %v3648 = vpack.c.b16 %v3635, %v3634
      %v3649 = vpack.c.b16 %v3637, %v3636
      %v3650 = vpack.c.b16 %v3639, %v3638
      %v3651 = vpack.c.b16 %v3641, %v3640
      %v3652 = vpack.c.b16 %v3643, %v3642
      %v3653 = vpack.c.b16 %v3645, %v3644
      %3662 = vmatprep.subr.bf16.mxu0 0
      %3663 = vmatpush1.bf16.msra.mxu0 %v3646
      %3664 = vmatprep.subr.bf16.mxu0 0
      %3665 = vmatpush1.bf16.msra.mxu0 %v3647
      %3666 = vmatprep.subr.bf16.mxu0 0
      %3667 = vmatpush1.bf16.msra.mxu0 %v3648
      %3668 = vmatprep.subr.bf16.mxu0 0
      %3669 = vmatpush1.bf16.msra.mxu0 %v3649
      %3670 = vmatprep.subr.bf16.mxu0 0
      %3671 = vmatpush1.bf16.msra.mxu0 %v3650
      %3672 = vmatprep.subr.bf16.mxu0 0
      %3673 = vmatpush1.bf16.msra.mxu0 %v3651
      %3674 = vmatprep.subr.bf16.mxu0 0
      %3675 = vmatpush1.bf16.msra.mxu0 %v3652
      %3676 = vmatprep.subr.bf16.mxu0 0
      %3677 = vmatpush1.bf16.msra.mxu0 %v3653
      %3678 = vmatprep.subr.bf16.mxu0 0
      %3679 = vmatpush1.bf16.msra.mxu0 0
      %3680 = vmatprep.subr.bf16.mxu0 0
      %3681 = vmatpush1.bf16.msra.mxu0 0
      %3682 = vmatprep.subr.bf16.mxu0 0
      %3683 = vmatpush1.bf16.msra.mxu0 0
      %3684 = vmatprep.subr.bf16.mxu0 0
      %3685 = vmatpush1.bf16.msra.mxu0 0
      %3686 = vmatprep.subr.bf16.mxu0 0
      %3687 = vmatpush1.bf16.msra.mxu0 0
      %3688 = vmatprep.subr.bf16.mxu0 0
      %3689 = vmatpush1.bf16.msra.mxu0 0
      %3690 = vmatprep.subr.bf16.mxu0 0
      %3691 = vmatpush1.bf16.msra.mxu0 0
      %3692 = vmatprep.subr.bf16.mxu0 0
      %3693 = vmatpush1.bf16.msra.mxu0 0
      %3694 = vmatprep.mubr.bf16.mxu0 0
      %3695 = vmatmul.mubr.bf16.gmra.mrb[0].mxu0 %v3327
      %v3696 = vpop.f32.mrb[0].mxu0
      %v3697 = vadd.f32 0.0, %v3696
      %v3698 = vpop.f32.mrb[0].mxu0
      %v3699 = vpop.f32.mrb[0].mxu0
      %v3700 = vpop.f32.mrb[0].mxu0
      %3701 = vdwg.mxu0
      %v3703 = vsel %vm1766, %v3439, 0
      %v3706 = vsel %vm1766, %v3440, 0
      %3708 = vmatprep.subr.mxu0 0.0
      %3709 = vmatpush1.msra.mxu0 %v3697
      %3710 = vmatprep.subr.mxu0 0.0
      %3711 = vmatpush1.msra.mxu0 0.0
      %3712 = vmatprep.subr.mxu0 0.0
      %3713 = vmatpush1.msra.mxu0 0.0
      %3714 = vmatprep.subr.mxu0 0.0
      %3715 = vmatpush1.msra.mxu0 0.0
      %3716 = vmatprep.subr.mxu0 0.0
      %3717 = vmatpush1.msra.mxu0 0.0
      %3718 = vmatprep.subr.mxu0 0.0
      %3719 = vmatpush1.msra.mxu0 0.0
      %3720 = vmatprep.subr.mxu0 0.0
      %3721 = vmatpush1.msra.mxu0 0.0
      %3722 = vmatprep.subr.mxu0 0.0
      %3723 = vmatpush1.msra.mxu0 0.0
      %3724 = vmatprep.subr.mxu0 0.0
      %3725 = vmatpush1.msra.mxu0 0.0
      %3726 = vmatprep.subr.mxu0 0.0
      %3727 = vmatpush1.msra.mxu0 0.0
      %3728 = vmatprep.subr.mxu0 0.0
      %3729 = vmatpush1.msra.mxu0 0.0
      %3730 = vmatprep.subr.mxu0 0.0
      %3731 = vmatpush1.msra.mxu0 0.0
      %3732 = vmatprep.subr.mxu0 0.0
      %3733 = vmatpush1.msra.mxu0 0.0
      %3734 = vmatprep.subr.mxu0 0.0
      %3735 = vmatpush1.msra.mxu0 0.0
      %3736 = vmatprep.subr.mxu0 0.0
      %3737 = vmatpush1.msra.mxu0 0.0
      %3738 = vmatprep.subr.mxu0 0.0
      %3739 = vmatpush1.msra.mxu0 0.0
      %3740 = vmatprep.subr.mxu0 0.0
      %3741 = vmatpush1.msra.mxu0 0.0
      %3742 = vmatprep.subr.mxu0 0.0
      %3743 = vmatpush1.msra.mxu0 0.0
      %3744 = vmatprep.subr.mxu0 0.0
      %3745 = vmatpush1.msra.mxu0 0.0
      %3746 = vmatprep.subr.mxu0 0.0
      %3747 = vmatpush1.msra.mxu0 0.0
      %3748 = vmatprep.subr.mxu0 0.0
      %3749 = vmatpush1.msra.mxu0 0.0
      %3750 = vmatprep.subr.mxu0 0.0
      %3751 = vmatpush1.msra.mxu0 0.0
      %3752 = vmatprep.subr.mxu0 0.0
      %3753 = vmatpush1.msra.mxu0 0.0
      %3754 = vmatprep.subr.mxu0 0.0
      %3755 = vmatpush1.msra.mxu0 0.0
      %3756 = vmatprep.subr.mxu0 0.0
      %3757 = vmatpush1.msra.mxu0 0.0
      %3758 = vmatprep.subr.mxu0 0.0
      %3759 = vmatpush1.msra.mxu0 0.0
      %3760 = vmatprep.subr.mxu0 0.0
      %3761 = vmatpush1.msra.mxu0 0.0
      %3762 = vmatprep.subr.mxu0 0.0
      %3763 = vmatpush1.msra.mxu0 0.0
      %3764 = vmatprep.subr.mxu0 0.0
      %3765 = vmatpush1.msra.mxu0 0.0
      %3766 = vmatprep.subr.mxu0 0.0
      %3767 = vmatpush1.msra.mxu0 0.0
      %3768 = vmatprep.subr.mxu0 0.0
      %3769 = vmatpush1.msra.mxu0 0.0
      %3770 = vmatprep.subr.mxu0 0.0
      %3771 = vmatpush1.msra.mxu0 0.0
      %3772 = vmatprep.mubr.f32.mxu0 0.0
      %3773 = vmatmul.mubr.f32.gmra.mrb[0].mxu0 %v3703
      %v3774 = vpop.f32.mrb[0].mxu0
      %v3775 = vadd.f32 0.0, %v3774
      %v3776 = vpop.f32.mrb[0].mxu0
      %3777 = vmatprep.mubr.f32.mxu0 0.0
      %3778 = vmatmul.mubr.f32.gmra.mrb[0].mxu0 %v3706
      %v3779 = vpop.f32.mrb[0].mxu0
      %v3780 = vadd.f32 0.0, %v3779
      %v3781 = vpop.f32.mrb[0].mxu0
      %3782 = vdwg.mxu0
      %v3784 = vsel %vm1766, %v3437, 0
      %v3787 = vsel %vm1766, %v3438, 0
      %3789 = vmatprep.subr.mxu0 0.0
      %3790 = vmatpush1.msra.mxu0 %v3609
      %3791 = vmatprep.subr.mxu0 0.0
      %3792 = vmatpush1.msra.mxu0 0.0
      %3793 = vmatprep.subr.mxu0 0.0
      %3794 = vmatpush1.msra.mxu0 0.0
      %3795 = vmatprep.subr.mxu0 0.0
      %3796 = vmatpush1.msra.mxu0 0.0
      %3797 = vmatprep.subr.mxu0 0.0
      %3798 = vmatpush1.msra.mxu0 0.0
      %3799 = vmatprep.subr.mxu0 0.0
      %3800 = vmatpush1.msra.mxu0 0.0
      %3801 = vmatprep.subr.mxu0 0.0
      %3802 = vmatpush1.msra.mxu0 0.0
      %3803 = vmatprep.subr.mxu0 0.0
      %3804 = vmatpush1.msra.mxu0 0.0
      %3805 = vmatprep.subr.mxu0 0.0
      %3806 = vmatpush1.msra.mxu0 0.0
      %3807 = vmatprep.subr.mxu0 0.0
      %3808 = vmatpush1.msra.mxu0 0.0
      %3809 = vmatprep.subr.mxu0 0.0
      %3810 = vmatpush1.msra.mxu0 0.0
      %3811 = vmatprep.subr.mxu0 0.0
      %3812 = vmatpush1.msra.mxu0 0.0
      %3813 = vmatprep.subr.mxu0 0.0
      %3814 = vmatpush1.msra.mxu0 0.0
      %3815 = vmatprep.subr.mxu0 0.0
      %3816 = vmatpush1.msra.mxu0 0.0
      %3817 = vmatprep.subr.mxu0 0.0
      %3818 = vmatpush1.msra.mxu0 0.0
      %3819 = vmatprep.subr.mxu0 0.0
      %3820 = vmatpush1.msra.mxu0 0.0
      %3821 = vmatprep.subr.mxu0 0.0
      %3822 = vmatpush1.msra.mxu0 0.0
      %3823 = vmatprep.subr.mxu0 0.0
      %3824 = vmatpush1.msra.mxu0 0.0
      %3825 = vmatprep.subr.mxu0 0.0
      %3826 = vmatpush1.msra.mxu0 0.0
      %3827 = vmatprep.subr.mxu0 0.0
      %3828 = vmatpush1.msra.mxu0 0.0
      %3829 = vmatprep.subr.mxu0 0.0
      %3830 = vmatpush1.msra.mxu0 0.0
      %3831 = vmatprep.subr.mxu0 0.0
      %3832 = vmatpush1.msra.mxu0 0.0
      %3833 = vmatprep.subr.mxu0 0.0
      %3834 = vmatpush1.msra.mxu0 0.0
      %3835 = vmatprep.subr.mxu0 0.0
      %3836 = vmatpush1.msra.mxu0 0.0
      %3837 = vmatprep.subr.mxu0 0.0
      %3838 = vmatpush1.msra.mxu0 0.0
      %3839 = vmatprep.subr.mxu0 0.0
      %3840 = vmatpush1.msra.mxu0 0.0
      %3841 = vmatprep.subr.mxu0 0.0
      %3842 = vmatpush1.msra.mxu0 0.0
      %3843 = vmatprep.subr.mxu0 0.0
      %3844 = vmatpush1.msra.mxu0 0.0
      %3845 = vmatprep.subr.mxu0 0.0
      %3846 = vmatpush1.msra.mxu0 0.0
      %3847 = vmatprep.subr.mxu0 0.0
      %3848 = vmatpush1.msra.mxu0 0.0
      %3849 = vmatprep.subr.mxu0 0.0
      %3850 = vmatpush1.msra.mxu0 0.0
      %3851 = vmatprep.subr.mxu0 0.0
      %3852 = vmatpush1.msra.mxu0 0.0
      %3853 = vmatprep.mubr.f32.mxu0 0.0
      %3854 = vmatmul.mubr.f32.gmra.mrb[0].mxu0 %v3784
      %v3855 = vpop.f32.mrb[0].mxu0
      %v3856 = vadd.f32 %v3775, %v3855
      %v3857 = vpop.f32.mrb[0].mxu0
      %3858 = vmatprep.mubr.f32.mxu0 0.0
      %3859 = vmatmul.mubr.f32.gmra.mrb[0].mxu0 %v3787
      %v3860 = vpop.f32.mrb[0].mxu0
      %v3861 = vadd.f32 %v3780, %v3860
      %v3862 = vpop.f32.mrb[0].mxu0
      %3863 = vdwg.mxu0
      %v3880 = vunpack.c.l.b16 %v3458
      %v3881 = vunpack.c.l.b16 %v3459
      %v3882 = vunpack.c.l.b16 %v3460
      %v3883 = vunpack.c.l.b16 %v3461
      %v3884 = vunpack.c.l.b16 %v3462
      %v3885 = vunpack.c.l.b16 %v3463
      %v3886 = vunpack.c.l.b16 %v3464
      %v3887 = vunpack.c.l.b16 %v3465
      %v3888 = vunpack.c.l.b16 %v3466
      %v3889 = vunpack.c.l.b16 %v3467
      %v3890 = vunpack.c.l.b16 %v3468
      %v3891 = vunpack.c.l.b16 %v3469
      %v3892 = vunpack.c.l.b16 %v3470
      %v3893 = vunpack.c.l.b16 %v3471
      %v3894 = vunpack.c.l.b16 %v3472
      %v3895 = vunpack.c.l.b16 %v3473
      %v3896 = vpack.c.b16 %v3881, %v3880
      %v3897 = vpack.c.b16 %v3883, %v3882
      %v3898 = vpack.c.b16 %v3885, %v3884
      %v3899 = vpack.c.b16 %v3887, %v3886
      %v3900 = vpack.c.b16 %v3889, %v3888
      %v3901 = vpack.c.b16 %v3891, %v3890
      %v3902 = vpack.c.b16 %v3893, %v3892
      %v3903 = vpack.c.b16 %v3895, %v3894
      %3912 = vmatprep.subr.bf16.mxu0 0
      %3913 = vmatpush1.bf16.msra.mxu0 %v3896
      %3914 = vmatprep.subr.bf16.mxu0 0
      %3915 = vmatpush1.bf16.msra.mxu0 %v3897
      %3916 = vmatprep.subr.bf16.mxu0 0
      %3917 = vmatpush1.bf16.msra.mxu0 %v3898
      %3918 = vmatprep.subr.bf16.mxu0 0
      %3919 = vmatpush1.bf16.msra.mxu0 %v3899
      %3920 = vmatprep.subr.bf16.mxu0 0
      %3921 = vmatpush1.bf16.msra.mxu0 %v3900
      %3922 = vmatprep.subr.bf16.mxu0 0
      %3923 = vmatpush1.bf16.msra.mxu0 %v3901
      %3924 = vmatprep.subr.bf16.mxu0 0
      %3925 = vmatpush1.bf16.msra.mxu0 %v3902
      %3926 = vmatprep.subr.bf16.mxu0 0
      %3927 = vmatpush1.bf16.msra.mxu0 %v3903
      %3928 = vmatprep.subr.bf16.mxu0 0
      %3929 = vmatpush1.bf16.msra.mxu0 0
      %3930 = vmatprep.subr.bf16.mxu0 0
      %3931 = vmatpush1.bf16.msra.mxu0 0
      %3932 = vmatprep.subr.bf16.mxu0 0
      %3933 = vmatpush1.bf16.msra.mxu0 0
      %3934 = vmatprep.subr.bf16.mxu0 0
      %3935 = vmatpush1.bf16.msra.mxu0 0
      %3936 = vmatprep.subr.bf16.mxu0 0
      %3937 = vmatpush1.bf16.msra.mxu0 0
      %3938 = vmatprep.subr.bf16.mxu0 0
      %3939 = vmatpush1.bf16.msra.mxu0 0
      %3940 = vmatprep.subr.bf16.mxu0 0
      %3941 = vmatpush1.bf16.msra.mxu0 0
      %3942 = vmatprep.subr.bf16.mxu0 0
      %3943 = vmatpush1.bf16.msra.mxu0 0
      %3944 = vmatprep.mubr.bf16.mxu0 0
      %3945 = vmatmul.mubr.bf16.gmra.mrb[0].mxu0 %v3525
      %v3946 = vpop.f32.mrb[0].mxu0
      %v3947 = vadd.f32 0.0, %v3946
      %v3948 = vpop.f32.mrb[0].mxu0
      %v3949 = vpop.f32.mrb[0].mxu0
      %v3950 = vadd.f32 0.0, %v3949
      %v3951 = vpop.f32.mrb[0].mxu0
      %3952 = vdwg.mxu0
      %v3953 = vadd.f32 %v3856, %v3947
      %v3954 = vadd.f32 %v3861, %v3950
      %v3955 = vadd.f32 %v3953, %v3490
      %v3956 = vadd.f32 %v3954, %v3491
      %vm3957 = vcmp.ge.f32.partialorder %v3955, 0.0
      %vm3958 = vcmp.ge.f32.partialorder %v3956, 0.0
      %v3959 = vmul.f32 %v3955, 0.01
      %v3960 = vmul.f32 %v3956, 0.01
      %v3961 = vsel %vm3957, %v3955, %v3959
      %v3962 = vsel %vm3958, %v3956, %v3960
      %v3979 = vunpack.c.l.b16 %v3492
      %v3980 = vunpack.c.l.b16 %v3493
      %v3981 = vunpack.c.l.b16 %v3494
      %v3982 = vunpack.c.l.b16 %v3495
      %v3983 = vunpack.c.l.b16 %v3496
      %v3984 = vunpack.c.l.b16 %v3497
      %v3985 = vunpack.c.l.b16 %v3498
      %v3986 = vunpack.c.l.b16 %v3499
      %v3987 = vunpack.c.l.b16 %v3500
      %v3988 = vunpack.c.l.b16 %v3501
      %v3989 = vunpack.c.l.b16 %v3502
      %v3990 = vunpack.c.l.b16 %v3503
      %v3991 = vunpack.c.l.b16 %v3504
      %v3992 = vunpack.c.l.b16 %v3505
      %v3993 = vunpack.c.l.b16 %v3506
      %v3994 = vunpack.c.l.b16 %v3507
      %v3995 = vpack.c.b16 %v3980, %v3979
      %v3996 = vpack.c.b16 %v3982, %v3981
      %v3997 = vpack.c.b16 %v3984, %v3983
      %v3998 = vpack.c.b16 %v3986, %v3985
      %v3999 = vpack.c.b16 %v3988, %v3987
      %v4000 = vpack.c.b16 %v3990, %v3989
      %v4001 = vpack.c.b16 %v3992, %v3991
      %v4002 = vpack.c.b16 %v3994, %v3993
      %4011 = vmatprep.subr.bf16.mxu0 0
      %4012 = vmatpush1.bf16.msra.mxu0 %v3995
      %4013 = vmatprep.subr.bf16.mxu0 0
      %4014 = vmatpush1.bf16.msra.mxu0 %v3996
      %4015 = vmatprep.subr.bf16.mxu0 0
      %4016 = vmatpush1.bf16.msra.mxu0 %v3997
      %4017 = vmatprep.subr.bf16.mxu0 0
      %4018 = vmatpush1.bf16.msra.mxu0 %v3998
      %4019 = vmatprep.subr.bf16.mxu0 0
      %4020 = vmatpush1.bf16.msra.mxu0 %v3999
      %4021 = vmatprep.subr.bf16.mxu0 0
      %4022 = vmatpush1.bf16.msra.mxu0 %v4000
      %4023 = vmatprep.subr.bf16.mxu0 0
      %4024 = vmatpush1.bf16.msra.mxu0 %v4001
      %4025 = vmatprep.subr.bf16.mxu0 0
      %4026 = vmatpush1.bf16.msra.mxu0 %v4002
      %4027 = vmatprep.subr.bf16.mxu0 0
      %4028 = vmatpush1.bf16.msra.mxu0 0
      %4029 = vmatprep.subr.bf16.mxu0 0
      %4030 = vmatpush1.bf16.msra.mxu0 0
      %4031 = vmatprep.subr.bf16.mxu0 0
      %4032 = vmatpush1.bf16.msra.mxu0 0
      %4033 = vmatprep.subr.bf16.mxu0 0
      %4034 = vmatpush1.bf16.msra.mxu0 0
      %4035 = vmatprep.subr.bf16.mxu0 0
      %4036 = vmatpush1.bf16.msra.mxu0 0
      %4037 = vmatprep.subr.bf16.mxu0 0
      %4038 = vmatpush1.bf16.msra.mxu0 0
      %4039 = vmatprep.subr.bf16.mxu0 0
      %4040 = vmatpush1.bf16.msra.mxu0 0
      %4041 = vmatprep.subr.bf16.mxu0 0
      %4042 = vmatpush1.bf16.msra.mxu0 0
      %4043 = vmatprep.mubr.bf16.mxu0 0
      %4044 = vmatmul.mubr.bf16.gmra.mrb[0].mxu0 %v3525
      %v4045 = vpop.f32.mrb[0].mxu0
      %v4046 = vadd.f32 0.0, %v4045
      %v4047 = vpop.f32.mrb[0].mxu0
      %v4048 = vpop.f32.mrb[0].mxu0
      %v4049 = vadd.f32 0.0, %v4048
      %v4050 = vpop.f32.mrb[0].mxu0
      %4051 = vdwg.mxu0
      %v4068 = vunpack.c.l.b16 %v3508
      %v4069 = vunpack.c.l.b16 %v3509
      %v4070 = vunpack.c.l.b16 %v3510
      %v4071 = vunpack.c.l.b16 %v3511
      %v4072 = vunpack.c.l.b16 %v3512
      %v4073 = vunpack.c.l.b16 %v3513
      %v4074 = vunpack.c.l.b16 %v3514
      %v4075 = vunpack.c.l.b16 %v3515
      %v4076 = vunpack.c.l.b16 %v3516
      %v4077 = vunpack.c.l.b16 %v3517
      %v4078 = vunpack.c.l.b16 %v3518
      %v4079 = vunpack.c.l.b16 %v3519
      %v4080 = vunpack.c.l.b16 %v3520
      %v4081 = vunpack.c.l.b16 %v3521
      %v4082 = vunpack.c.l.b16 %v3522
      %v4083 = vunpack.c.l.b16 %v3523
      %v4084 = vpack.c.b16 %v4069, %v4068
      %v4085 = vpack.c.b16 %v4071, %v4070
      %v4086 = vpack.c.b16 %v4073, %v4072
      %v4087 = vpack.c.b16 %v4075, %v4074
      %v4088 = vpack.c.b16 %v4077, %v4076
      %v4089 = vpack.c.b16 %v4079, %v4078
      %v4090 = vpack.c.b16 %v4081, %v4080
      %v4091 = vpack.c.b16 %v4083, %v4082
      %4100 = vmatprep.subr.bf16.mxu0 0
      %4101 = vmatpush1.bf16.msra.mxu0 %v4084
      %4102 = vmatprep.subr.bf16.mxu0 0
      %4103 = vmatpush1.bf16.msra.mxu0 %v4085
      %4104 = vmatprep.subr.bf16.mxu0 0
      %4105 = vmatpush1.bf16.msra.mxu0 %v4086
      %4106 = vmatprep.subr.bf16.mxu0 0
      %4107 = vmatpush1.bf16.msra.mxu0 %v4087
      %4108 = vmatprep.subr.bf16.mxu0 0
      %4109 = vmatpush1.bf16.msra.mxu0 %v4088
      %4110 = vmatprep.subr.bf16.mxu0 0
      %4111 = vmatpush1.bf16.msra.mxu0 %v4089
      %4112 = vmatprep.subr.bf16.mxu0 0
      %4113 = vmatpush1.bf16.msra.mxu0 %v4090
      %4114 = vmatprep.subr.bf16.mxu0 0
      %4115 = vmatpush1.bf16.msra.mxu0 %v4091
      %4116 = vmatprep.subr.bf16.mxu0 0
      %4117 = vmatpush1.bf16.msra.mxu0 0
      %4118 = vmatprep.subr.bf16.mxu0 0
      %4119 = vmatpush1.bf16.msra.mxu0 0
      %4120 = vmatprep.subr.bf16.mxu0 0
      %4121 = vmatpush1.bf16.msra.mxu0 0
      %4122 = vmatprep.subr.bf16.mxu0 0
      %4123 = vmatpush1.bf16.msra.mxu0 0
      %4124 = vmatprep.subr.bf16.mxu0 0
      %4125 = vmatpush1.bf16.msra.mxu0 0
      %4126 = vmatprep.subr.bf16.mxu0 0
      %4127 = vmatpush1.bf16.msra.mxu0 0
      %4128 = vmatprep.subr.bf16.mxu0 0
      %4129 = vmatpush1.bf16.msra.mxu0 0
      %4130 = vmatprep.subr.bf16.mxu0 0
      %4131 = vmatpush1.bf16.msra.mxu0 0
      %4132 = vmatprep.mubr.bf16.mxu0 0
      %4133 = vmatmul.mubr.bf16.gmra.mrb[0].mxu0 %v3327
      %v4134 = vpop.f32.mrb[0].mxu0
      %v4135 = vadd.f32 0.0, %v4134
      %v4136 = vpop.f32.mrb[0].mxu0
      %v4137 = vpop.f32.mrb[0].mxu0
      %v4138 = vpop.f32.mrb[0].mxu0
      %4139 = vdwg.mxu0
      %v4141 = vsel %vm2205, %v3441, 0
      %4143 = vmatprep.subr.mxu0 0.0
      %4144 = vmatpush1.msra.mxu0 %v4046
      %4145 = vmatprep.subr.mxu0 0.0
      %4146 = vmatpush1.msra.mxu0 %v4049
      %4147 = vmatprep.subr.mxu0 0.0
      %4148 = vmatpush1.msra.mxu0 0.0
      %4149 = vmatprep.subr.mxu0 0.0
      %4150 = vmatpush1.msra.mxu0 0.0
      %4151 = vmatprep.subr.mxu0 0.0
      %4152 = vmatpush1.msra.mxu0 0.0
      %4153 = vmatprep.subr.mxu0 0.0
      %4154 = vmatpush1.msra.mxu0 0.0
      %4155 = vmatprep.subr.mxu0 0.0
      %4156 = vmatpush1.msra.mxu0 0.0
      %4157 = vmatprep.subr.mxu0 0.0
      %4158 = vmatpush1.msra.mxu0 0.0
      %4159 = vmatprep.subr.mxu0 0.0
      %4160 = vmatpush1.msra.mxu0 0.0
      %4161 = vmatprep.subr.mxu0 0.0
      %4162 = vmatpush1.msra.mxu0 0.0
      %4163 = vmatprep.subr.mxu0 0.0
      %4164 = vmatpush1.msra.mxu0 0.0
      %4165 = vmatprep.subr.mxu0 0.0
      %4166 = vmatpush1.msra.mxu0 0.0
      %4167 = vmatprep.subr.mxu0 0.0
      %4168 = vmatpush1.msra.mxu0 0.0
      %4169 = vmatprep.subr.mxu0 0.0
      %4170 = vmatpush1.msra.mxu0 0.0
      %4171 = vmatprep.subr.mxu0 0.0
      %4172 = vmatpush1.msra.mxu0 0.0
      %4173 = vmatprep.subr.mxu0 0.0
      %4174 = vmatpush1.msra.mxu0 0.0
      %4175 = vmatprep.subr.mxu0 0.0
      %4176 = vmatpush1.msra.mxu0 0.0
      %4177 = vmatprep.subr.mxu0 0.0
      %4178 = vmatpush1.msra.mxu0 0.0
      %4179 = vmatprep.subr.mxu0 0.0
      %4180 = vmatpush1.msra.mxu0 0.0
      %4181 = vmatprep.subr.mxu0 0.0
      %4182 = vmatpush1.msra.mxu0 0.0
      %4183 = vmatprep.subr.mxu0 0.0
      %4184 = vmatpush1.msra.mxu0 0.0
      %4185 = vmatprep.subr.mxu0 0.0
      %4186 = vmatpush1.msra.mxu0 0.0
      %4187 = vmatprep.subr.mxu0 0.0
      %4188 = vmatpush1.msra.mxu0 0.0
      %4189 = vmatprep.subr.mxu0 0.0
      %4190 = vmatpush1.msra.mxu0 0.0
      %4191 = vmatprep.subr.mxu0 0.0
      %4192 = vmatpush1.msra.mxu0 0.0
      %4193 = vmatprep.subr.mxu0 0.0
      %4194 = vmatpush1.msra.mxu0 0.0
      %4195 = vmatprep.subr.mxu0 0.0
      %4196 = vmatpush1.msra.mxu0 0.0
      %4197 = vmatprep.subr.mxu0 0.0
      %4198 = vmatpush1.msra.mxu0 0.0
      %4199 = vmatprep.subr.mxu0 0.0
      %4200 = vmatpush1.msra.mxu0 0.0
      %4201 = vmatprep.subr.mxu0 0.0
      %4202 = vmatpush1.msra.mxu0 0.0
      %4203 = vmatprep.subr.mxu0 0.0
      %4204 = vmatpush1.msra.mxu0 0.0
      %4205 = vmatprep.subr.mxu0 0.0
      %4206 = vmatpush1.msra.mxu0 0.0
      %4207 = vmatprep.mubr.f32.mxu0 0.0
      %4208 = vmatmul.mubr.f32.gmra.mrb[0].mxu0 %v4141
      %v4209 = vpop.f32.mrb[0].mxu0
      %v4210 = vadd.f32 %v4135, %v4209
      %v4211 = vpop.f32.mrb[0].mxu0
      %4212 = vdwg.mxu0
      %v4213 = vadd.f32 %v4210, %v3524
      %vm4214 = vcmp.ge.f32.partialorder %v4213, 0.0
      %v4215 = vmul.f32 %v4213, 0.01
      %v4216 = vsel %vm4214, %v4213, %v4215
      %4217 = vst [vmem:[#allocation2] sm:$0xff] %v4216
      %4218 = vst [vmem:[#allocation3] sm:$0xff] %v3961
      %4219 = vst [vmem:[#allocation3 + $0x10] sm:$0xff] %v3962
    $region138: #{tpu_custom_call.1} parent=1 // loop_footer
      %s349 = sadd.s32 1, %s345
    $region139: #{tpu_custom_call.1} parent=1 // loop_footer_branch
      %344 = sbr.rel target = $region135
    $region140: #{tpu_custom_call.1} parent=1 // loop_exit
      _
    %v4220 = vld [vmem:[#allocation6] sm:$0xff]
    %v4221 = vld [vmem:[%s19] sm:$0xff]
    %v4222 = vadd.f32 %v4220, %v4221
    %vm4223 = vcmask 31744
    %4224 = vst.msk [vmem:[%s20] sm:$0xff] %vm4223, %v4222
    // Predicated region
    $region141: #{tpu_custom_call.1} parent=1 // pred_check
      _
    $region142: #{tpu_custom_call.1} parent=1 // pred_check_branch
      %4226 = sbr.rel (0) target = $region144
    $region143: #{tpu_custom_call.1} parent=1 // pred_region
      _
    $region144: #{tpu_custom_call.1} parent=1 // pred_fallthru
      _
    // Predicated region
    $region145: #{tpu_custom_call.1} parent=1 // pred_check
      _
    $region146: #{tpu_custom_call.1} parent=1 // pred_check_branch
      %4228 = sbr.rel (0) target = $region148
    $region147: #{tpu_custom_call.1} parent=1 // pred_region
      _
    $region148: #{tpu_custom_call.1} parent=1 // pred_fallthru
      _
    %4229 = vsyncpa [#allocation8], 1
    %4230 = vsyncpa [#allocation10], 1
    %4231 = vsyncpa [#allocation13], 1
    %4232 = vsyncpa [#allocation16], 1
    %4233 = vsyncpa [#allocation19], 1
    %4234 = vsyncpa [#allocation22], 1
    %4235 = vsyncpa [#allocation25], 1

</llo_original>
